<compile_context>
chip_gen: v6e
topology: v6e:2x2x1
jax: 0.10.0
libtpu: 0.0.40
codegen_flags: <defaults>
</compile_context>

<pallas_src>
import functools
import math

import jax
import jax.numpy as jnp
from jax.experimental import pallas as pl
from jax.experimental.pallas import tpu as pltpu


# ----------------------------- Pallas kernels ------------------------------ #

def _l2_normalize(v):
    # F.normalize(v, p=2, dim=-1) == v / max(||v||_2, 1e-12); rsqrt lands on the EUP slot.
    sumsq = jnp.sum(v * v, axis=-1, keepdims=True)
    return v * jax.lax.rsqrt(jnp.maximum(sumsq, 1e-24))


def _sage_layer1_kernel(a_ref, x_ref, invdeg_ref, w1_ref, wa1_ref, wcat_ref,
                        s2_ref, z2_ref, acc_ref):
    """Layer 1 (aggregation-first) + fused ReLU + fused layer-2 projections.

    Grid = (node_tiles, k_tiles); k is the reduction over A's neighbor axis.
      a_ref      : (tm, tk)        bf16 tile of UNNORMALIZED edge counts A[c, r]
      x_ref      : (n_pad, fin_p)  bf16 node features, fully VMEM-resident
      invdeg_ref : (tm, 1)         f32  1 / max(in-degree, 1) for this node tile
      w1_ref     : (fin_p, hid_p)  bf16 self weight (transposed)
      wa1_ref    : (fin_p, hid_p)  bf16 aggregation weight (transposed)
      wcat_ref   : (hid_p, 2*cp)   bf16 [W2 | Wa2] (transposed, class-padded)
      s2_ref     : (tm, cp)        out: relu(h) @ W2   (f32)
      z2_ref     : (tm, cp)        out: relu(h) @ Wa2  (bf16, streamed by layer 2)
      acc_ref    : (tm, fin_p)     f32 VMEM accumulator for A_counts @ X
    """
    i = pl.program_id(0)
    k = pl.program_id(1)
    tm = a_ref.shape[0]
    tk = a_ref.shape[1]
    cp = s2_ref.shape[1]

    @pl.when(k == 0)
    def _init():
        acc_ref[...] = jnp.zeros_like(acc_ref)

    # Neighbor-sum aggregation: bf16 MXU inputs, f32 accumulation.
    k_off = pl.multiple_of(k * tk, tk)
    acc_ref[...] += jnp.dot(a_ref[...], x_ref[pl.ds(k_off, tk), :],
                            preferred_element_type=jnp.float32)

    @pl.when(k == pl.num_programs(1) - 1)
    def _finalize():
        # Mean = sum * (1/deg), applied after accumulation (exact, no bf16 1/deg rounding).
        agg = (acc_ref[...] * invdeg_ref[...]).astype(jnp.bfloat16)
        i_off = pl.multiple_of(i * tm, tm)
        x_i = x_ref[pl.ds(i_off, tm), :]           # self-term slice of resident X
        h = (jnp.dot(agg, wa1_ref[...], preferred_element_type=jnp.float32)
             + jnp.dot(x_i, w1_ref[...], preferred_element_type=jnp.float32))
        h = _l2_normalize(h)
        h = jnp.maximum(h, 0.0)                    # ReLU
        # TODO(synk): F.dropout(training=True) skipped (eval / identity). Could be fused
        # here with pltpu.prng_seed + pltpu.prng_random_bits on `h`.
        hc = jnp.dot(h.astype(jnp.bfloat16), wcat_ref[...],
                     preferred_element_type=jnp.float32)   # one 256-lane-wide matmul
        s2_ref[...] = hc[:, :cp]
        z2_ref[...] = hc[:, cp:].astype(z2_ref.dtype)


def _sage_layer2_kernel(a_ref, z_ref, invdeg_ref, s_ref, o_ref, acc_ref,
                        *, num_classes):
    """Layer 2 reassociated as (1/deg) * (A_counts @ (H@Wa2)) + H@W2, fused log_softmax.

      a_ref      : (tm, tk)      bf16 unnormalized-count tile
      z_ref      : (n_pad, cp)   bf16 Z = relu(H) @ Wa2, fully VMEM-resident
      invdeg_ref : (tm, 1)       f32 per-row 1/deg
      s_ref      : (tm, cp)      f32 self term relu(H) @ W2
      o_ref      : (tm, cp)      log-probs (padded classes written as 0, sliced outside)
    """
    k = pl.program_id(1)
    tk = a_ref.shape[1]

    @pl.when(k == 0)
    def _init():
        acc_ref[...] = jnp.zeros_like(acc_ref)

    k_off = pl.multiple_of(k * tk, tk)
    acc_ref[...] += jnp.dot(a_ref[...], z_ref[pl.ds(k_off, tk), :],
                            preferred_element_type=jnp.float32)

    @pl.when(k == pl.num_programs(1) - 1)
    def _finalize():
        out = _l2_normalize(acc_ref[...] * invdeg_ref[...] + s_ref[...])
        # log_softmax over the real classes only; columns >= num_classes are lane padding
        # (they are exactly zero before the normalize, so the L2 norm is unaffected).
        col = jax.lax.broadcasted_iota(jnp.int32, out.shape, 1)
        valid = col < num_classes
        masked = jnp.where(valid, out, -1e30)
        m = jnp.max(masked, axis=-1, keepdims=True)
        s = masked - m
        lse = jnp.log(jnp.sum(jnp.exp(s), axis=-1, keepdims=True))
        o_ref[...] = jnp.where(valid, s - lse, 0.0)


# ------------------------------ JAX wrappers -------------------------------- #

def _round_up(x, m):
    return ((x + m - 1) // m) * m


# Explicit scoped-VMEM limit: above the 16/32 MiB defaults (so bigger tiles don't get
# silently squeezed), below v7x's 64 MiB physical VMEM.  Re-derive when raising tiles.
_VMEM_LIMIT = 48 * 1024 * 1024


def sage_layer1(a, x, invdeg, w1_t, wa1_t, wcat, *, tm=128, tk=128):
    n_pad, fin_p = x.shape
    hid_p = w1_t.shape[1]
    cp = wcat.shape[1] // 2
    return pl.pallas_call(
        _sage_layer1_kernel,
        out_shape=(jax.ShapeDtypeStruct((n_pad, cp), jnp.float32),    # S2 = relu(h) @ W2
                   jax.ShapeDtypeStruct((n_pad, cp), jnp.bfloat16)),  # Z2 = relu(h) @ Wa2
        grid=(n_pad // tm, n_pad // tk),
        in_specs=[
            pl.BlockSpec((tm, tk), lambda i, k: (i, k)),          # A counts tile (bf16)
            pl.BlockSpec((n_pad, fin_p), lambda i, k: (0, 0)),    # X resident (bf16)
            pl.BlockSpec((tm, 1), lambda i, k: (i, 0)),           # 1/deg (f32)
            pl.BlockSpec((fin_p, hid_p), lambda i, k: (0, 0)),    # W1^T  (bf16)
            pl.BlockSpec((fin_p, hid_p), lambda i, k: (0, 0)),    # Wa1^T (bf16)
            pl.BlockSpec((hid_p, 2 * cp), lambda i, k: (0, 0)),   # [W2|Wa2]^T (bf16)
        ],
        out_specs=(pl.BlockSpec((tm, cp), lambda i, k: (i, 0)),
                   pl.BlockSpec((tm, cp), lambda i, k: (i, 0))),
        scratch_shapes=[pltpu.VMEM((tm, fin_p), jnp.float32)],
        compiler_params=pltpu.CompilerParams(
            dimension_semantics=("parallel", "arbitrary"),
            vmem_limit_bytes=_VMEM_LIMIT),
    )(a, x, invdeg, w1_t, wa1_t, wcat)


def sage_layer2(a, z2, invdeg, s2, *, num_classes, tm=128, tk=128):
    n_pad, cp = z2.shape
    kernel = functools.partial(_sage_layer2_kernel, num_classes=num_classes)
    return pl.pallas_call(
        kernel,
        out_shape=jax.ShapeDtypeStruct((n_pad, cp), jnp.float32),
        grid=(n_pad // tm, n_pad // tk),
        in_specs=[
            pl.BlockSpec((tm, tk), lambda i, k: (i, k)),          # A counts tile (bf16)
            pl.BlockSpec((n_pad, cp), lambda i, k: (0, 0)),       # Z2 resident (bf16)
            pl.BlockSpec((tm, 1), lambda i, k: (i, 0)),           # 1/deg (f32)
            pl.BlockSpec((tm, cp), lambda i, k: (i, 0)),          # S2 self term (f32)
        ],
        out_specs=pl.BlockSpec((tm, cp), lambda i, k: (i, 0)),
        scratch_shapes=[pltpu.VMEM((tm, cp), jnp.float32)],
        compiler_params=pltpu.CompilerParams(
            dimension_semantics=("parallel", "arbitrary"),
            vmem_limit_bytes=_VMEM_LIMIT),
    )(a, z2, invdeg, s2)


def build_agg_counts(edge_index, n_pad):
    """Dense UNNORMALIZED edge-count matrix A[c, r] (bf16-exact) + f32 1/deg vector.

    Glue code: the scatter-add is data-dependent.
    TODO(synk): this is O(N^2) HBM; for real graph sizes build per-node-tile lists of
    nonzero k-tiles and feed them via PrefetchScalarGridSpec so zero A tiles are never
    DMA'd or multiplied (block-sparse aggregation).
    """
    row, col = edge_index[0], edge_index[1]
    counts = jnp.zeros((n_pad, n_pad), jnp.float32).at[col, row].add(1.0)
    deg = jnp.zeros((n_pad,), jnp.float32).at[col].add(1.0)
    invdeg = (1.0 / jnp.maximum(deg, 1.0))[:, None]          # (n_pad, 1) f32
    return counts.astype(jnp.bfloat16), invdeg


def graphsage_forward(params, x, edge_index, *, tm=128, tk=128):
    n, fin = x.shape
    hid = params["w1_t"].shape[1]
    num_classes = params["w2_t"].shape[1]

    cp = _round_up(num_classes, 128)      # lane-dense class dim
    fin_p = _round_up(fin, 128)           # lane-dense feature dim
    hid_p = _round_up(hid, 128)           # lane-dense hidden dim
    n_pad = _round_up(n, math.lcm(tm, tk))

    counts, invdeg = build_agg_counts(edge_index, n_pad)

    # bf16 HBM streams / MXU operands (zero-padding keeps the math exact).
    x_p = jnp.pad(x, ((0, n_pad - n), (0, fin_p - fin))).astype(jnp.bfloat16)
    w1_p = jnp.pad(params["w1_t"], ((0, fin_p - fin), (0, hid_p - hid))).astype(jnp.bfloat16)
    wa1_p = jnp.pad(params["wa1_t"], ((0, fin_p - fin), (0, hid_p - hid))).astype(jnp.bfloat16)
    w2_p = jnp.pad(params["w2_t"], ((0, hid_p - hid), (0, cp - num_classes)))
    wa2_p = jnp.pad(params["wa2_t"], ((0, hid_p - hid), (0, cp - num_classes)))
    wcat = jnp.concatenate([w2_p, wa2_p], axis=1).astype(jnp.bfloat16)  # (hid_p, 2*cp)

    # conv1 + relu (fused) + fused self term + fused layer-2 projections
    # (H never round-trips HBM; X stays resident in VMEM).
    s2, z2 = sage_layer1(counts, x_p, invdeg, w1_p, wa1_p, wcat, tm=tm, tk=tk)
    # conv2 (reassociated, Z2 resident) + fused masked log_softmax.
    out = sage_layer2(counts, z2, invdeg, s2, num_classes=num_classes, tm=tm, tk=tk)
    return out[:n, :num_classes]


# ------------------------- pure-JAX reference (f32) ------------------------- #

def _reference_forward(params, x, edge_index):
    n = x.shape[0]
    row, col = edge_index[0], edge_index[1]

    def conv(h, w_t, wa_t):
        agg = jnp.zeros((n, h.shape[1]), jnp.float32).at[col].add(h[row])
        cnt = jnp.zeros((n,), jnp.float32).at[col].add(1.0)
        agg = agg / jnp.maximum(cnt, 1.0)[:, None]
        out = agg @ wa_t + h @ w_t
        norm = jnp.sqrt(jnp.sum(out * out, axis=-1, keepdims=True))
        return out / jnp.maximum(norm, 1e-12)

    h = jax.nn.relu(conv(x, params["w1_t"], params["wa1_t"]))
    o = conv(h, params["w2_t"], params["wa2_t"])
    return jax.nn.log_softmax(o, axis=-1)


# --------------------------------- main ------------------------------------ #

def init_params(key, num_features, hidden, num_classes):
    """nn.Linear(in, out, bias=False): weight (out, in), init U(-1/sqrt(in), 1/sqrt(in)).
    Stored transposed as (in, out) so y = x @ W_t."""
    ks = jax.random.split(key, 4)

    def linear_t(k, fin, fout):
        bound = 1.0 / jnp.sqrt(fin)
        return jax.random.uniform(k, (fin, fout), jnp.float32, -bound, bound)

    return {
        "w1_t": linear_t(ks[0], num_features, hidden),
        "wa1_t": linear_t(ks[1], num_features, hidden),
        "w2_t": linear_t(ks[2], hidden, num_classes),
        "wa2_t": linear_t(ks[3], hidden, num_classes),
    }


if __name__ == "__main__":
    # Small synthetic "Cora-like" graph (module hardcodes hidden=1024; shrunk to 128 here).
    N, E = 256, 1024
    NUM_FEATURES, HIDDEN, NUM_CLASSES = 32, 128, 8

    key = jax.random.PRNGKey(0)
    k_x, k_row, k_col, k_p = jax.random.split(key, 4)

    x = jax.random.normal(k_x, (N, NUM_FEATURES), jnp.float32)
    edge_index = jnp.stack([
        jax.random.randint(k_row, (E,), 0, N, jnp.int32),
        jax.random.randint(k_col, (E,), 0, N, jnp.int32),
    ])

    params = init_params(k_p, NUM_FEATURES, HIDDEN, NUM_CLASSES)

    out = jax.jit(graphsage_forward)(params, x, edge_index)
    out = jax.block_until_ready(out)

    assert out.shape == (N, NUM_CLASSES) and out.dtype == jnp.float32
    assert bool(jnp.all(jnp.isfinite(out)))

    # Loose structural-correctness check (bf16 MXU streams vs f32 reference).
    ref = _reference_forward(params, x, edge_index)
    assert bool(jnp.allclose(out, ref, atol=1e-1, rtol=1e-1))

    print("KERNEL_OK")
</pallas_src>

<mosaic_0001>
module attributes {stable_mosaic.version = 11 : i64} {
  func.func private @main(%arg0: i32) attributes {dimension_semantics = [#tpu.dimension_semantics<core_parallel>], iteration_bounds = array<i64: 2>, tpu.core_type = #tpu.core_type<sc_scalar_subcore>, window_params = []} {
    return
  }
}

module attributes {stable_mosaic.version = 11 : i64} {
  func.func private @main(%arg0: i32) attributes {dimension_semantics = [#tpu.dimension_semantics<core_parallel>], iteration_bounds = array<i64: 2>, tpu.core_type = #tpu.core_type<sc_scalar_subcore>, window_params = []} {
    return
  }
}

module attributes {stable_mosaic.version = 11 : i64} {
  func.func @_sage_layer1_kernel(%arg0: i32, %arg1: i32, %arg2: memref<128x128xbf16, #tpu.memory_space<vmem>>, %arg3: memref<256x128xbf16, #tpu.memory_space<vmem>>, %arg4: memref<128x1xf32, #tpu.memory_space<vmem>>, %arg5: memref<128x128xbf16, #tpu.memory_space<vmem>>, %arg6: memref<128x128xbf16, #tpu.memory_space<vmem>>, %arg7: memref<128x256xbf16, #tpu.memory_space<vmem>>, %arg8: memref<128x128xf32, #tpu.memory_space<vmem>>, %arg9: memref<128x128xbf16, #tpu.memory_space<vmem>>, %arg10: memref<128x128xf32, #tpu.memory_space<vmem>>) attributes {dimension_semantics = [#tpu.dimension_semantics<parallel>, #tpu.dimension_semantics<arbitrary>], iteration_bounds = array<i64: 2, 2>, scalar_prefetch = 0 : i64, scratch_operands = 1 : i64, tpu.core_type = #tpu.core_type<tc>, window_params = [{transform_indices = @transform_0, window_bounds = array<i64: 128, 128>}, {pipeline_mode = #tpu.pipeline_mode<synchronous>, transform_indices = @transform_1, window_bounds = array<i64: 256, 128>}, {transform_indices = @transform_2, window_bounds = array<i64: 128, 1>}, {pipeline_mode = #tpu.pipeline_mode<synchronous>, transform_indices = @transform_3, window_bounds = array<i64: 128, 128>}, {pipeline_mode = #tpu.pipeline_mode<synchronous>, transform_indices = @transform_4, window_bounds = array<i64: 128, 128>}, {pipeline_mode = #tpu.pipeline_mode<synchronous>, transform_indices = @transform_5, window_bounds = array<i64: 128, 256>}, {transform_indices = @transform_6, window_bounds = array<i64: 128, 128>}, {transform_indices = @transform_7, window_bounds = array<i64: 128, 128>}]} {
    %c0_i32 = arith.constant 0 : i32
    %0 = arith.cmpi eq, %arg1, %c0_i32 : i32
    %1 = arith.extui %0 : i1 to i32
    %c0_i32_0 = arith.constant 0 : i32
    %2 = arith.cmpi ne, %1, %c0_i32_0 : i32
    scf.if %2 {
      %cst_8 = arith.constant 0.000000e+00 : f32
      %15 = vector.broadcast %cst_8 : f32 to vector<128x128xf32>
      %c0_9 = arith.constant 0 : index
      %c0_10 = arith.constant 0 : index
      %16 = vector.load %arg10[%c0_9, %c0_10] : memref<128x128xf32, #tpu.memory_space<vmem>>, vector<128x128xf32>
      tpu.vector_store %arg10[%c0_9, %c0_10], %15 {strides = array<i32>} : memref<128x128xf32, #tpu.memory_space<vmem>>, vector<128x128xf32>,
    } else {
    }
    %c128_i32 = arith.constant 128 : i32
    %3 = arith.muli %arg1, %c128_i32 : i32
    %4 = tpu.assume_multiple %3, 128 : i32
    %c0 = arith.constant 0 : index
    %c0_1 = arith.constant 0 : index
    %5 = vector.load %arg10[%c0, %c0_1] : memref<128x128xf32, #tpu.memory_space<vmem>>, vector<128x128xf32>
    %c0_2 = arith.constant 0 : index
    %c0_3 = arith.constant 0 : index
    %6 = vector.load %arg2[%c0_2, %c0_3] : memref<128x128xbf16, #tpu.memory_space<vmem>>, vector<128x128xbf16>
    %7 = arith.index_cast %4 : i32 to index
    %c0_4 = arith.constant 0 : index
    %8 = vector.load %arg3[%7, %c0_4] : memref<256x128xbf16, #tpu.memory_space<vmem>>, vector<128x128xbf16>
    %cst = arith.constant dense<0.000000e+00> : vector<128x128xf32>
    %9 = tpu.matmul %6, %8, %cst {dimension_numbers = #tpu.dot_dimension_numbers<[1], [0], [0], [1], [0, 0, 1, 1], [], []>} : vector<128x128xbf16>, vector<128x128xbf16>, vector<128x128xf32> -> vector<128x128xf32>
    %10 = arith.addf %5, %9 : vector<128x128xf32>
    %c0_5 = arith.constant 0 : index
    %c0_6 = arith.constant 0 : index
    %11 = vector.load %arg10[%c0_5, %c0_6] : memref<128x128xf32, #tpu.memory_space<vmem>>, vector<128x128xf32>
    tpu.vector_store %arg10[%c0_5, %c0_6], %10 {strides = array<i32>} : memref<128x128xf32, #tpu.memory_space<vmem>>, vector<128x128xf32>,
    %c1_i32 = arith.constant 1 : i32
    %12 = arith.cmpi eq, %arg1, %c1_i32 : i32
    %13 = arith.extui %12 : i1 to i32
    %c0_i32_7 = arith.constant 0 : i32
    %14 = arith.cmpi ne, %13, %c0_i32_7 : i32
    scf.if %14 {
      %c0_8 = arith.constant 0 : index
      %c0_9 = arith.constant 0 : index
      %15 = vector.load %arg10[%c0_8, %c0_9] : memref<128x128xf32, #tpu.memory_space<vmem>>, vector<128x128xf32>
      %c0_10 = arith.constant 0 : index
      %c0_11 = arith.constant 0 : index
      %16 = vector.load %arg4[%c0_10, %c0_11] : memref<128x1xf32, #tpu.memory_space<vmem>>, vector<128x1xf32>
      %17 = vector.broadcast %16 : vector<128x1xf32> to vector<128x128xf32>
      %18 = arith.mulf %15, %17 : vector<128x128xf32>
      %19 = arith.truncf %18 : vector<128x128xf32> to vector<128x128xbf16>
      %c128_i32_12 = arith.constant 128 : i32
      %20 = arith.muli %arg0, %c128_i32_12 : i32
      %21 = tpu.assume_multiple %20, 128 : i32
      %22 = arith.index_cast %21 : i32 to index
      %c0_13 = arith.constant 0 : index
      %23 = vector.load %arg3[%22, %c0_13] : memref<256x128xbf16, #tpu.memory_space<vmem>>, vector<128x128xbf16>
      %c0_14 = arith.constant 0 : index
      %c0_15 = arith.constant 0 : index
      %24 = vector.load %arg6[%c0_14, %c0_15] : memref<128x128xbf16, #tpu.memory_space<vmem>>, vector<128x128xbf16>
      %cst_16 = arith.constant dense<0.000000e+00> : vector<128x128xf32>
      %25 = tpu.matmul %19, %24, %cst_16 {dimension_numbers = #tpu.dot_dimension_numbers<[1], [0], [0], [1], [0, 0, 1, 1], [], []>} : vector<128x128xbf16>, vector<128x128xbf16>, vector<128x128xf32> -> vector<128x128xf32>
      %c0_17 = arith.constant 0 : index
      %c0_18 = arith.constant 0 : index
      %26 = vector.load %arg5[%c0_17, %c0_18] : memref<128x128xbf16, #tpu.memory_space<vmem>>, vector<128x128xbf16>
      %cst_19 = arith.constant dense<0.000000e+00> : vector<128x128xf32>
      %27 = tpu.matmul %23, %26, %cst_19 {dimension_numbers = #tpu.dot_dimension_numbers<[1], [0], [0], [1], [0, 0, 1, 1], [], []>} : vector<128x128xbf16>, vector<128x128xbf16>, vector<128x128xf32> -> vector<128x128xf32>
      %28 = arith.addf %25, %27 : vector<128x128xf32>
      %29 = arith.mulf %28, %28 : vector<128x128xf32>
      %cst_20 = arith.constant dense<0.000000e+00> : vector<128xf32>
      %30 = vector.multi_reduction <add>, %29, %cst_20 [1] : vector<128x128xf32> to vector<128xf32>
      %31 = vector.shape_cast %30 : vector<128xf32> to vector<128x1xf32>
      %cst_21 = arith.constant 1.000000e-24 : f32
      %32 = vector.broadcast %cst_21 : f32 to vector<128x1xf32>
      %33 = arith.maximumf %31, %32 : vector<128x1xf32>
      %34 = math.rsqrt %33 : vector<128x1xf32>
      %35 = vector.broadcast %34 : vector<128x1xf32> to vector<128x128xf32>
      %36 = arith.mulf %28, %35 : vector<128x128xf32>
      %cst_22 = arith.constant 0.000000e+00 : f32
      %37 = vector.broadcast %cst_22 : f32 to vector<128x128xf32>
      %38 = arith.maximumf %36, %37 : vector<128x128xf32>
      %39 = arith.truncf %38 : vector<128x128xf32> to vector<128x128xbf16>
      %c0_23 = arith.constant 0 : index
      %c0_24 = arith.constant 0 : index
      %40 = vector.load %arg7[%c0_23, %c0_24] : memref<128x256xbf16, #tpu.memory_space<vmem>>, vector<128x256xbf16>
      %cst_25 = arith.constant dense<0.000000e+00> : vector<128x256xf32>
      %41 = tpu.matmul %39, %40, %cst_25 {dimension_numbers = #tpu.dot_dimension_numbers<[1], [0], [0], [1], [0, 0, 1, 1], [], []>} : vector<128x128xbf16>, vector<128x256xbf16>, vector<128x256xf32> -> vector<128x256xf32>
      %42 = vector.extract_strided_slice %41 {offsets = [0, 0], sizes = [128, 128], strides = [1, 1]} : vector<128x256xf32> to vector<128x128xf32>
      %c0_26 = arith.constant 0 : index
      %c0_27 = arith.constant 0 : index
      %43 = vector.load %arg8[%c0_26, %c0_27] : memref<128x128xf32, #tpu.memory_space<vmem>>, vector<128x128xf32>
      tpu.vector_store %arg8[%c0_26, %c0_27], %42 {strides = array<i32>} : memref<128x128xf32, #tpu.memory_space<vmem>>, vector<128x128xf32>,
      %44 = vector.extract_strided_slice %41 {offsets = [0, 128], sizes = [128, 128], strides = [1, 1]} : vector<128x256xf32> to vector<128x128xf32>
      %45 = arith.truncf %44 : vector<128x128xf32> to vector<128x128xbf16>
      %c0_28 = arith.constant 0 : index
      %c0_29 = arith.constant 0 : index
      %46 = vector.load %arg9[%c0_28, %c0_29] : memref<128x128xbf16, #tpu.memory_space<vmem>>, vector<128x128xbf16>
      tpu.vector_store %arg9[%c0_28, %c0_29], %45 {strides = array<i32>} : memref<128x128xbf16, #tpu.memory_space<vmem>>, vector<128x128xbf16>,
    } else {
    }
    return
  }
  func.func @transform_0(%arg0: i32, %arg1: i32) -> (i32, i32) {
    %c0_i32 = arith.constant 0 : i32
    return %arg0, %arg1 : i32, i32
  }
  func.func @transform_1(%arg0: i32, %arg1: i32) -> (i32, i32) {
    %c0_i32 = arith.constant 0 : i32
    %c0_i32_0 = arith.constant 0 : i32
    %c0_i32_1 = arith.constant 0 : i32
    return %c0_i32, %c0_i32_0 : i32, i32
  }
  func.func @transform_2(%arg0: i32, %arg1: i32) -> (i32, i32) {
    %c0_i32 = arith.constant 0 : i32
    %c0_i32_0 = arith.constant 0 : i32
    return %arg0, %c0_i32 : i32, i32
  }
  func.func @transform_3(%arg0: i32, %arg1: i32) -> (i32, i32) {
    %c0_i32 = arith.constant 0 : i32
    %c0_i32_0 = arith.constant 0 : i32
    %c0_i32_1 = arith.constant 0 : i32
    return %c0_i32, %c0_i32_0 : i32, i32
  }
  func.func @transform_4(%arg0: i32, %arg1: i32) -> (i32, i32) {
    %c0_i32 = arith.constant 0 : i32
    %c0_i32_0 = arith.constant 0 : i32
    %c0_i32_1 = arith.constant 0 : i32
    return %c0_i32, %c0_i32_0 : i32, i32
  }
  func.func @transform_5(%arg0: i32, %arg1: i32) -> (i32, i32) {
    %c0_i32 = arith.constant 0 : i32
    %c0_i32_0 = arith.constant 0 : i32
    %c0_i32_1 = arith.constant 0 : i32
    return %c0_i32, %c0_i32_0 : i32, i32
  }
  func.func @transform_6(%arg0: i32, %arg1: i32) -> (i32, i32) {
    %c0_i32 = arith.constant 0 : i32
    %c0_i32_0 = arith.constant 0 : i32
    return %arg0, %c0_i32 : i32, i32
  }
  func.func @transform_7(%arg0: i32, %arg1: i32) -> (i32, i32) {
    %c0_i32 = arith.constant 0 : i32
    %c0_i32_0 = arith.constant 0 : i32
    return %arg0, %c0_i32 : i32, i32
  }
}

module attributes {stable_mosaic.version = 11 : i64} {
  func.func @_sage_layer2_kernel(%arg0: i32, %arg1: i32, %arg2: memref<128x128xbf16, #tpu.memory_space<vmem>>, %arg3: memref<256x128xbf16, #tpu.memory_space<vmem>>, %arg4: memref<128x1xf32, #tpu.memory_space<vmem>>, %arg5: memref<128x128xf32, #tpu.memory_space<vmem>>, %arg6: memref<128x128xf32, #tpu.memory_space<vmem>>, %arg7: memref<128x128xf32, #tpu.memory_space<vmem>>) attributes {dimension_semantics = [#tpu.dimension_semantics<parallel>, #tpu.dimension_semantics<arbitrary>], iteration_bounds = array<i64: 2, 2>, scalar_prefetch = 0 : i64, scratch_operands = 1 : i64, tpu.core_type = #tpu.core_type<tc>, window_params = [{transform_indices = @transform_0, window_bounds = array<i64: 128, 128>}, {pipeline_mode = #tpu.pipeline_mode<synchronous>, transform_indices = @transform_1, window_bounds = array<i64: 256, 128>}, {transform_indices = @transform_2, window_bounds = array<i64: 128, 1>}, {transform_indices = @transform_3, window_bounds = array<i64: 128, 128>}, {transform_indices = @transform_4, window_bounds = array<i64: 128, 128>}]} {
    %c0_i32 = arith.constant 0 : i32
    %0 = arith.cmpi eq, %arg1, %c0_i32 : i32
    %1 = arith.extui %0 : i1 to i32
    %c0_i32_0 = arith.constant 0 : i32
    %2 = arith.cmpi ne, %1, %c0_i32_0 : i32
    scf.if %2 {
      %cst_8 = arith.constant 0.000000e+00 : f32
      %15 = vector.broadcast %cst_8 : f32 to vector<128x128xf32>
      %c0_9 = arith.constant 0 : index
      %c0_10 = arith.constant 0 : index
      %16 = vector.load %arg7[%c0_9, %c0_10] : memref<128x128xf32, #tpu.memory_space<vmem>>, vector<128x128xf32>
      tpu.vector_store %arg7[%c0_9, %c0_10], %15 {strides = array<i32>} : memref<128x128xf32, #tpu.memory_space<vmem>>, vector<128x128xf32>,
    } else {
    }
    %c128_i32 = arith.constant 128 : i32
    %3 = arith.muli %arg1, %c128_i32 : i32
    %4 = tpu.assume_multiple %3, 128 : i32
    %c0 = arith.constant 0 : index
    %c0_1 = arith.constant 0 : index
    %5 = vector.load %arg7[%c0, %c0_1] : memref<128x128xf32, #tpu.memory_space<vmem>>, vector<128x128xf32>
    %c0_2 = arith.constant 0 : index
    %c0_3 = arith.constant 0 : index
    %6 = vector.load %arg2[%c0_2, %c0_3] : memref<128x128xbf16, #tpu.memory_space<vmem>>, vector<128x128xbf16>
    %7 = arith.index_cast %4 : i32 to index
    %c0_4 = arith.constant 0 : index
    %8 = vector.load %arg3[%7, %c0_4] : memref<256x128xbf16, #tpu.memory_space<vmem>>, vector<128x128xbf16>
    %cst = arith.constant dense<0.000000e+00> : vector<128x128xf32>
    %9 = tpu.matmul %6, %8, %cst {dimension_numbers = #tpu.dot_dimension_numbers<[1], [0], [0], [1], [0, 0, 1, 1], [], []>} : vector<128x128xbf16>, vector<128x128xbf16>, vector<128x128xf32> -> vector<128x128xf32>
    %10 = arith.addf %5, %9 : vector<128x128xf32>
    %c0_5 = arith.constant 0 : index
    %c0_6 = arith.constant 0 : index
    %11 = vector.load %arg7[%c0_5, %c0_6] : memref<128x128xf32, #tpu.memory_space<vmem>>, vector<128x128xf32>
    tpu.vector_store %arg7[%c0_5, %c0_6], %10 {strides = array<i32>} : memref<128x128xf32, #tpu.memory_space<vmem>>, vector<128x128xf32>,
    %c1_i32 = arith.constant 1 : i32
    %12 = arith.cmpi eq, %arg1, %c1_i32 : i32
    %13 = arith.extui %12 : i1 to i32
    %c0_i32_7 = arith.constant 0 : i32
    %14 = arith.cmpi ne, %13, %c0_i32_7 : i32
    scf.if %14 {
      %c0_8 = arith.constant 0 : index
      %c0_9 = arith.constant 0 : index
      %15 = vector.load %arg7[%c0_8, %c0_9] : memref<128x128xf32, #tpu.memory_space<vmem>>, vector<128x128xf32>
      %c0_10 = arith.constant 0 : index
      %c0_11 = arith.constant 0 : index
      %16 = vector.load %arg4[%c0_10, %c0_11] : memref<128x1xf32, #tpu.memory_space<vmem>>, vector<128x1xf32>
      %17 = vector.broadcast %16 : vector<128x1xf32> to vector<128x128xf32>
      %18 = arith.mulf %15, %17 : vector<128x128xf32>
      %c0_12 = arith.constant 0 : index
      %c0_13 = arith.constant 0 : index
      %19 = vector.load %arg5[%c0_12, %c0_13] : memref<128x128xf32, #tpu.memory_space<vmem>>, vector<128x128xf32>
      %20 = arith.addf %18, %19 : vector<128x128xf32>
      %21 = arith.mulf %20, %20 : vector<128x128xf32>
      %cst_14 = arith.constant dense<0.000000e+00> : vector<128xf32>
      %22 = vector.multi_reduction <add>, %21, %cst_14 [1] : vector<128x128xf32> to vector<128xf32>
      %23 = vector.shape_cast %22 : vector<128xf32> to vector<128x1xf32>
      %cst_15 = arith.constant 1.000000e-24 : f32
      %24 = vector.broadcast %cst_15 : f32 to vector<128x1xf32>
      %25 = arith.maximumf %23, %24 : vector<128x1xf32>
      %26 = math.rsqrt %25 : vector<128x1xf32>
      %27 = vector.broadcast %26 : vector<128x1xf32> to vector<128x128xf32>
      %28 = arith.mulf %20, %27 : vector<128x128xf32>
      %29 = tpu.iota {dimensions = array<i32: 1>} : vector<128x128xi32>
      %c8_i32 = arith.constant 8 : i32
      %30 = vector.broadcast %c8_i32 : i32 to vector<128x128xi32>
      %31 = arith.cmpi slt, %29, %30 : vector<128x128xi32>
      %cst_16 = arith.constant -1.000000e+30 : f32
      %32 = vector.broadcast %cst_16 : f32 to vector<128x128xf32>
      %33 = arith.select %31, %28, %32 : vector<128x128xi1>, vector<128x128xf32>
      %cst_17 = arith.constant dense<0xFF800000> : vector<128xf32>
      %34 = vector.multi_reduction <maximumf>, %33, %cst_17 [1] : vector<128x128xf32> to vector<128xf32>
      %35 = vector.shape_cast %34 : vector<128xf32> to vector<128x1xf32>
      %36 = vector.broadcast %35 : vector<128x1xf32> to vector<128x128xf32>
      %37 = arith.subf %33, %36 : vector<128x128xf32>
      %38 = math.exp %37 : vector<128x128xf32>
      %cst_18 = arith.constant dense<0.000000e+00> : vector<128xf32>
      %39 = vector.multi_reduction <add>, %38, %cst_18 [1] : vector<128x128xf32> to vector<128xf32>
      %40 = vector.shape_cast %39 : vector<128xf32> to vector<128x1xf32>
      %41 = math.log %40 : vector<128x1xf32>
      %42 = vector.broadcast %41 : vector<128x1xf32> to vector<128x128xf32>
      %43 = arith.subf %37, %42 : vector<128x128xf32>
      %cst_19 = arith.constant 0.000000e+00 : f32
      %44 = vector.broadcast %cst_19 : f32 to vector<128x128xf32>
      %45 = arith.select %31, %43, %44 : vector<128x128xi1>, vector<128x128xf32>
      %c0_20 = arith.constant 0 : index
      %c0_21 = arith.constant 0 : index
      %46 = vector.load %arg6[%c0_20, %c0_21] : memref<128x128xf32, #tpu.memory_space<vmem>>, vector<128x128xf32>
      tpu.vector_store %arg6[%c0_20, %c0_21], %45 {strides = array<i32>} : memref<128x128xf32, #tpu.memory_space<vmem>>, vector<128x128xf32>,
    } else {
    }
    return
  }
  func.func @transform_0(%arg0: i32, %arg1: i32) -> (i32, i32) {
    %c0_i32 = arith.constant 0 : i32
    return %arg0, %arg1 : i32, i32
  }
  func.func @transform_1(%arg0: i32, %arg1: i32) -> (i32, i32) {
    %c0_i32 = arith.constant 0 : i32
    %c0_i32_0 = arith.constant 0 : i32
    %c0_i32_1 = arith.constant 0 : i32
    return %c0_i32, %c0_i32_0 : i32, i32
  }
  func.func @transform_2(%arg0: i32, %arg1: i32) -> (i32, i32) {
    %c0_i32 = arith.constant 0 : i32
    %c0_i32_0 = arith.constant 0 : i32
    return %arg0, %c0_i32 : i32, i32
  }
  func.func @transform_3(%arg0: i32, %arg1: i32) -> (i32, i32) {
    %c0_i32 = arith.constant 0 : i32
    %c0_i32_0 = arith.constant 0 : i32
    return %arg0, %c0_i32 : i32, i32
  }
  func.func @transform_4(%arg0: i32, %arg1: i32) -> (i32, i32) {
    %c0_i32 = arith.constant 0 : i32
    %c0_i32_0 = arith.constant 0 : i32
    return %arg0, %c0_i32 : i32, i32
  }
}

</mosaic_0001>

<llo_original>
// kernel: graphsage_forward.3
$region0: #{graphsage_forward.3}
  #allocation0 [shape = 'u32[]', space=smem, size = 0x4, offset = 0x4, fixed_abs, tag = 'smem constant byte address 0x4 - core index']
  #allocation1 [shape = 'u32[144,128]{1,0:T(1,128)}', space=vmem, size = 0x12000, scoped, tag = 'internal scratch']
  #allocation2 [shape = 'f32[128,128]{1,0:T(8,128)}', space=vmem, size = 0x10000, scoped, tag = 'scratch operand']
  %s0 = inlined_call_operand.vmem [shape: bf16[256,256], index: 0, kind: input, shape index: {}]
  %s1 = inlined_call_operand.vmem [shape: bf16[256,128], index: 1, kind: input, shape index: {}]
  %s2 = inlined_call_operand.vmem [shape: f32[256,1], index: 2, kind: input, shape index: {}]
  %s3 = inlined_call_operand.vmem [shape: f32[256,128], index: 3, kind: input, shape index: {}]
  %s4 = inlined_call_operand.vmem [shape: f32[256,128], index: 4, kind: output, shape index: {}]
  %s5 = sld [smem:[#allocation0]]
  $region98: #{graphsage_forward.3} parent=0
    _
  %s7 = ssub.s32 1, %s5
  %s8 = scalar_select 0, %s7, %s5
  $region1: #{graphsage_forward.3} parent=0
    #allocation3 [shape = 'u8[65536]{0}', space=vmem, size = 0x10000, scoped, tag = 'input window, operand 0']
    loop: start=0, step=1, limit=6
    $region2: #{graphsage_forward.3} parent=1 // loop_pre_header
      _
    $region3: #{graphsage_forward.3} parent=1 // loop_header
      %s10 = sphi 0, %s14
      %p11 = scmp.ge.s32.totalorder %s10, 6
      %s17 = sphi 0, %s29
      %s18 = sphi 0, %s25
      %s19 = sphi 0, %s17
      %s20 = sphi 0, %s18
      %s21 = sphi 0, %s19
      %s22 = sphi 0, %s20
      %s34 = sphi 0, %s36
      %s37 = sphi 0, %s34
      %s38 = sphi 0, %s37
      %s54 = sphi 0, %s38
      %s58 = sphi 0, %s58
      %s60 = sphi 0, %s58
      %s61 = sphi 0, %s60
      %s75 = sphi 0, %s61
      %s81 = sphi 0, %s83
      %s84 = sphi 0, %s81
      %s85 = sphi 0, %s84
      %s101 = sphi 0, %s85
      %s107 = sphi 0, %s109
      %s110 = sphi 0, %s107
      %s111 = sphi 0, %s110
      %s127 = sphi 0, %s111
      %s133 = sphi 0, %s135
      %s136 = sphi 0, %s133
      %s137 = sphi 0, %s136
      %s153 = sphi 0, %s137
    $region4: #{graphsage_forward.3} parent=1 // loop_header_branch
      %13 = sbr.rel (%p11) target = $region8
    $region5: #{graphsage_forward.3} parent=1 // loop_body
      %s15 = ssub.s32 %s10, 1
      %s16 = ssub.s32 %s10, 2
      %s23 = sadd.s32 1, %s18
      %p24 = scmp.ge.s32.totalorder %s23, 2
      %s25 = scalar_select %p24, 0, %s23
      %s26 = sadd.s32 1, %s17
      %s27 = scalar_select %p24, %s26, %s17
      %p28 = scmp.ge.s32.totalorder %s27, 2
      %s29 = scalar_select %p28, 0, %s27
      %s30 = ssub.s32 %s17, %s29
      %s31 = ssub.s32 %s18, %s25
      %s32 = sor.u32 %s30, %s31
      %p33 = scmp.eq.s32.totalorder %s32, 0
      %s35 = sadd.s32 %s34, 1
      %s36 = scalar_select %p33, %s34, %s35
      %p39 = pneg %p33
      %p40 = scmp.eq.s32.totalorder %s10, 3
      %p41 = por %p39, %p40
      %p42 = scmp.ne.s32.totalorder %s34, %s37
      %p43 = scmp.eq.s32.totalorder %s10, 0
      %p44 = por %p42, %p43
      %p45 = scmp.ne.s32.totalorder %s34, %s37
      %p46 = scmp.eq.s32.totalorder %s15, 3
      %p47 = por %p45, %p46
      %p48 = scmp.ne.s32.totalorder %s37, %s38
      %p49 = scmp.eq.s32.totalorder %s15, 0
      %p50 = por %p48, %p49
      %p51 = scmp.ne.s32.totalorder %s37, %s38
      %p52 = scmp.eq.s32.totalorder %s16, 3
      %p53 = por %p51, %p52
      %p55 = scmp.ne.s32.totalorder %s38, %s54
      %p56 = scmp.eq.s32.totalorder %s16, 0
      %p57 = por %p55, %p56
      %s59 = sadd.s32 %s58, 1
      %p62 = scmp.eq.s32.totalorder %s10, 3
      %p63 = scmp.ne.s32.totalorder %s58, %s60
      %p64 = scmp.eq.s32.totalorder %s10, 0
      %p65 = por %p63, %p64
      %p66 = scmp.ne.s32.totalorder %s58, %s60
      %p67 = scmp.eq.s32.totalorder %s15, 3
      %p68 = por %p66, %p67
      %p69 = scmp.ne.s32.totalorder %s60, %s61
      %p70 = scmp.eq.s32.totalorder %s15, 0
      %p71 = por %p69, %p70
      %p72 = scmp.ne.s32.totalorder %s60, %s61
      %p73 = scmp.eq.s32.totalorder %s16, 3
      %p74 = por %p72, %p73
      %p76 = scmp.ne.s32.totalorder %s61, %s75
      %p77 = scmp.eq.s32.totalorder %s16, 0
      %p78 = por %p76, %p77
      %s79 = ssub.s32 %s17, %s29
      %p80 = scmp.eq.s32.totalorder %s79, 0
      %s82 = sadd.s32 %s81, 1
      %s83 = scalar_select %p80, %s81, %s82
      %p86 = pneg %p80
      %p87 = scmp.eq.s32.totalorder %s10, 3
      %p88 = por %p86, %p87
      %p89 = scmp.ne.s32.totalorder %s81, %s84
      %p90 = scmp.eq.s32.totalorder %s10, 0
      %p91 = por %p89, %p90
      %p92 = scmp.ne.s32.totalorder %s81, %s84
      %p93 = scmp.eq.s32.totalorder %s15, 3
      %p94 = por %p92, %p93
      %p95 = scmp.ne.s32.totalorder %s84, %s85
      %p96 = scmp.eq.s32.totalorder %s15, 0
      %p97 = por %p95, %p96
      %p98 = scmp.ne.s32.totalorder %s84, %s85
      %p99 = scmp.eq.s32.totalorder %s16, 3
      %p100 = por %p98, %p99
      %p102 = scmp.ne.s32.totalorder %s85, %s101
      %p103 = scmp.eq.s32.totalorder %s16, 0
      %p104 = por %p102, %p103
      %s105 = ssub.s32 %s17, %s29
      %p106 = scmp.eq.s32.totalorder %s105, 0
      %s108 = sadd.s32 %s107, 1
      %s109 = scalar_select %p106, %s107, %s108
      %p112 = pneg %p106
      %p113 = scmp.eq.s32.totalorder %s10, 3
      %p114 = por %p112, %p113
      %p115 = scmp.ne.s32.totalorder %s107, %s110
      %p116 = scmp.eq.s32.totalorder %s10, 0
      %p117 = por %p115, %p116
      %p118 = scmp.ne.s32.totalorder %s107, %s110
      %p119 = scmp.eq.s32.totalorder %s15, 3
      %p120 = por %p118, %p119
      %p121 = scmp.ne.s32.totalorder %s110, %s111
      %p122 = scmp.eq.s32.totalorder %s15, 0
      %p123 = por %p121, %p122
      %p124 = scmp.ne.s32.totalorder %s110, %s111
      %p125 = scmp.eq.s32.totalorder %s16, 3
      %p126 = por %p124, %p125
      %p128 = scmp.ne.s32.totalorder %s111, %s127
      %p129 = scmp.eq.s32.totalorder %s16, 0
      %p130 = por %p128, %p129
      %s131 = ssub.s32 %s17, %s29
      %p132 = scmp.eq.s32.totalorder %s131, 0
      %s134 = sadd.s32 %s133, 1
      %s135 = scalar_select %p132, %s133, %s134
      %p138 = pneg %p132
      %p139 = scmp.eq.s32.totalorder %s10, 3
      %p140 = por %p138, %p139
      %p141 = scmp.ne.s32.totalorder %s133, %s136
      %p142 = scmp.eq.s32.totalorder %s10, 0
      %p143 = por %p141, %p142
      %p144 = scmp.ne.s32.totalorder %s133, %s136
      %p145 = scmp.eq.s32.totalorder %s15, 3
      %p146 = por %p144, %p145
      %p147 = scmp.ne.s32.totalorder %s136, %s137
      %p148 = scmp.eq.s32.totalorder %s15, 0
      %p149 = por %p147, %p148
      %p150 = scmp.ne.s32.totalorder %s136, %s137
      %p151 = scmp.eq.s32.totalorder %s16, 3
      %p152 = por %p150, %p151
      %p154 = scmp.ne.s32.totalorder %s137, %s153
      %p155 = scmp.eq.s32.totalorder %s16, 0
      %p156 = por %p154, %p155
      %p157 = scmp.le.s32.totalorder 1, %s10
      %p158 = scmp.lt.s32.totalorder %s10, 5
      %p159 = pnand %p157, %p158
      %p160 = pneg %p159
      // Predicated region
      $region9: #{graphsage_forward.3} parent=5 // pred_check
        _
      $region10: #{graphsage_forward.3} parent=5 // pred_check_branch
        %162 = sbr.rel (%p159) target = $region12
      $region11: #{graphsage_forward.3} parent=5 // pred_region
        %s163 = ssub.s32 %s10, 1
        // Predicated region
        $region13: #{graphsage_forward.3} parent=11 // pred_check
          %p164 = pneg %p71
        $region14: #{graphsage_forward.3} parent=11 // pred_check_branch
          %166 = sbr.rel (%p164) target = $region16
        $region15: #{graphsage_forward.3} parent=11 // pred_region
          _
        $region16: #{graphsage_forward.3} parent=11 // pred_fallthru
          _
      $region12: #{graphsage_forward.3} parent=5 // pred_fallthru
        _
      %p167 = scmp.lt.s32.totalorder %s10, 4
      // Predicated region
      $region17: #{graphsage_forward.3} parent=5 // pred_check
        %p168 = pneg %p167
      $region18: #{graphsage_forward.3} parent=5 // pred_check_branch
        %170 = sbr.rel (%p168) target = $region20
      $region19: #{graphsage_forward.3} parent=5 // pred_region
        // Predicated region
        $region21: #{graphsage_forward.3} parent=19 // pred_check
          %p171 = pneg %p44
        $region22: #{graphsage_forward.3} parent=19 // pred_check_branch
          %173 = sbr.rel (%p171) target = $region24
        $region23: #{graphsage_forward.3} parent=19 // pred_region
          %s174 = sand.u32 %s34, 1
          %s175 = sand.u32 %s34, 1
          %s176 = smul.addr %s175, 64
          %s177 = scalar_lea.vmem [#allocation3], %s176
          %s178 = smul.u32 16, %s17
          %s179 = smul.addr %s178, 2
          %s180 = sadd.s32 %s18, %s179
          %s181 = smul.addr %s180, 4
          %s182 = scalar_lea.vmem %s0, %s181
          // Predicated region
          $region25: #{graphsage_forward.3} parent=23 // pred_check
            _
          $region26: #{graphsage_forward.3} parent=23 // pred_check_branch
            %184 = sbr.rel (0) target = $region28
          $region27: #{graphsage_forward.3} parent=23 // pred_region
            // Predicated region
            $region29: #{graphsage_forward.3} parent=27 // pred_check
              _
            $region30: #{graphsage_forward.3} parent=27 // pred_check_branch
              %186 = sbr.rel target = $region32
            $region31: #{graphsage_forward.3} parent=27 // pred_region
              // Predicated region
              $region44: #{graphsage_forward.3} parent=31 // pred_check
                _
              $region45: #{graphsage_forward.3} parent=31 // pred_check_branch
                %232 = sbr.rel (0) target = $region47
              $region46: #{graphsage_forward.3} parent=31 // pred_region
                loop: start=0, step=1, limit=1
                $region48: #{graphsage_forward.3} parent=46 // loop_pre_header
                  _
                $region49: #{graphsage_forward.3} parent=46 // loop_header
                  %s234 = sphi 0, %s238
                  %p235 = scmp.ge.s32.totalorder %s234, 1
                  %s239 = sphi %s182, %s182
                  %s240 = sphi %s177, %s177
                $region50: #{graphsage_forward.3} parent=46 // loop_header_branch
                  %237 = sbr.rel (%p235) target = $region54
                $region51: #{graphsage_forward.3} parent=46 // loop_body
                  _
                $region52: #{graphsage_forward.3} parent=46 // loop_footer
                  %s238 = sadd.s32 1, %s234
                $region53: #{graphsage_forward.3} parent=46 // loop_footer_branch
                  %233 = sbr.rel target = $region49
                $region54: #{graphsage_forward.3} parent=46 // loop_exit
                  _
                %s242 = ssub.s32 16, 1
                loop: start=0, step=1, limit=1
                $region55: #{graphsage_forward.3} parent=46 // loop_pre_header
                  _
                $region56: #{graphsage_forward.3} parent=46 // loop_header
                  %s244 = sphi 0, %s248
                  %p245 = scmp.ge.s32.totalorder %s244, 1
                  %s249 = sphi %s182, %s182
                  %s250 = sphi %s177, %s177
                $region57: #{graphsage_forward.3} parent=46 // loop_header_branch
                  %247 = sbr.rel (%p245) target = $region61
                $region58: #{graphsage_forward.3} parent=46 // loop_body
                  %v251 = vld [vmem:[%s249] sm:%s242]
                  %252 = vst [vmem:[%s250] sm:%s242] %v251
                  %v253 = vld [vmem:[%s249 + $0x8] sm:%s242]
                  %254 = vst [vmem:[%s250 + $0x4] sm:%s242] %v253
                  %v255 = vld [vmem:[%s249 + $0x10] sm:%s242]
                  %256 = vst [vmem:[%s250 + $0x8] sm:%s242] %v255
                  %v257 = vld [vmem:[%s249 + $0x18] sm:%s242]
                  %258 = vst [vmem:[%s250 + $0xc] sm:%s242] %v257
                  %v259 = vld [vmem:[%s249 + $0x20] sm:%s242]
                  %260 = vst [vmem:[%s250 + $0x10] sm:%s242] %v259
                  %v261 = vld [vmem:[%s249 + $0x28] sm:%s242]
                  %262 = vst [vmem:[%s250 + $0x14] sm:%s242] %v261
                  %v263 = vld [vmem:[%s249 + $0x30] sm:%s242]
                  %264 = vst [vmem:[%s250 + $0x18] sm:%s242] %v263
                  %v265 = vld [vmem:[%s249 + $0x38] sm:%s242]
                  %266 = vst [vmem:[%s250 + $0x1c] sm:%s242] %v265
                  %v267 = vld [vmem:[%s249 + $0x40] sm:%s242]
                  %268 = vst [vmem:[%s250 + $0x20] sm:%s242] %v267
                  %v269 = vld [vmem:[%s249 + $0x48] sm:%s242]
                  %270 = vst [vmem:[%s250 + $0x24] sm:%s242] %v269
                  %v271 = vld [vmem:[%s249 + $0x50] sm:%s242]
                  %272 = vst [vmem:[%s250 + $0x28] sm:%s242] %v271
                  %v273 = vld [vmem:[%s249 + $0x58] sm:%s242]
                  %274 = vst [vmem:[%s250 + $0x2c] sm:%s242] %v273
                  %v275 = vld [vmem:[%s249 + $0x60] sm:%s242]
                  %276 = vst [vmem:[%s250 + $0x30] sm:%s242] %v275
                  %v277 = vld [vmem:[%s249 + $0x68] sm:%s242]
                  %278 = vst [vmem:[%s250 + $0x34] sm:%s242] %v277
                  %v279 = vld [vmem:[%s249 + $0x70] sm:%s242]
                  %280 = vst [vmem:[%s250 + $0x38] sm:%s242] %v279
                  %v281 = vld [vmem:[%s249 + $0x78] sm:%s242]
                  %282 = vst [vmem:[%s250 + $0x3c] sm:%s242] %v281
                $region59: #{graphsage_forward.3} parent=46 // loop_footer
                  %s248 = sadd.s32 1, %s244
                $region60: #{graphsage_forward.3} parent=46 // loop_footer_branch
                  %243 = sbr.rel target = $region56
                $region61: #{graphsage_forward.3} parent=46 // loop_exit
                  _
              $region47: #{graphsage_forward.3} parent=31 // pred_fallthru
                _
            $region32: #{graphsage_forward.3} parent=27 // pred_fallthru
              _
            // Predicated region
            $region33: #{graphsage_forward.3} parent=27 // pred_check
              _
            $region34: #{graphsage_forward.3} parent=27 // pred_check_branch
              %188 = sbr.rel (0) target = $region36
            $region35: #{graphsage_forward.3} parent=27 // pred_region
              %s190 = ssub.s32 16, 1
              loop: start=0, step=1, limit=1
              $region37: #{graphsage_forward.3} parent=35 // loop_pre_header
                _
              $region38: #{graphsage_forward.3} parent=35 // loop_header
                %s192 = sphi 0, %s196
                %p193 = scmp.ge.s32.totalorder %s192, 1
                %s197 = sphi %s182, %s182
                %s198 = sphi %s177, %s177
              $region39: #{graphsage_forward.3} parent=35 // loop_header_branch
                %195 = sbr.rel (%p193) target = $region43
              $region40: #{graphsage_forward.3} parent=35 // loop_body
                %v199 = vld [vmem:[%s197] sm:%s190]
                %200 = vst [vmem:[%s198] sm:%s190] %v199
                %v201 = vld [vmem:[%s197 + $0x8] sm:%s190]
                %202 = vst [vmem:[%s198 + $0x4] sm:%s190] %v201
                %v203 = vld [vmem:[%s197 + $0x10] sm:%s190]
                %204 = vst [vmem:[%s198 + $0x8] sm:%s190] %v203
                %v205 = vld [vmem:[%s197 + $0x18] sm:%s190]
                %206 = vst [vmem:[%s198 + $0xc] sm:%s190] %v205
                %v207 = vld [vmem:[%s197 + $0x20] sm:%s190]
                %208 = vst [vmem:[%s198 + $0x10] sm:%s190] %v207
                %v209 = vld [vmem:[%s197 + $0x28] sm:%s190]
                %210 = vst [vmem:[%s198 + $0x14] sm:%s190] %v209
                %v211 = vld [vmem:[%s197 + $0x30] sm:%s190]
                %212 = vst [vmem:[%s198 + $0x18] sm:%s190] %v211
                %v213 = vld [vmem:[%s197 + $0x38] sm:%s190]
                %214 = vst [vmem:[%s198 + $0x1c] sm:%s190] %v213
                %v215 = vld [vmem:[%s197 + $0x40] sm:%s190]
                %216 = vst [vmem:[%s198 + $0x20] sm:%s190] %v215
                %v217 = vld [vmem:[%s197 + $0x48] sm:%s190]
                %218 = vst [vmem:[%s198 + $0x24] sm:%s190] %v217
                %v219 = vld [vmem:[%s197 + $0x50] sm:%s190]
                %220 = vst [vmem:[%s198 + $0x28] sm:%s190] %v219
                %v221 = vld [vmem:[%s197 + $0x58] sm:%s190]
                %222 = vst [vmem:[%s198 + $0x2c] sm:%s190] %v221
                %v223 = vld [vmem:[%s197 + $0x60] sm:%s190]
                %224 = vst [vmem:[%s198 + $0x30] sm:%s190] %v223
                %v225 = vld [vmem:[%s197 + $0x68] sm:%s190]
                %226 = vst [vmem:[%s198 + $0x34] sm:%s190] %v225
                %v227 = vld [vmem:[%s197 + $0x70] sm:%s190]
                %228 = vst [vmem:[%s198 + $0x38] sm:%s190] %v227
                %v229 = vld [vmem:[%s197 + $0x78] sm:%s190]
                %230 = vst [vmem:[%s198 + $0x3c] sm:%s190] %v229
              $region41: #{graphsage_forward.3} parent=35 // loop_footer
                %s196 = sadd.s32 1, %s192
              $region42: #{graphsage_forward.3} parent=35 // loop_footer_branch
                %191 = sbr.rel target = $region38
              $region43: #{graphsage_forward.3} parent=35 // loop_exit
                _
            $region36: #{graphsage_forward.3} parent=27 // pred_fallthru
              _
          $region28: #{graphsage_forward.3} parent=23 // pred_fallthru
            _
          %283 = vnop
        $region24: #{graphsage_forward.3} parent=19 // pred_fallthru
          _
        // Predicated region
        $region62: #{graphsage_forward.3} parent=19 // pred_check
          %p284 = pneg %p91
        $region63: #{graphsage_forward.3} parent=19 // pred_check_branch
          %286 = sbr.rel (%p284) target = $region65
        $region64: #{graphsage_forward.3} parent=19 // pred_region
          %s287 = smul.u32 16, %s17
          %p288 = scmp.lt.s32.totalorder %s287, 31
          %s289 = scalar_select %p288, %s287, 31
          %s290 = smul.addr %s289, 8
          %s291 = scalar_lea.vmem %s2, %s290
          %s292 = smul.u32 16, %s17
        $region65: #{graphsage_forward.3} parent=19 // pred_fallthru
          _
        // Predicated region
        $region66: #{graphsage_forward.3} parent=19 // pred_check
          %p293 = pneg %p117
        $region67: #{graphsage_forward.3} parent=19 // pred_check_branch
          %295 = sbr.rel (%p293) target = $region69
        $region68: #{graphsage_forward.3} parent=19 // pred_region
          %s296 = smul.u32 16, %s17
          %p297 = scmp.lt.s32.totalorder %s296, 31
          %s298 = scalar_select %p297, %s296, 31
          %s299 = smul.addr %s298, 8
          %s300 = scalar_lea.vmem %s3, %s299
          %s301 = smul.u32 16, %s17
        $region69: #{graphsage_forward.3} parent=19 // pred_fallthru
          _
      $region20: #{graphsage_forward.3} parent=5 // pred_fallthru
        _
      %p302 = scmp.le.s32.totalorder 1, %s10
      %p303 = scmp.lt.s32.totalorder %s10, 5
      %p304 = pnand %p302, %p303
      %p305 = pneg %p304
      // Predicated region
      $region70: #{graphsage_forward.3} parent=5 // pred_check
        _
      $region71: #{graphsage_forward.3} parent=5 // pred_check_branch
        %307 = sbr.rel (%p304) target = $region73
      $region72: #{graphsage_forward.3} parent=5 // pred_region
        %s308 = ssub.s32 %s10, 1
        %s309 = sand.u32 %s37, 1
        %s310 = sand.u32 %s37, 1
        %s311 = smul.addr %s310, 64
        %s312 = scalar_lea.vmem [#allocation3], %s311
        // Predicated region
        $region74: #{graphsage_forward.3} parent=72 // pred_check
          %p313 = pneg %p50
        $region75: #{graphsage_forward.3} parent=72 // pred_check_branch
          %315 = sbr.rel (%p313) target = $region77
        $region76: #{graphsage_forward.3} parent=72 // pred_region
          _
        $region77: #{graphsage_forward.3} parent=72 // pred_fallthru
          _
        %s316 = sand.u32 %s37, 1
        %s317 = sand.u32 %s37, 1
        %s318 = smul.addr %s317, 64
        %s319 = scalar_lea.vmem [#allocation3], %s318
        %p320 = pneg %p50
        %p321 = pneg %p47
        %p322 = pneg %p71
        %p323 = pneg %p68
        %s324 = smul.u32 16, %s19
        %p325 = scmp.lt.s32.totalorder %s324, 31
        %s326 = scalar_select %p325, %s324, 31
        %s327 = smul.addr %s326, 8
        %s328 = scalar_lea.vmem %s2, %s327
        %p329 = pneg %p97
        %p330 = pneg %p94
        %s331 = smul.u32 16, %s19
        %p332 = scmp.lt.s32.totalorder %s331, 31
        %s333 = scalar_select %p332, %s331, 31
        %s334 = smul.addr %s333, 8
        %s335 = scalar_lea.vmem %s3, %s334
        %p336 = pneg %p123
        %p337 = pneg %p120
        %p338 = pneg %p149
        %p339 = pneg %p146
        %s340 = smul.u32 16, %s19
        %p341 = scmp.lt.s32.totalorder %s340, 31
        %s342 = scalar_select %p341, %s340, 31
        %s343 = smul.addr %s342, 8
        %s344 = scalar_lea.vmem %s4, %s343
        %s345 = smul.u32 16, %s19
        %s346 = smul.u32 16, %s19
        %p347 = scmp.lt.s32.totalorder %s346, 31
        %s348 = scalar_select %p347, %s346, 31
        %s349 = smul.addr %s348, 8
        %s350 = scalar_lea.vmem %s2, %s349
        %s351 = smul.u32 16, %s19
        %s352 = smul.u32 16, %s19
        %p353 = scmp.lt.s32.totalorder %s352, 31
        %s354 = scalar_select %p353, %s352, 31
        %s355 = smul.addr %s354, 8
        %s356 = scalar_lea.vmem %s3, %s355
        %s357 = smul.u32 16, %s19
        %s358 = smul.u32 16, %s19
        %p359 = scmp.lt.s32.totalorder %s358, 31
        %s360 = scalar_select %p359, %s358, 31
        %s361 = smul.addr %s360, 8
        %s362 = scalar_lea.vmem %s4, %s361
        %s363 = smul.u32 16, %s19
        %p365 = scmp.eq.s32.totalorder %s20, 0
        // Predicated region
        $region78: #{graphsage_forward.3} parent=72 // pred_check
          %p366 = pneg %p365
        $region79: #{graphsage_forward.3} parent=72 // pred_check_branch
          %368 = sbr.rel (%p366) target = $region81
        $region80: #{graphsage_forward.3} parent=72 // pred_region
          %369 = vst [vmem:[#allocation2] sm:$0xff] 0.0
          %370 = vst [vmem:[#allocation2 + $0x8] sm:$0xff] 0.0
          %371 = vst [vmem:[#allocation2 + $0x10] sm:$0xff] 0.0
          %372 = vst [vmem:[#allocation2 + $0x18] sm:$0xff] 0.0
          %373 = vst [vmem:[#allocation2 + $0x20] sm:$0xff] 0.0
          %374 = vst [vmem:[#allocation2 + $0x28] sm:$0xff] 0.0
          %375 = vst [vmem:[#allocation2 + $0x30] sm:$0xff] 0.0
          %376 = vst [vmem:[#allocation2 + $0x38] sm:$0xff] 0.0
          %377 = vst [vmem:[#allocation2 + $0x40] sm:$0xff] 0.0
          %378 = vst [vmem:[#allocation2 + $0x48] sm:$0xff] 0.0
          %379 = vst [vmem:[#allocation2 + $0x50] sm:$0xff] 0.0
          %380 = vst [vmem:[#allocation2 + $0x58] sm:$0xff] 0.0
          %381 = vst [vmem:[#allocation2 + $0x60] sm:$0xff] 0.0
          %382 = vst [vmem:[#allocation2 + $0x68] sm:$0xff] 0.0
          %383 = vst [vmem:[#allocation2 + $0x70] sm:$0xff] 0.0
          %384 = vst [vmem:[#allocation2 + $0x78] sm:$0xff] 0.0
        $region81: #{graphsage_forward.3} parent=72 // pred_fallthru
          _
        %s385 = smul.u32 %s20, 128
        %v386 = vld [vmem:[#allocation2] sm:$0xff]
        %v387 = vld [vmem:[#allocation2 + $0x8] sm:$0xff]
        %v388 = vld [vmem:[#allocation2 + $0x10] sm:$0xff]
        %v389 = vld [vmem:[#allocation2 + $0x18] sm:$0xff]
        %v390 = vld [vmem:[#allocation2 + $0x20] sm:$0xff]
        %v391 = vld [vmem:[#allocation2 + $0x28] sm:$0xff]
        %v392 = vld [vmem:[#allocation2 + $0x30] sm:$0xff]
        %v393 = vld [vmem:[#allocation2 + $0x38] sm:$0xff]
        %v394 = vld [vmem:[#allocation2 + $0x40] sm:$0xff]
        %v395 = vld [vmem:[#allocation2 + $0x48] sm:$0xff]
        %v396 = vld [vmem:[#allocation2 + $0x50] sm:$0xff]
        %v397 = vld [vmem:[#allocation2 + $0x58] sm:$0xff]
        %v398 = vld [vmem:[#allocation2 + $0x60] sm:$0xff]
        %v399 = vld [vmem:[#allocation2 + $0x68] sm:$0xff]
        %v400 = vld [vmem:[#allocation2 + $0x70] sm:$0xff]
        %v401 = vld [vmem:[#allocation2 + $0x78] sm:$0xff]
        %v402 = vld [vmem:[%s312] sm:$0xf]
        %v403 = vld [vmem:[%s312 + $0x4] sm:$0xf]
        %v404 = vld [vmem:[%s312 + $0x8] sm:$0xf]
        %v405 = vld [vmem:[%s312 + $0xc] sm:$0xf]
        %v406 = vld [vmem:[%s312 + $0x10] sm:$0xf]
        %v407 = vld [vmem:[%s312 + $0x14] sm:$0xf]
        %v408 = vld [vmem:[%s312 + $0x18] sm:$0xf]
        %v409 = vld [vmem:[%s312 + $0x1c] sm:$0xf]
        %v410 = vld [vmem:[%s312 + $0x20] sm:$0xf]
        %v411 = vld [vmem:[%s312 + $0x24] sm:$0xf]
        %v412 = vld [vmem:[%s312 + $0x28] sm:$0xf]
        %v413 = vld [vmem:[%s312 + $0x2c] sm:$0xf]
        %v414 = vld [vmem:[%s312 + $0x30] sm:$0xf]
        %v415 = vld [vmem:[%s312 + $0x34] sm:$0xf]
        %v416 = vld [vmem:[%s312 + $0x38] sm:$0xf]
        %v417 = vld [vmem:[%s312 + $0x3c] sm:$0xf]
        %s418 = sshra.s32 %s385, 3
        %s419 = sand.u32 %s385, 7
        %s420 = smul.addr %s418, 4
        %s421 = scalar_lea.vmem %s1, %s420
        %v422 = vld [vmem:[%s421] sm:$0xf]
        %v423 = vld [vmem:[%s421 + $0x4] sm:$0xf]
        %v424 = vld [vmem:[%s421 + $0x8] sm:$0xf]
        %v425 = vld [vmem:[%s421 + $0xc] sm:$0xf]
        %v426 = vld [vmem:[%s421 + $0x10] sm:$0xf]
        %v427 = vld [vmem:[%s421 + $0x14] sm:$0xf]
        %v428 = vld [vmem:[%s421 + $0x18] sm:$0xf]
        %v429 = vld [vmem:[%s421 + $0x1c] sm:$0xf]
        %v430 = vld [vmem:[%s421 + $0x20] sm:$0xf]
        %v431 = vld [vmem:[%s421 + $0x24] sm:$0xf]
        %v432 = vld [vmem:[%s421 + $0x28] sm:$0xf]
        %v433 = vld [vmem:[%s421 + $0x2c] sm:$0xf]
        %v434 = vld [vmem:[%s421 + $0x30] sm:$0xf]
        %v435 = vld [vmem:[%s421 + $0x34] sm:$0xf]
        %v436 = vld [vmem:[%s421 + $0x38] sm:$0xf]
        %v437 = vld [vmem:[%s421 + $0x3c] sm:$0xf]
        %v454 = vunpack.c.l.b16 %v402
        %v455 = vunpack.c.l.b16 %v403
        %v456 = vunpack.c.l.b16 %v404
        %v457 = vunpack.c.l.b16 %v405
        %v458 = vunpack.c.l.b16 %v406
        %v459 = vunpack.c.l.b16 %v407
        %v460 = vunpack.c.l.b16 %v408
        %v461 = vunpack.c.l.b16 %v409
        %v462 = vunpack.c.l.b16 %v410
        %v463 = vunpack.c.l.b16 %v411
        %v464 = vunpack.c.l.b16 %v412
        %v465 = vunpack.c.l.b16 %v413
        %v466 = vunpack.c.l.b16 %v414
        %v467 = vunpack.c.l.b16 %v415
        %v468 = vunpack.c.l.b16 %v416
        %v469 = vunpack.c.l.b16 %v417
        %v470 = vpack.c.b16 %v455, %v454
        %v471 = vpack.c.b16 %v457, %v456
        %v472 = vpack.c.b16 %v459, %v458
        %v473 = vpack.c.b16 %v461, %v460
        %v474 = vpack.c.b16 %v463, %v462
        %v475 = vpack.c.b16 %v465, %v464
        %v476 = vpack.c.b16 %v467, %v466
        %v477 = vpack.c.b16 %v469, %v468
        %v502 = vunpack.c.l.b16 %v422
        %v503 = vunpack.c.l.b16 %v423
        %v504 = vunpack.c.l.b16 %v424
        %v505 = vunpack.c.l.b16 %v425
        %v506 = vunpack.c.l.b16 %v426
        %v507 = vunpack.c.l.b16 %v427
        %v508 = vunpack.c.l.b16 %v428
        %v509 = vunpack.c.l.b16 %v429
        %v510 = vunpack.c.l.b16 %v430
        %v511 = vunpack.c.l.b16 %v431
        %v512 = vunpack.c.l.b16 %v432
        %v513 = vunpack.c.l.b16 %v433
        %v514 = vunpack.c.l.b16 %v434
        %v515 = vunpack.c.l.b16 %v435
        %v516 = vunpack.c.l.b16 %v436
        %v517 = vunpack.c.l.b16 %v437
        %v518 = vpack.c.b16 %v503, %v502
        %v519 = vpack.c.b16 %v505, %v504
        %v520 = vpack.c.b16 %v507, %v506
        %v521 = vpack.c.b16 %v509, %v508
        %v522 = vpack.c.b16 %v511, %v510
        %v523 = vpack.c.b16 %v513, %v512
        %v524 = vpack.c.b16 %v515, %v514
        %v525 = vpack.c.b16 %v517, %v516
        %534 = vmatprep.subr.bf16.mxu0 0
        %535 = vmatpush1.bf16.msra.mxu0 %v525
        %536 = vmatprep.subr.bf16.mxu0 0
        %537 = vmatpush1.bf16.msra.mxu0 %v524
        %538 = vmatprep.subr.bf16.mxu0 0
        %539 = vmatpush1.bf16.msra.mxu0 %v523
        %540 = vmatprep.subr.bf16.mxu0 0
        %541 = vmatpush1.bf16.msra.mxu0 %v522
        %542 = vmatprep.subr.bf16.mxu0 0
        %543 = vmatpush1.bf16.msra.mxu0 %v521
        %544 = vmatprep.subr.bf16.mxu0 0
        %545 = vmatpush1.bf16.msra.mxu0 %v520
        %546 = vmatprep.subr.bf16.mxu0 0
        %547 = vmatpush1.bf16.msra.mxu0 %v519
        %548 = vmatprep.subr.bf16.mxu0 0
        %549 = vmatpush1.bf16.msra.mxu0 %v518
        %550 = vmatprep.subr.bf16.mxu0 0
        %551 = vmatpush2.bf16.msra.mxu0 0
        %552 = vmatprep.subr.bf16.mxu0 0
        %553 = vmatpush2.bf16.msra.mxu0 0
        %554 = vmatprep.subr.bf16.mxu0 0
        %555 = vmatpush2.bf16.msra.mxu0 0
        %556 = vmatprep.subr.bf16.mxu0 0
        %557 = vmatpush2.bf16.msra.mxu0 0
        %558 = vmatprep.subr.bf16.mxu0 0
        %559 = vmatpush2.bf16.msra.mxu0 0
        %560 = vmatprep.subr.bf16.mxu0 0
        %561 = vmatpush2.bf16.msra.mxu0 0
        %562 = vmatprep.subr.bf16.mxu0 0
        %563 = vmatpush2.bf16.msra.mxu0 0
        %564 = vmatprep.subr.bf16.mxu0 0
        %565 = vmatpush2.bf16.msra.mxu0 0
        %566 = vmatprep.mubr.bf16.mxu0 0
        %567 = vmatmul.mubr.bf16.gmra.mxu0 %v470
        %v568 = vpop.f32.mrf.mxu0
        %v569 = vadd.f32 0.0, %v568
        %v570 = vpop.f32.mrf.mxu0
        %v571 = vpop.f32.mrf.mxu0
        %v572 = vadd.f32 0.0, %v571
        %v573 = vpop.f32.mrf.mxu0
        %574 = vmatprep.mubr.bf16.mxu0 0
        %575 = vmatmul.mubr.bf16.gmra.mxu0 %v471
        %v576 = vpop.f32.mrf.mxu0
        %v577 = vadd.f32 0.0, %v576
        %v578 = vpop.f32.mrf.mxu0
        %v579 = vpop.f32.mrf.mxu0
        %v580 = vadd.f32 0.0, %v579
        %v581 = vpop.f32.mrf.mxu0
        %582 = vmatprep.mubr.bf16.mxu0 0
        %583 = vmatmul.mubr.bf16.gmra.mxu0 %v472
        %v584 = vpop.f32.mrf.mxu0
        %v585 = vadd.f32 0.0, %v584
        %v586 = vpop.f32.mrf.mxu0
        %v587 = vpop.f32.mrf.mxu0
        %v588 = vadd.f32 0.0, %v587
        %v589 = vpop.f32.mrf.mxu0
        %590 = vmatprep.mubr.bf16.mxu0 0
        %591 = vmatmul.mubr.bf16.gmra.mxu0 %v473
        %v592 = vpop.f32.mrf.mxu0
        %v593 = vadd.f32 0.0, %v592
        %v594 = vpop.f32.mrf.mxu0
        %v595 = vpop.f32.mrf.mxu0
        %v596 = vadd.f32 0.0, %v595
        %v597 = vpop.f32.mrf.mxu0
        %598 = vmatprep.mubr.bf16.mxu0 0
        %599 = vmatmul.mubr.bf16.gmra.mxu0 %v474
        %v600 = vpop.f32.mrf.mxu0
        %v601 = vadd.f32 0.0, %v600
        %v602 = vpop.f32.mrf.mxu0
        %v603 = vpop.f32.mrf.mxu0
        %v604 = vadd.f32 0.0, %v603
        %v605 = vpop.f32.mrf.mxu0
        %606 = vmatprep.mubr.bf16.mxu0 0
        %607 = vmatmul.mubr.bf16.gmra.mxu0 %v475
        %v608 = vpop.f32.mrf.mxu0
        %v609 = vadd.f32 0.0, %v608
        %v610 = vpop.f32.mrf.mxu0
        %v611 = vpop.f32.mrf.mxu0
        %v612 = vadd.f32 0.0, %v611
        %v613 = vpop.f32.mrf.mxu0
        %614 = vmatprep.mubr.bf16.mxu0 0
        %615 = vmatmul.mubr.bf16.gmra.mxu0 %v476
        %v616 = vpop.f32.mrf.mxu0
        %v617 = vadd.f32 0.0, %v616
        %v618 = vpop.f32.mrf.mxu0
        %v619 = vpop.f32.mrf.mxu0
        %v620 = vadd.f32 0.0, %v619
        %v621 = vpop.f32.mrf.mxu0
        %622 = vmatprep.mubr.bf16.mxu0 0
        %623 = vmatmul.mubr.bf16.gmra.mxu0 %v477
        %v624 = vpop.f32.mrf.mxu0
        %v625 = vadd.f32 0.0, %v624
        %v626 = vpop.f32.mrf.mxu0
        %v627 = vpop.f32.mrf.mxu0
        %v628 = vadd.f32 0.0, %v627
        %v629 = vpop.f32.mrf.mxu0
        %630 = vdwg.mxu0
        %v631 = vadd.f32 %v386, %v569
        %v632 = vadd.f32 %v387, %v572
        %v633 = vadd.f32 %v388, %v577
        %v634 = vadd.f32 %v389, %v580
        %v635 = vadd.f32 %v390, %v585
        %v636 = vadd.f32 %v391, %v588
        %v637 = vadd.f32 %v392, %v593
        %v638 = vadd.f32 %v393, %v596
        %v639 = vadd.f32 %v394, %v601
        %v640 = vadd.f32 %v395, %v604
        %v641 = vadd.f32 %v396, %v609
        %v642 = vadd.f32 %v397, %v612
        %v643 = vadd.f32 %v398, %v617
        %v644 = vadd.f32 %v399, %v620
        %v645 = vadd.f32 %v400, %v625
        %v646 = vadd.f32 %v401, %v628
        %647 = vst [vmem:[#allocation2] sm:$0xff] %v631
        %648 = vst [vmem:[#allocation2 + $0x8] sm:$0xff] %v632
        %649 = vst [vmem:[#allocation2 + $0x10] sm:$0xff] %v633
        %650 = vst [vmem:[#allocation2 + $0x18] sm:$0xff] %v634
        %651 = vst [vmem:[#allocation2 + $0x20] sm:$0xff] %v635
        %652 = vst [vmem:[#allocation2 + $0x28] sm:$0xff] %v636
        %653 = vst [vmem:[#allocation2 + $0x30] sm:$0xff] %v637
        %654 = vst [vmem:[#allocation2 + $0x38] sm:$0xff] %v638
        %655 = vst [vmem:[#allocation2 + $0x40] sm:$0xff] %v639
        %656 = vst [vmem:[#allocation2 + $0x48] sm:$0xff] %v640
        %657 = vst [vmem:[#allocation2 + $0x50] sm:$0xff] %v641
        %658 = vst [vmem:[#allocation2 + $0x58] sm:$0xff] %v642
        %659 = vst [vmem:[#allocation2 + $0x60] sm:$0xff] %v643
        %660 = vst [vmem:[#allocation2 + $0x68] sm:$0xff] %v644
        %661 = vst [vmem:[#allocation2 + $0x70] sm:$0xff] %v645
        %662 = vst [vmem:[#allocation2 + $0x78] sm:$0xff] %v646
        %p663 = scmp.eq.s32.totalorder %s20, 1
        // Predicated region
        $region82: #{graphsage_forward.3} parent=72 // pred_check
          %p664 = pneg %p663
        $region83: #{graphsage_forward.3} parent=72 // pred_check_branch
          %666 = sbr.rel (%p664) target = $region85
        $region84: #{graphsage_forward.3} parent=72 // pred_region
          %v667 = vld [vmem:[#allocation2] sm:$0xff]
          %v668 = vld [vmem:[#allocation2 + $0x8] sm:$0xff]
          %v669 = vld [vmem:[#allocation2 + $0x10] sm:$0xff]
          %v670 = vld [vmem:[#allocation2 + $0x18] sm:$0xff]
          %v671 = vld [vmem:[#allocation2 + $0x20] sm:$0xff]
          %v672 = vld [vmem:[#allocation2 + $0x28] sm:$0xff]
          %v673 = vld [vmem:[#allocation2 + $0x30] sm:$0xff]
          %v674 = vld [vmem:[#allocation2 + $0x38] sm:$0xff]
          %v675 = vld [vmem:[#allocation2 + $0x40] sm:$0xff]
          %v676 = vld [vmem:[#allocation2 + $0x48] sm:$0xff]
          %v677 = vld [vmem:[#allocation2 + $0x50] sm:$0xff]
          %v678 = vld [vmem:[#allocation2 + $0x58] sm:$0xff]
          %v679 = vld [vmem:[#allocation2 + $0x60] sm:$0xff]
          %v680 = vld [vmem:[#allocation2 + $0x68] sm:$0xff]
          %v681 = vld [vmem:[#allocation2 + $0x70] sm:$0xff]
          %v682 = vld [vmem:[#allocation2 + $0x78] sm:$0xff]
          %v683 = vld [vmem:[%s350] sm:$0xff]
          %v684 = vld [vmem:[%s350 + $0x8] sm:$0xff]
          %v685 = vld [vmem:[%s350 + $0x10] sm:$0xff]
          %v686 = vld [vmem:[%s350 + $0x18] sm:$0xff]
          %v687 = vld [vmem:[%s350 + $0x20] sm:$0xff]
          %v688 = vld [vmem:[%s350 + $0x28] sm:$0xff]
          %v689 = vld [vmem:[%s350 + $0x30] sm:$0xff]
          %v690 = vld [vmem:[%s350 + $0x38] sm:$0xff]
          %v691 = vld [vmem:[%s350 + $0x40] sm:$0xff]
          %v692 = vld [vmem:[%s350 + $0x48] sm:$0xff]
          %v693 = vld [vmem:[%s350 + $0x50] sm:$0xff]
          %v694 = vld [vmem:[%s350 + $0x58] sm:$0xff]
          %v695 = vld [vmem:[%s350 + $0x60] sm:$0xff]
          %v696 = vld [vmem:[%s350 + $0x68] sm:$0xff]
          %v697 = vld [vmem:[%s350 + $0x70] sm:$0xff]
          %v698 = vld [vmem:[%s350 + $0x78] sm:$0xff]
          %700 = vset.pattern.permute.xlu0 0
          %701 = vperm.xlu0 %700, %v683
          %v702 = vpop.permute.xlu0 %701
          %705 = vset.pattern.permute.xlu0 0
          %706 = vperm.xlu0 %705, %v684
          %v707 = vpop.permute.xlu0 %706
          %710 = vset.pattern.permute.xlu0 0
          %711 = vperm.xlu0 %710, %v685
          %v712 = vpop.permute.xlu0 %711
          %715 = vset.pattern.permute.xlu0 0
          %716 = vperm.xlu0 %715, %v686
          %v717 = vpop.permute.xlu0 %716
          %720 = vset.pattern.permute.xlu0 0
          %721 = vperm.xlu0 %720, %v687
          %v722 = vpop.permute.xlu0 %721
          %725 = vset.pattern.permute.xlu0 0
          %726 = vperm.xlu0 %725, %v688
          %v727 = vpop.permute.xlu0 %726
          %730 = vset.pattern.permute.xlu0 0
          %731 = vperm.xlu0 %730, %v689
          %v732 = vpop.permute.xlu0 %731
          %735 = vset.pattern.permute.xlu0 0
          %736 = vperm.xlu0 %735, %v690
          %v737 = vpop.permute.xlu0 %736
          %740 = vset.pattern.permute.xlu0 0
          %741 = vperm.xlu0 %740, %v691
          %v742 = vpop.permute.xlu0 %741
          %745 = vset.pattern.permute.xlu0 0
          %746 = vperm.xlu0 %745, %v692
          %v747 = vpop.permute.xlu0 %746
          %750 = vset.pattern.permute.xlu0 0
          %751 = vperm.xlu0 %750, %v693
          %v752 = vpop.permute.xlu0 %751
          %755 = vset.pattern.permute.xlu0 0
          %756 = vperm.xlu0 %755, %v694
          %v757 = vpop.permute.xlu0 %756
          %760 = vset.pattern.permute.xlu0 0
          %761 = vperm.xlu0 %760, %v695
          %v762 = vpop.permute.xlu0 %761
          %765 = vset.pattern.permute.xlu0 0
          %766 = vperm.xlu0 %765, %v696
          %v767 = vpop.permute.xlu0 %766
          %770 = vset.pattern.permute.xlu0 0
          %771 = vperm.xlu0 %770, %v697
          %v772 = vpop.permute.xlu0 %771
          %775 = vset.pattern.permute.xlu0 0
          %776 = vperm.xlu0 %775, %v698
          %v777 = vpop.permute.xlu0 %776
          %v779 = vmul.f32 %v667, %v702
          %v780 = vmul.f32 %v668, %v707
          %v781 = vmul.f32 %v669, %v712
          %v782 = vmul.f32 %v670, %v717
          %v783 = vmul.f32 %v671, %v722
          %v784 = vmul.f32 %v672, %v727
          %v785 = vmul.f32 %v673, %v732
          %v786 = vmul.f32 %v674, %v737
          %v787 = vmul.f32 %v675, %v742
          %v788 = vmul.f32 %v676, %v747
          %v789 = vmul.f32 %v677, %v752
          %v790 = vmul.f32 %v678, %v757
          %v791 = vmul.f32 %v679, %v762
          %v792 = vmul.f32 %v680, %v767
          %v793 = vmul.f32 %v681, %v772
          %v794 = vmul.f32 %v682, %v777
          %v795 = vld [vmem:[%s356] sm:$0xff]
          %v796 = vld [vmem:[%s356 + $0x8] sm:$0xff]
          %v797 = vld [vmem:[%s356 + $0x10] sm:$0xff]
          %v798 = vld [vmem:[%s356 + $0x18] sm:$0xff]
          %v799 = vld [vmem:[%s356 + $0x20] sm:$0xff]
          %v800 = vld [vmem:[%s356 + $0x28] sm:$0xff]
          %v801 = vld [vmem:[%s356 + $0x30] sm:$0xff]
          %v802 = vld [vmem:[%s356 + $0x38] sm:$0xff]
          %v803 = vld [vmem:[%s356 + $0x40] sm:$0xff]
          %v804 = vld [vmem:[%s356 + $0x48] sm:$0xff]
          %v805 = vld [vmem:[%s356 + $0x50] sm:$0xff]
          %v806 = vld [vmem:[%s356 + $0x58] sm:$0xff]
          %v807 = vld [vmem:[%s356 + $0x60] sm:$0xff]
          %v808 = vld [vmem:[%s356 + $0x68] sm:$0xff]
          %v809 = vld [vmem:[%s356 + $0x70] sm:$0xff]
          %v810 = vld [vmem:[%s356 + $0x78] sm:$0xff]
          %v811 = vadd.f32 %v779, %v795
          %v812 = vadd.f32 %v780, %v796
          %v813 = vadd.f32 %v781, %v797
          %v814 = vadd.f32 %v782, %v798
          %v815 = vadd.f32 %v783, %v799
          %v816 = vadd.f32 %v784, %v800
          %v817 = vadd.f32 %v785, %v801
          %v818 = vadd.f32 %v786, %v802
          %v819 = vadd.f32 %v787, %v803
          %v820 = vadd.f32 %v788, %v804
          %v821 = vadd.f32 %v789, %v805
          %v822 = vadd.f32 %v790, %v806
          %v823 = vadd.f32 %v791, %v807
          %v824 = vadd.f32 %v792, %v808
          %v825 = vadd.f32 %v793, %v809
          %v826 = vadd.f32 %v794, %v810
          %v827 = vmul.f32 %v811, %v811
          %v828 = vmul.f32 %v812, %v812
          %v829 = vmul.f32 %v813, %v813
          %v830 = vmul.f32 %v814, %v814
          %v831 = vmul.f32 %v815, %v815
          %v832 = vmul.f32 %v816, %v816
          %v833 = vmul.f32 %v817, %v817
          %v834 = vmul.f32 %v818, %v818
          %v835 = vmul.f32 %v819, %v819
          %v836 = vmul.f32 %v820, %v820
          %v837 = vmul.f32 %v821, %v821
          %v838 = vmul.f32 %v822, %v822
          %v839 = vmul.f32 %v823, %v823
          %v840 = vmul.f32 %v824, %v824
          %v841 = vmul.f32 %v825, %v825
          %v842 = vmul.f32 %v826, %v826
          %843 = vadd.xlane.f32.xlu0 %v827
          %v844 = vpop.xlane.xlu0 %843
          %845 = vadd.xlane.f32.xlu0 %v828
          %v846 = vpop.xlane.xlu0 %845
          %847 = vadd.xlane.f32.xlu0 %v829
          %v848 = vpop.xlane.xlu0 %847
          %849 = vadd.xlane.f32.xlu0 %v830
          %v850 = vpop.xlane.xlu0 %849
          %851 = vadd.xlane.f32.xlu0 %v831
          %v852 = vpop.xlane.xlu0 %851
          %853 = vadd.xlane.f32.xlu0 %v832
          %v854 = vpop.xlane.xlu0 %853
          %855 = vadd.xlane.f32.xlu0 %v833
          %v856 = vpop.xlane.xlu0 %855
          %857 = vadd.xlane.f32.xlu0 %v834
          %v858 = vpop.xlane.xlu0 %857
          %859 = vadd.xlane.f32.xlu0 %v835
          %v860 = vpop.xlane.xlu0 %859
          %861 = vadd.xlane.f32.xlu0 %v836
          %v862 = vpop.xlane.xlu0 %861
          %863 = vadd.xlane.f32.xlu0 %v837
          %v864 = vpop.xlane.xlu0 %863
          %865 = vadd.xlane.f32.xlu0 %v838
          %v866 = vpop.xlane.xlu0 %865
          %867 = vadd.xlane.f32.xlu0 %v839
          %v868 = vpop.xlane.xlu0 %867
          %869 = vadd.xlane.f32.xlu0 %v840
          %v870 = vpop.xlane.xlu0 %869
          %871 = vadd.xlane.f32.xlu0 %v841
          %v872 = vpop.xlane.xlu0 %871
          %873 = vadd.xlane.f32.xlu0 %v842
          %v874 = vpop.xlane.xlu0 %873
          %v875 = vmax.f32 %v844, 1e-24
          %v876 = vmax.f32 %v846, 1e-24
          %v877 = vmax.f32 %v848, 1e-24
          %v878 = vmax.f32 %v850, 1e-24
          %v879 = vmax.f32 %v852, 1e-24
          %v880 = vmax.f32 %v854, 1e-24
          %v881 = vmax.f32 %v856, 1e-24
          %v882 = vmax.f32 %v858, 1e-24
          %v883 = vmax.f32 %v860, 1e-24
          %v884 = vmax.f32 %v862, 1e-24
          %v885 = vmax.f32 %v864, 1e-24
          %v886 = vmax.f32 %v866, 1e-24
          %v887 = vmax.f32 %v868, 1e-24
          %v888 = vmax.f32 %v870, 1e-24
          %v889 = vmax.f32 %v872, 1e-24
          %v890 = vmax.f32 %v874, 1e-24
          %v891 = vrsqrt.pop %v875
          %v892 = vrsqrt.pop %v876
          %v893 = vrsqrt.pop %v877
          %v894 = vrsqrt.pop %v878
          %v895 = vrsqrt.pop %v879
          %v896 = vrsqrt.pop %v880
          %v897 = vrsqrt.pop %v881
          %v898 = vrsqrt.pop %v882
          %v899 = vrsqrt.pop %v883
          %v900 = vrsqrt.pop %v884
          %v901 = vrsqrt.pop %v885
          %v902 = vrsqrt.pop %v886
          %v903 = vrsqrt.pop %v887
          %v904 = vrsqrt.pop %v888
          %v905 = vrsqrt.pop %v889
          %v906 = vrsqrt.pop %v890
          %v907 = vmul.f32 %v811, %v891
          %v908 = vmul.f32 %v812, %v892
          %v909 = vmul.f32 %v813, %v893
          %v910 = vmul.f32 %v814, %v894
          %v911 = vmul.f32 %v815, %v895
          %v912 = vmul.f32 %v816, %v896
          %v913 = vmul.f32 %v817, %v897
          %v914 = vmul.f32 %v818, %v898
          %v915 = vmul.f32 %v819, %v899
          %v916 = vmul.f32 %v820, %v900
          %v917 = vmul.f32 %v821, %v901
          %v918 = vmul.f32 %v822, %v902
          %v919 = vmul.f32 %v823, %v903
          %v920 = vmul.f32 %v824, %v904
          %v921 = vmul.f32 %v825, %v905
          %v922 = vmul.f32 %v826, %v906
          %v923 = vlaneseq
          %v924 = vand.u32 %v923, 127
          %vm925 = vcmp.lt.s32.totalorder %v924, 8
          %v926 = vsel %vm925, %v907, -1e+30
          %v927 = vsel %vm925, %v908, -1e+30
          %v928 = vsel %vm925, %v909, -1e+30
          %v929 = vsel %vm925, %v910, -1e+30
          %v930 = vsel %vm925, %v911, -1e+30
          %v931 = vsel %vm925, %v912, -1e+30
          %v932 = vsel %vm925, %v913, -1e+30
          %v933 = vsel %vm925, %v914, -1e+30
          %v934 = vsel %vm925, %v915, -1e+30
          %v935 = vsel %vm925, %v916, -1e+30
          %v936 = vsel %vm925, %v917, -1e+30
          %v937 = vsel %vm925, %v918, -1e+30
          %v938 = vsel %vm925, %v919, -1e+30
          %v939 = vsel %vm925, %v920, -1e+30
          %v940 = vsel %vm925, %v921, -1e+30
          %v941 = vsel %vm925, %v922, -1e+30
          %942 = vmax.xlane.f32.xlu0 %v926
          %v943 = vpop.xlane.xlu0 %942
          %944 = vmax.xlane.f32.xlu0 %v927
          %v945 = vpop.xlane.xlu0 %944
          %946 = vmax.xlane.f32.xlu0 %v928
          %v947 = vpop.xlane.xlu0 %946
          %948 = vmax.xlane.f32.xlu0 %v929
          %v949 = vpop.xlane.xlu0 %948
          %950 = vmax.xlane.f32.xlu0 %v930
          %v951 = vpop.xlane.xlu0 %950
          %952 = vmax.xlane.f32.xlu0 %v931
          %v953 = vpop.xlane.xlu0 %952
          %954 = vmax.xlane.f32.xlu0 %v932
          %v955 = vpop.xlane.xlu0 %954
          %956 = vmax.xlane.f32.xlu0 %v933
          %v957 = vpop.xlane.xlu0 %956
          %958 = vmax.xlane.f32.xlu0 %v934
          %v959 = vpop.xlane.xlu0 %958
          %960 = vmax.xlane.f32.xlu0 %v935
          %v961 = vpop.xlane.xlu0 %960
          %962 = vmax.xlane.f32.xlu0 %v936
          %v963 = vpop.xlane.xlu0 %962
          %964 = vmax.xlane.f32.xlu0 %v937
          %v965 = vpop.xlane.xlu0 %964
          %966 = vmax.xlane.f32.xlu0 %v938
          %v967 = vpop.xlane.xlu0 %966
          %968 = vmax.xlane.f32.xlu0 %v939
          %v969 = vpop.xlane.xlu0 %968
          %970 = vmax.xlane.f32.xlu0 %v940
          %v971 = vpop.xlane.xlu0 %970
          %972 = vmax.xlane.f32.xlu0 %v941
          %v973 = vpop.xlane.xlu0 %972
          %v974 = vsub.f32 %v926, %v943
          %v975 = vsub.f32 %v927, %v945
          %v976 = vsub.f32 %v928, %v947
          %v977 = vsub.f32 %v929, %v949
          %v978 = vsub.f32 %v930, %v951
          %v979 = vsub.f32 %v931, %v953
          %v980 = vsub.f32 %v932, %v955
          %v981 = vsub.f32 %v933, %v957
          %v982 = vsub.f32 %v934, %v959
          %v983 = vsub.f32 %v935, %v961
          %v984 = vsub.f32 %v936, %v963
          %v985 = vsub.f32 %v937, %v965
          %v986 = vsub.f32 %v938, %v967
          %v987 = vsub.f32 %v939, %v969
          %v988 = vsub.f32 %v940, %v971
          %v989 = vsub.f32 %v941, %v973
          %v990 = vmul.f32 %v974, 1.442695
          %v991 = vpow.pop %v990
          %v992 = vmul.f32 %v975, 1.442695
          %v993 = vpow.pop %v992
          %v994 = vmul.f32 %v976, 1.442695
          %v995 = vpow.pop %v994
          %v996 = vmul.f32 %v977, 1.442695
          %v997 = vpow.pop %v996
          %v998 = vmul.f32 %v978, 1.442695
          %v999 = vpow.pop %v998
          %v1000 = vmul.f32 %v979, 1.442695
          %v1001 = vpow.pop %v1000
          %v1002 = vmul.f32 %v980, 1.442695
          %v1003 = vpow.pop %v1002
          %v1004 = vmul.f32 %v981, 1.442695
          %v1005 = vpow.pop %v1004
          %v1006 = vmul.f32 %v982, 1.442695
          %v1007 = vpow.pop %v1006
          %v1008 = vmul.f32 %v983, 1.442695
          %v1009 = vpow.pop %v1008
          %v1010 = vmul.f32 %v984, 1.442695
          %v1011 = vpow.pop %v1010
          %v1012 = vmul.f32 %v985, 1.442695
          %v1013 = vpow.pop %v1012
          %v1014 = vmul.f32 %v986, 1.442695
          %v1015 = vpow.pop %v1014
          %v1016 = vmul.f32 %v987, 1.442695
          %v1017 = vpow.pop %v1016
          %v1018 = vmul.f32 %v988, 1.442695
          %v1019 = vpow.pop %v1018
          %v1020 = vmul.f32 %v989, 1.442695
          %v1021 = vpow.pop %v1020
          %1022 = vadd.xlane.f32.xlu0 %v991
          %v1023 = vpop.xlane.xlu0 %1022
          %1024 = vadd.xlane.f32.xlu0 %v993
          %v1025 = vpop.xlane.xlu0 %1024
          %1026 = vadd.xlane.f32.xlu0 %v995
          %v1027 = vpop.xlane.xlu0 %1026
          %1028 = vadd.xlane.f32.xlu0 %v997
          %v1029 = vpop.xlane.xlu0 %1028
          %1030 = vadd.xlane.f32.xlu0 %v999
          %v1031 = vpop.xlane.xlu0 %1030
          %1032 = vadd.xlane.f32.xlu0 %v1001
          %v1033 = vpop.xlane.xlu0 %1032
          %1034 = vadd.xlane.f32.xlu0 %v1003
          %v1035 = vpop.xlane.xlu0 %1034
          %1036 = vadd.xlane.f32.xlu0 %v1005
          %v1037 = vpop.xlane.xlu0 %1036
          %1038 = vadd.xlane.f32.xlu0 %v1007
          %v1039 = vpop.xlane.xlu0 %1038
          %1040 = vadd.xlane.f32.xlu0 %v1009
          %v1041 = vpop.xlane.xlu0 %1040
          %1042 = vadd.xlane.f32.xlu0 %v1011
          %v1043 = vpop.xlane.xlu0 %1042
          %1044 = vadd.xlane.f32.xlu0 %v1013
          %v1045 = vpop.xlane.xlu0 %1044
          %1046 = vadd.xlane.f32.xlu0 %v1015
          %v1047 = vpop.xlane.xlu0 %1046
          %1048 = vadd.xlane.f32.xlu0 %v1017
          %v1049 = vpop.xlane.xlu0 %1048
          %1050 = vadd.xlane.f32.xlu0 %v1019
          %v1051 = vpop.xlane.xlu0 %1050
          %1052 = vadd.xlane.f32.xlu0 %v1021
          %v1053 = vpop.xlane.xlu0 %1052
          %v1054 = vlog2.pop %v1023
          %v1055 = vmul.f32 %v1054, 0.6931472
          %v1056 = vlog2.pop %v1025
          %v1057 = vmul.f32 %v1056, 0.6931472
          %v1058 = vlog2.pop %v1027
          %v1059 = vmul.f32 %v1058, 0.6931472
          %v1060 = vlog2.pop %v1029
          %v1061 = vmul.f32 %v1060, 0.6931472
          %v1062 = vlog2.pop %v1031
          %v1063 = vmul.f32 %v1062, 0.6931472
          %v1064 = vlog2.pop %v1033
          %v1065 = vmul.f32 %v1064, 0.6931472
          %v1066 = vlog2.pop %v1035
          %v1067 = vmul.f32 %v1066, 0.6931472
          %v1068 = vlog2.pop %v1037
          %v1069 = vmul.f32 %v1068, 0.6931472
          %v1070 = vlog2.pop %v1039
          %v1071 = vmul.f32 %v1070, 0.6931472
          %v1072 = vlog2.pop %v1041
          %v1073 = vmul.f32 %v1072, 0.6931472
          %v1074 = vlog2.pop %v1043
          %v1075 = vmul.f32 %v1074, 0.6931472
          %v1076 = vlog2.pop %v1045
          %v1077 = vmul.f32 %v1076, 0.6931472
          %v1078 = vlog2.pop %v1047
          %v1079 = vmul.f32 %v1078, 0.6931472
          %v1080 = vlog2.pop %v1049
          %v1081 = vmul.f32 %v1080, 0.6931472
          %v1082 = vlog2.pop %v1051
          %v1083 = vmul.f32 %v1082, 0.6931472
          %v1084 = vlog2.pop %v1053
          %v1085 = vmul.f32 %v1084, 0.6931472
          %v1086 = vsub.f32 %v974, %v1055
          %v1087 = vsub.f32 %v975, %v1057
          %v1088 = vsub.f32 %v976, %v1059
          %v1089 = vsub.f32 %v977, %v1061
          %v1090 = vsub.f32 %v978, %v1063
          %v1091 = vsub.f32 %v979, %v1065
          %v1092 = vsub.f32 %v980, %v1067
          %v1093 = vsub.f32 %v981, %v1069
          %v1094 = vsub.f32 %v982, %v1071
          %v1095 = vsub.f32 %v983, %v1073
          %v1096 = vsub.f32 %v984, %v1075
          %v1097 = vsub.f32 %v985, %v1077
          %v1098 = vsub.f32 %v986, %v1079
          %v1099 = vsub.f32 %v987, %v1081
          %v1100 = vsub.f32 %v988, %v1083
          %v1101 = vsub.f32 %v989, %v1085
          %v1102 = vsel %vm925, %v1086, 0.0
          %v1103 = vsel %vm925, %v1087, 0.0
          %v1104 = vsel %vm925, %v1088, 0.0
          %v1105 = vsel %vm925, %v1089, 0.0
          %v1106 = vsel %vm925, %v1090, 0.0
          %v1107 = vsel %vm925, %v1091, 0.0
          %v1108 = vsel %vm925, %v1092, 0.0
          %v1109 = vsel %vm925, %v1093, 0.0
          %v1110 = vsel %vm925, %v1094, 0.0
          %v1111 = vsel %vm925, %v1095, 0.0
          %v1112 = vsel %vm925, %v1096, 0.0
          %v1113 = vsel %vm925, %v1097, 0.0
          %v1114 = vsel %vm925, %v1098, 0.0
          %v1115 = vsel %vm925, %v1099, 0.0
          %v1116 = vsel %vm925, %v1100, 0.0
          %v1117 = vsel %vm925, %v1101, 0.0
          %1118 = vst [vmem:[%s362] sm:$0xff] %v1102
          %1119 = vst [vmem:[%s362 + $0x8] sm:$0xff] %v1103
          %1120 = vst [vmem:[%s362 + $0x10] sm:$0xff] %v1104
          %1121 = vst [vmem:[%s362 + $0x18] sm:$0xff] %v1105
          %1122 = vst [vmem:[%s362 + $0x20] sm:$0xff] %v1106
          %1123 = vst [vmem:[%s362 + $0x28] sm:$0xff] %v1107
          %1124 = vst [vmem:[%s362 + $0x30] sm:$0xff] %v1108
          %1125 = vst [vmem:[%s362 + $0x38] sm:$0xff] %v1109
          %1126 = vst [vmem:[%s362 + $0x40] sm:$0xff] %v1110
          %1127 = vst [vmem:[%s362 + $0x48] sm:$0xff] %v1111
          %1128 = vst [vmem:[%s362 + $0x50] sm:$0xff] %v1112
          %1129 = vst [vmem:[%s362 + $0x58] sm:$0xff] %v1113
          %1130 = vst [vmem:[%s362 + $0x60] sm:$0xff] %v1114
          %1131 = vst [vmem:[%s362 + $0x68] sm:$0xff] %v1115
          %1132 = vst [vmem:[%s362 + $0x70] sm:$0xff] %v1116
          %1133 = vst [vmem:[%s362 + $0x78] sm:$0xff] %v1117
        $region85: #{graphsage_forward.3} parent=72 // pred_fallthru
          _
        %s1134 = smul.u32 16, %s19
        %p1135 = scmp.lt.s32.totalorder %s1134, 31
        %s1136 = scalar_select %p1135, %s1134, 31
        %s1137 = smul.addr %s1136, 8
        %s1138 = scalar_lea.vmem %s4, %s1137
        // Predicated region
        $region86: #{graphsage_forward.3} parent=72 // pred_check
          %p1139 = pneg %p146
        $region87: #{graphsage_forward.3} parent=72 // pred_check_branch
          %1141 = sbr.rel (%p1139) target = $region89
        $region88: #{graphsage_forward.3} parent=72 // pred_region
          %s1142 = smul.u32 16, %s19
        $region89: #{graphsage_forward.3} parent=72 // pred_fallthru
          _
      $region73: #{graphsage_forward.3} parent=5 // pred_fallthru
        _
      %p1143 = scmp.le.s32.totalorder 2, %s10
      // Predicated region
      $region90: #{graphsage_forward.3} parent=5 // pred_check
        %p1144 = pneg %p1143
      $region91: #{graphsage_forward.3} parent=5 // pred_check_branch
        %1146 = sbr.rel (%p1144) target = $region93
      $region92: #{graphsage_forward.3} parent=5 // pred_region
        %s1147 = ssub.s32 %s10, 2
        // Predicated region
        $region94: #{graphsage_forward.3} parent=92 // pred_check
          %p1148 = pneg %p152
        $region95: #{graphsage_forward.3} parent=92 // pred_check_branch
          %1150 = sbr.rel (%p1148) target = $region97
        $region96: #{graphsage_forward.3} parent=92 // pred_region
          %s1151 = smul.u32 16, %s21
          %p1152 = scmp.lt.s32.totalorder %s1151, 31
          %s1153 = scalar_select %p1152, %s1151, 31
          %s1154 = smul.addr %s1153, 8
          %s1155 = scalar_lea.vmem %s4, %s1154
        $region97: #{graphsage_forward.3} parent=92 // pred_fallthru
          _
      $region93: #{graphsage_forward.3} parent=5 // pred_fallthru
        _
    $region6: #{graphsage_forward.3} parent=1 // loop_footer
      %s14 = sadd.s32 1, %s10
    $region7: #{graphsage_forward.3} parent=1 // loop_footer_branch
      %9 = sbr.rel target = $region3
    $region8: #{graphsage_forward.3} parent=1 // loop_exit
      _

// kernel: graphsage_forward.2
$region0: #{graphsage_forward.2}
  #allocation0 [shape = 'u32[]', space=smem, size = 0x4, offset = 0x4, fixed_abs, tag = 'smem constant byte address 0x4 - core index']
  #allocation1 [shape = 'u32[144,128]{1,0:T(1,128)}', space=vmem, size = 0x12000, scoped, tag = 'internal scratch']
  #allocation2 [shape = 'f32[128,128]{1,0:T(8,128)}', space=vmem, size = 0x10000, scoped, tag = 'scratch operand']
  %s0 = inlined_call_operand.vmem [shape: bf16[256,256], index: 0, kind: input, shape index: {}]
  %s1 = inlined_call_operand.vmem [shape: bf16[256,128], index: 1, kind: input, shape index: {}]
  %s2 = inlined_call_operand.vmem [shape: f32[256,1], index: 2, kind: input, shape index: {}]
  %s3 = inlined_call_operand.vmem [shape: bf16[128,128], index: 3, kind: input, shape index: {}]
  %s4 = inlined_call_operand.vmem [shape: bf16[128,128], index: 4, kind: input, shape index: {}]
  %s5 = inlined_call_operand.vmem [shape: bf16[128,256], index: 5, kind: input, shape index: {}]
  %s6 = inlined_call_operand.vmem [shape: f32[256,128], index: 6, kind: output, shape index: {0}]
  %s7 = inlined_call_operand.vmem [shape: bf16[256,128], index: 7, kind: output, shape index: {1}]
  %8 = xla_tuple %s6, %s7
  %s9 = sld [smem:[#allocation0]]
  $region114: #{graphsage_forward.2} parent=0
    _
  %s11 = ssub.s32 1, %s9
  %s12 = scalar_select 0, %s11, %s9
  $region1: #{graphsage_forward.2} parent=0
    #allocation3 [shape = 'u8[65536]{0}', space=vmem, size = 0x10000, scoped, tag = 'input window, operand 0']
    loop: start=0, step=1, limit=6
    $region2: #{graphsage_forward.2} parent=1 // loop_pre_header
      _
    $region3: #{graphsage_forward.2} parent=1 // loop_header
      %s14 = sphi 0, %s18
      %p15 = scmp.ge.s32.totalorder %s14, 6
      %s21 = sphi 0, %s33
      %s22 = sphi 0, %s29
      %s23 = sphi 0, %s21
      %s24 = sphi 0, %s22
      %s25 = sphi 0, %s23
      %s26 = sphi 0, %s24
      %s38 = sphi 0, %s40
      %s41 = sphi 0, %s38
      %s42 = sphi 0, %s41
      %s58 = sphi 0, %s42
      %s62 = sphi 0, %s62
      %s64 = sphi 0, %s62
      %s65 = sphi 0, %s64
      %s79 = sphi 0, %s65
      %s85 = sphi 0, %s87
      %s88 = sphi 0, %s85
      %s89 = sphi 0, %s88
      %s105 = sphi 0, %s89
      %s109 = sphi 0, %s109
      %s111 = sphi 0, %s109
      %s112 = sphi 0, %s111
      %s126 = sphi 0, %s112
      %s130 = sphi 0, %s130
      %s132 = sphi 0, %s130
      %s133 = sphi 0, %s132
      %s147 = sphi 0, %s133
      %s151 = sphi 0, %s151
      %s153 = sphi 0, %s151
      %s154 = sphi 0, %s153
      %s168 = sphi 0, %s154
      %s174 = sphi 0, %s176
      %s177 = sphi 0, %s174
      %s178 = sphi 0, %s177
      %s194 = sphi 0, %s178
      %s200 = sphi 0, %s202
      %s203 = sphi 0, %s200
      %s204 = sphi 0, %s203
      %s220 = sphi 0, %s204
    $region4: #{graphsage_forward.2} parent=1 // loop_header_branch
      %17 = sbr.rel (%p15) target = $region8
    $region5: #{graphsage_forward.2} parent=1 // loop_body
      %s19 = ssub.s32 %s14, 1
      %s20 = ssub.s32 %s14, 2
      %s27 = sadd.s32 1, %s22
      %p28 = scmp.ge.s32.totalorder %s27, 2
      %s29 = scalar_select %p28, 0, %s27
      %s30 = sadd.s32 1, %s21
      %s31 = scalar_select %p28, %s30, %s21
      %p32 = scmp.ge.s32.totalorder %s31, 2
      %s33 = scalar_select %p32, 0, %s31
      %s34 = ssub.s32 %s21, %s33
      %s35 = ssub.s32 %s22, %s29
      %s36 = sor.u32 %s34, %s35
      %p37 = scmp.eq.s32.totalorder %s36, 0
      %s39 = sadd.s32 %s38, 1
      %s40 = scalar_select %p37, %s38, %s39
      %p43 = pneg %p37
      %p44 = scmp.eq.s32.totalorder %s14, 3
      %p45 = por %p43, %p44
      %p46 = scmp.ne.s32.totalorder %s38, %s41
      %p47 = scmp.eq.s32.totalorder %s14, 0
      %p48 = por %p46, %p47
      %p49 = scmp.ne.s32.totalorder %s38, %s41
      %p50 = scmp.eq.s32.totalorder %s19, 3
      %p51 = por %p49, %p50
      %p52 = scmp.ne.s32.totalorder %s41, %s42
      %p53 = scmp.eq.s32.totalorder %s19, 0
      %p54 = por %p52, %p53
      %p55 = scmp.ne.s32.totalorder %s41, %s42
      %p56 = scmp.eq.s32.totalorder %s20, 3
      %p57 = por %p55, %p56
      %p59 = scmp.ne.s32.totalorder %s42, %s58
      %p60 = scmp.eq.s32.totalorder %s20, 0
      %p61 = por %p59, %p60
      %s63 = sadd.s32 %s62, 1
      %p66 = scmp.eq.s32.totalorder %s14, 3
      %p67 = scmp.ne.s32.totalorder %s62, %s64
      %p68 = scmp.eq.s32.totalorder %s14, 0
      %p69 = por %p67, %p68
      %p70 = scmp.ne.s32.totalorder %s62, %s64
      %p71 = scmp.eq.s32.totalorder %s19, 3
      %p72 = por %p70, %p71
      %p73 = scmp.ne.s32.totalorder %s64, %s65
      %p74 = scmp.eq.s32.totalorder %s19, 0
      %p75 = por %p73, %p74
      %p76 = scmp.ne.s32.totalorder %s64, %s65
      %p77 = scmp.eq.s32.totalorder %s20, 3
      %p78 = por %p76, %p77
      %p80 = scmp.ne.s32.totalorder %s65, %s79
      %p81 = scmp.eq.s32.totalorder %s20, 0
      %p82 = por %p80, %p81
      %s83 = ssub.s32 %s21, %s33
      %p84 = scmp.eq.s32.totalorder %s83, 0
      %s86 = sadd.s32 %s85, 1
      %s87 = scalar_select %p84, %s85, %s86
      %p90 = pneg %p84
      %p91 = scmp.eq.s32.totalorder %s14, 3
      %p92 = por %p90, %p91
      %p93 = scmp.ne.s32.totalorder %s85, %s88
      %p94 = scmp.eq.s32.totalorder %s14, 0
      %p95 = por %p93, %p94
      %p96 = scmp.ne.s32.totalorder %s85, %s88
      %p97 = scmp.eq.s32.totalorder %s19, 3
      %p98 = por %p96, %p97
      %p99 = scmp.ne.s32.totalorder %s88, %s89
      %p100 = scmp.eq.s32.totalorder %s19, 0
      %p101 = por %p99, %p100
      %p102 = scmp.ne.s32.totalorder %s88, %s89
      %p103 = scmp.eq.s32.totalorder %s20, 3
      %p104 = por %p102, %p103
      %p106 = scmp.ne.s32.totalorder %s89, %s105
      %p107 = scmp.eq.s32.totalorder %s20, 0
      %p108 = por %p106, %p107
      %s110 = sadd.s32 %s109, 1
      %p113 = scmp.eq.s32.totalorder %s14, 3
      %p114 = scmp.ne.s32.totalorder %s109, %s111
      %p115 = scmp.eq.s32.totalorder %s14, 0
      %p116 = por %p114, %p115
      %p117 = scmp.ne.s32.totalorder %s109, %s111
      %p118 = scmp.eq.s32.totalorder %s19, 3
      %p119 = por %p117, %p118
      %p120 = scmp.ne.s32.totalorder %s111, %s112
      %p121 = scmp.eq.s32.totalorder %s19, 0
      %p122 = por %p120, %p121
      %p123 = scmp.ne.s32.totalorder %s111, %s112
      %p124 = scmp.eq.s32.totalorder %s20, 3
      %p125 = por %p123, %p124
      %p127 = scmp.ne.s32.totalorder %s112, %s126
      %p128 = scmp.eq.s32.totalorder %s20, 0
      %p129 = por %p127, %p128
      %s131 = sadd.s32 %s130, 1
      %p134 = scmp.eq.s32.totalorder %s14, 3
      %p135 = scmp.ne.s32.totalorder %s130, %s132
      %p136 = scmp.eq.s32.totalorder %s14, 0
      %p137 = por %p135, %p136
      %p138 = scmp.ne.s32.totalorder %s130, %s132
      %p139 = scmp.eq.s32.totalorder %s19, 3
      %p140 = por %p138, %p139
      %p141 = scmp.ne.s32.totalorder %s132, %s133
      %p142 = scmp.eq.s32.totalorder %s19, 0
      %p143 = por %p141, %p142
      %p144 = scmp.ne.s32.totalorder %s132, %s133
      %p145 = scmp.eq.s32.totalorder %s20, 3
      %p146 = por %p144, %p145
      %p148 = scmp.ne.s32.totalorder %s133, %s147
      %p149 = scmp.eq.s32.totalorder %s20, 0
      %p150 = por %p148, %p149
      %s152 = sadd.s32 %s151, 1
      %p155 = scmp.eq.s32.totalorder %s14, 3
      %p156 = scmp.ne.s32.totalorder %s151, %s153
      %p157 = scmp.eq.s32.totalorder %s14, 0
      %p158 = por %p156, %p157
      %p159 = scmp.ne.s32.totalorder %s151, %s153
      %p160 = scmp.eq.s32.totalorder %s19, 3
      %p161 = por %p159, %p160
      %p162 = scmp.ne.s32.totalorder %s153, %s154
      %p163 = scmp.eq.s32.totalorder %s19, 0
      %p164 = por %p162, %p163
      %p165 = scmp.ne.s32.totalorder %s153, %s154
      %p166 = scmp.eq.s32.totalorder %s20, 3
      %p167 = por %p165, %p166
      %p169 = scmp.ne.s32.totalorder %s154, %s168
      %p170 = scmp.eq.s32.totalorder %s20, 0
      %p171 = por %p169, %p170
      %s172 = ssub.s32 %s21, %s33
      %p173 = scmp.eq.s32.totalorder %s172, 0
      %s175 = sadd.s32 %s174, 1
      %s176 = scalar_select %p173, %s174, %s175
      %p179 = pneg %p173
      %p180 = scmp.eq.s32.totalorder %s14, 3
      %p181 = por %p179, %p180
      %p182 = scmp.ne.s32.totalorder %s174, %s177
      %p183 = scmp.eq.s32.totalorder %s14, 0
      %p184 = por %p182, %p183
      %p185 = scmp.ne.s32.totalorder %s174, %s177
      %p186 = scmp.eq.s32.totalorder %s19, 3
      %p187 = por %p185, %p186
      %p188 = scmp.ne.s32.totalorder %s177, %s178
      %p189 = scmp.eq.s32.totalorder %s19, 0
      %p190 = por %p188, %p189
      %p191 = scmp.ne.s32.totalorder %s177, %s178
      %p192 = scmp.eq.s32.totalorder %s20, 3
      %p193 = por %p191, %p192
      %p195 = scmp.ne.s32.totalorder %s178, %s194
      %p196 = scmp.eq.s32.totalorder %s20, 0
      %p197 = por %p195, %p196
      %s198 = ssub.s32 %s21, %s33
      %p199 = scmp.eq.s32.totalorder %s198, 0
      %s201 = sadd.s32 %s200, 1
      %s202 = scalar_select %p199, %s200, %s201
      %p205 = pneg %p199
      %p206 = scmp.eq.s32.totalorder %s14, 3
      %p207 = por %p205, %p206
      %p208 = scmp.ne.s32.totalorder %s200, %s203
      %p209 = scmp.eq.s32.totalorder %s14, 0
      %p210 = por %p208, %p209
      %p211 = scmp.ne.s32.totalorder %s200, %s203
      %p212 = scmp.eq.s32.totalorder %s19, 3
      %p213 = por %p211, %p212
      %p214 = scmp.ne.s32.totalorder %s203, %s204
      %p215 = scmp.eq.s32.totalorder %s19, 0
      %p216 = por %p214, %p215
      %p217 = scmp.ne.s32.totalorder %s203, %s204
      %p218 = scmp.eq.s32.totalorder %s20, 3
      %p219 = por %p217, %p218
      %p221 = scmp.ne.s32.totalorder %s204, %s220
      %p222 = scmp.eq.s32.totalorder %s20, 0
      %p223 = por %p221, %p222
      %p224 = scmp.le.s32.totalorder 1, %s14
      %p225 = scmp.lt.s32.totalorder %s14, 5
      %p226 = pnand %p224, %p225
      %p227 = pneg %p226
      // Predicated region
      $region9: #{graphsage_forward.2} parent=5 // pred_check
        _
      $region10: #{graphsage_forward.2} parent=5 // pred_check_branch
        %229 = sbr.rel (%p226) target = $region12
      $region11: #{graphsage_forward.2} parent=5 // pred_region
        %s230 = ssub.s32 %s14, 1
        // Predicated region
        $region13: #{graphsage_forward.2} parent=11 // pred_check
          %p231 = pneg %p75
        $region14: #{graphsage_forward.2} parent=11 // pred_check_branch
          %233 = sbr.rel (%p231) target = $region16
        $region15: #{graphsage_forward.2} parent=11 // pred_region
          _
        $region16: #{graphsage_forward.2} parent=11 // pred_fallthru
          _
        // Predicated region
        $region17: #{graphsage_forward.2} parent=11 // pred_check
          %p234 = pneg %p122
        $region18: #{graphsage_forward.2} parent=11 // pred_check_branch
          %236 = sbr.rel (%p234) target = $region20
        $region19: #{graphsage_forward.2} parent=11 // pred_region
          _
        $region20: #{graphsage_forward.2} parent=11 // pred_fallthru
          _
        // Predicated region
        $region21: #{graphsage_forward.2} parent=11 // pred_check
          %p237 = pneg %p143
        $region22: #{graphsage_forward.2} parent=11 // pred_check_branch
          %239 = sbr.rel (%p237) target = $region24
        $region23: #{graphsage_forward.2} parent=11 // pred_region
          _
        $region24: #{graphsage_forward.2} parent=11 // pred_fallthru
          _
        // Predicated region
        $region25: #{graphsage_forward.2} parent=11 // pred_check
          %p240 = pneg %p164
        $region26: #{graphsage_forward.2} parent=11 // pred_check_branch
          %242 = sbr.rel (%p240) target = $region28
        $region27: #{graphsage_forward.2} parent=11 // pred_region
          _
        $region28: #{graphsage_forward.2} parent=11 // pred_fallthru
          _
      $region12: #{graphsage_forward.2} parent=5 // pred_fallthru
        _
      %p243 = scmp.lt.s32.totalorder %s14, 4
      // Predicated region
      $region29: #{graphsage_forward.2} parent=5 // pred_check
        %p244 = pneg %p243
      $region30: #{graphsage_forward.2} parent=5 // pred_check_branch
        %246 = sbr.rel (%p244) target = $region32
      $region31: #{graphsage_forward.2} parent=5 // pred_region
        // Predicated region
        $region33: #{graphsage_forward.2} parent=31 // pred_check
          %p247 = pneg %p48
        $region34: #{graphsage_forward.2} parent=31 // pred_check_branch
          %249 = sbr.rel (%p247) target = $region36
        $region35: #{graphsage_forward.2} parent=31 // pred_region
          %s250 = sand.u32 %s38, 1
          %s251 = sand.u32 %s38, 1
          %s252 = smul.addr %s251, 64
          %s253 = scalar_lea.vmem [#allocation3], %s252
          %s254 = smul.u32 16, %s21
          %s255 = smul.addr %s254, 2
          %s256 = sadd.s32 %s22, %s255
          %s257 = smul.addr %s256, 4
          %s258 = scalar_lea.vmem %s0, %s257
          // Predicated region
          $region37: #{graphsage_forward.2} parent=35 // pred_check
            _
          $region38: #{graphsage_forward.2} parent=35 // pred_check_branch
            %260 = sbr.rel (0) target = $region40
          $region39: #{graphsage_forward.2} parent=35 // pred_region
            // Predicated region
            $region41: #{graphsage_forward.2} parent=39 // pred_check
              _
            $region42: #{graphsage_forward.2} parent=39 // pred_check_branch
              %262 = sbr.rel target = $region44
            $region43: #{graphsage_forward.2} parent=39 // pred_region
              // Predicated region
              $region56: #{graphsage_forward.2} parent=43 // pred_check
                _
              $region57: #{graphsage_forward.2} parent=43 // pred_check_branch
                %308 = sbr.rel (0) target = $region59
              $region58: #{graphsage_forward.2} parent=43 // pred_region
                loop: start=0, step=1, limit=1
                $region60: #{graphsage_forward.2} parent=58 // loop_pre_header
                  _
                $region61: #{graphsage_forward.2} parent=58 // loop_header
                  %s310 = sphi 0, %s314
                  %p311 = scmp.ge.s32.totalorder %s310, 1
                  %s315 = sphi %s258, %s258
                  %s316 = sphi %s253, %s253
                $region62: #{graphsage_forward.2} parent=58 // loop_header_branch
                  %313 = sbr.rel (%p311) target = $region66
                $region63: #{graphsage_forward.2} parent=58 // loop_body
                  _
                $region64: #{graphsage_forward.2} parent=58 // loop_footer
                  %s314 = sadd.s32 1, %s310
                $region65: #{graphsage_forward.2} parent=58 // loop_footer_branch
                  %309 = sbr.rel target = $region61
                $region66: #{graphsage_forward.2} parent=58 // loop_exit
                  _
                %s318 = ssub.s32 16, 1
                loop: start=0, step=1, limit=1
                $region67: #{graphsage_forward.2} parent=58 // loop_pre_header
                  _
                $region68: #{graphsage_forward.2} parent=58 // loop_header
                  %s320 = sphi 0, %s324
                  %p321 = scmp.ge.s32.totalorder %s320, 1
                  %s325 = sphi %s258, %s258
                  %s326 = sphi %s253, %s253
                $region69: #{graphsage_forward.2} parent=58 // loop_header_branch
                  %323 = sbr.rel (%p321) target = $region73
                $region70: #{graphsage_forward.2} parent=58 // loop_body
                  %v327 = vld [vmem:[%s325] sm:%s318]
                  %328 = vst [vmem:[%s326] sm:%s318] %v327
                  %v329 = vld [vmem:[%s325 + $0x8] sm:%s318]
                  %330 = vst [vmem:[%s326 + $0x4] sm:%s318] %v329
                  %v331 = vld [vmem:[%s325 + $0x10] sm:%s318]
                  %332 = vst [vmem:[%s326 + $0x8] sm:%s318] %v331
                  %v333 = vld [vmem:[%s325 + $0x18] sm:%s318]
                  %334 = vst [vmem:[%s326 + $0xc] sm:%s318] %v333
                  %v335 = vld [vmem:[%s325 + $0x20] sm:%s318]
                  %336 = vst [vmem:[%s326 + $0x10] sm:%s318] %v335
                  %v337 = vld [vmem:[%s325 + $0x28] sm:%s318]
                  %338 = vst [vmem:[%s326 + $0x14] sm:%s318] %v337
                  %v339 = vld [vmem:[%s325 + $0x30] sm:%s318]
                  %340 = vst [vmem:[%s326 + $0x18] sm:%s318] %v339
                  %v341 = vld [vmem:[%s325 + $0x38] sm:%s318]
                  %342 = vst [vmem:[%s326 + $0x1c] sm:%s318] %v341
                  %v343 = vld [vmem:[%s325 + $0x40] sm:%s318]
                  %344 = vst [vmem:[%s326 + $0x20] sm:%s318] %v343
                  %v345 = vld [vmem:[%s325 + $0x48] sm:%s318]
                  %346 = vst [vmem:[%s326 + $0x24] sm:%s318] %v345
                  %v347 = vld [vmem:[%s325 + $0x50] sm:%s318]
                  %348 = vst [vmem:[%s326 + $0x28] sm:%s318] %v347
                  %v349 = vld [vmem:[%s325 + $0x58] sm:%s318]
                  %350 = vst [vmem:[%s326 + $0x2c] sm:%s318] %v349
                  %v351 = vld [vmem:[%s325 + $0x60] sm:%s318]
                  %352 = vst [vmem:[%s326 + $0x30] sm:%s318] %v351
                  %v353 = vld [vmem:[%s325 + $0x68] sm:%s318]
                  %354 = vst [vmem:[%s326 + $0x34] sm:%s318] %v353
                  %v355 = vld [vmem:[%s325 + $0x70] sm:%s318]
                  %356 = vst [vmem:[%s326 + $0x38] sm:%s318] %v355
                  %v357 = vld [vmem:[%s325 + $0x78] sm:%s318]
                  %358 = vst [vmem:[%s326 + $0x3c] sm:%s318] %v357
                $region71: #{graphsage_forward.2} parent=58 // loop_footer
                  %s324 = sadd.s32 1, %s320
                $region72: #{graphsage_forward.2} parent=58 // loop_footer_branch
                  %319 = sbr.rel target = $region68
                $region73: #{graphsage_forward.2} parent=58 // loop_exit
                  _
              $region59: #{graphsage_forward.2} parent=43 // pred_fallthru
                _
            $region44: #{graphsage_forward.2} parent=39 // pred_fallthru
              _
            // Predicated region
            $region45: #{graphsage_forward.2} parent=39 // pred_check
              _
            $region46: #{graphsage_forward.2} parent=39 // pred_check_branch
              %264 = sbr.rel (0) target = $region48
            $region47: #{graphsage_forward.2} parent=39 // pred_region
              %s266 = ssub.s32 16, 1
              loop: start=0, step=1, limit=1
              $region49: #{graphsage_forward.2} parent=47 // loop_pre_header
                _
              $region50: #{graphsage_forward.2} parent=47 // loop_header
                %s268 = sphi 0, %s272
                %p269 = scmp.ge.s32.totalorder %s268, 1
                %s273 = sphi %s258, %s258
                %s274 = sphi %s253, %s253
              $region51: #{graphsage_forward.2} parent=47 // loop_header_branch
                %271 = sbr.rel (%p269) target = $region55
              $region52: #{graphsage_forward.2} parent=47 // loop_body
                %v275 = vld [vmem:[%s273] sm:%s266]
                %276 = vst [vmem:[%s274] sm:%s266] %v275
                %v277 = vld [vmem:[%s273 + $0x8] sm:%s266]
                %278 = vst [vmem:[%s274 + $0x4] sm:%s266] %v277
                %v279 = vld [vmem:[%s273 + $0x10] sm:%s266]
                %280 = vst [vmem:[%s274 + $0x8] sm:%s266] %v279
                %v281 = vld [vmem:[%s273 + $0x18] sm:%s266]
                %282 = vst [vmem:[%s274 + $0xc] sm:%s266] %v281
                %v283 = vld [vmem:[%s273 + $0x20] sm:%s266]
                %284 = vst [vmem:[%s274 + $0x10] sm:%s266] %v283
                %v285 = vld [vmem:[%s273 + $0x28] sm:%s266]
                %286 = vst [vmem:[%s274 + $0x14] sm:%s266] %v285
                %v287 = vld [vmem:[%s273 + $0x30] sm:%s266]
                %288 = vst [vmem:[%s274 + $0x18] sm:%s266] %v287
                %v289 = vld [vmem:[%s273 + $0x38] sm:%s266]
                %290 = vst [vmem:[%s274 + $0x1c] sm:%s266] %v289
                %v291 = vld [vmem:[%s273 + $0x40] sm:%s266]
                %292 = vst [vmem:[%s274 + $0x20] sm:%s266] %v291
                %v293 = vld [vmem:[%s273 + $0x48] sm:%s266]
                %294 = vst [vmem:[%s274 + $0x24] sm:%s266] %v293
                %v295 = vld [vmem:[%s273 + $0x50] sm:%s266]
                %296 = vst [vmem:[%s274 + $0x28] sm:%s266] %v295
                %v297 = vld [vmem:[%s273 + $0x58] sm:%s266]
                %298 = vst [vmem:[%s274 + $0x2c] sm:%s266] %v297
                %v299 = vld [vmem:[%s273 + $0x60] sm:%s266]
                %300 = vst [vmem:[%s274 + $0x30] sm:%s266] %v299
                %v301 = vld [vmem:[%s273 + $0x68] sm:%s266]
                %302 = vst [vmem:[%s274 + $0x34] sm:%s266] %v301
                %v303 = vld [vmem:[%s273 + $0x70] sm:%s266]
                %304 = vst [vmem:[%s274 + $0x38] sm:%s266] %v303
                %v305 = vld [vmem:[%s273 + $0x78] sm:%s266]
                %306 = vst [vmem:[%s274 + $0x3c] sm:%s266] %v305
              $region53: #{graphsage_forward.2} parent=47 // loop_footer
                %s272 = sadd.s32 1, %s268
              $region54: #{graphsage_forward.2} parent=47 // loop_footer_branch
                %267 = sbr.rel target = $region50
              $region55: #{graphsage_forward.2} parent=47 // loop_exit
                _
            $region48: #{graphsage_forward.2} parent=39 // pred_fallthru
              _
          $region40: #{graphsage_forward.2} parent=35 // pred_fallthru
            _
          %359 = vnop
        $region36: #{graphsage_forward.2} parent=31 // pred_fallthru
          _
        // Predicated region
        $region74: #{graphsage_forward.2} parent=31 // pred_check
          %p360 = pneg %p95
        $region75: #{graphsage_forward.2} parent=31 // pred_check_branch
          %362 = sbr.rel (%p360) target = $region77
        $region76: #{graphsage_forward.2} parent=31 // pred_region
          %s363 = smul.u32 16, %s21
          %p364 = scmp.lt.s32.totalorder %s363, 31
          %s365 = scalar_select %p364, %s363, 31
          %s366 = smul.addr %s365, 8
          %s367 = scalar_lea.vmem %s2, %s366
          %s368 = smul.u32 16, %s21
        $region77: #{graphsage_forward.2} parent=31 // pred_fallthru
          _
      $region32: #{graphsage_forward.2} parent=5 // pred_fallthru
        _
      %p369 = scmp.le.s32.totalorder 1, %s14
      %p370 = scmp.lt.s32.totalorder %s14, 5
      %p371 = pnand %p369, %p370
      %p372 = pneg %p371
      // Predicated region
      $region78: #{graphsage_forward.2} parent=5 // pred_check
        _
      $region79: #{graphsage_forward.2} parent=5 // pred_check_branch
        %374 = sbr.rel (%p371) target = $region81
      $region80: #{graphsage_forward.2} parent=5 // pred_region
        %s375 = ssub.s32 %s14, 1
        %s376 = sand.u32 %s41, 1
        %s377 = sand.u32 %s41, 1
        %s378 = smul.addr %s377, 64
        %s379 = scalar_lea.vmem [#allocation3], %s378
        // Predicated region
        $region82: #{graphsage_forward.2} parent=80 // pred_check
          %p380 = pneg %p54
        $region83: #{graphsage_forward.2} parent=80 // pred_check_branch
          %382 = sbr.rel (%p380) target = $region85
        $region84: #{graphsage_forward.2} parent=80 // pred_region
          _
        $region85: #{graphsage_forward.2} parent=80 // pred_fallthru
          _
        %s383 = sand.u32 %s41, 1
        %s384 = sand.u32 %s41, 1
        %s385 = smul.addr %s384, 64
        %s386 = scalar_lea.vmem [#allocation3], %s385
        %p387 = pneg %p54
        %p388 = pneg %p51
        %p389 = pneg %p75
        %p390 = pneg %p72
        %s391 = smul.u32 16, %s23
        %p392 = scmp.lt.s32.totalorder %s391, 31
        %s393 = scalar_select %p392, %s391, 31
        %s394 = smul.addr %s393, 8
        %s395 = scalar_lea.vmem %s2, %s394
        %p396 = pneg %p101
        %p397 = pneg %p98
        %p398 = pneg %p122
        %p399 = pneg %p119
        %p400 = pneg %p143
        %p401 = pneg %p140
        %p402 = pneg %p164
        %p403 = pneg %p161
        %p404 = pneg %p190
        %p405 = pneg %p187
        %s406 = smul.u32 16, %s23
        %p407 = scmp.lt.s32.totalorder %s406, 31
        %s408 = scalar_select %p407, %s406, 31
        %s409 = smul.addr %s408, 8
        %s410 = scalar_lea.vmem %s6, %s409
        %p411 = pneg %p216
        %p412 = pneg %p213
        %s413 = smul.u32 16, %s23
        %p414 = scmp.lt.s32.totalorder %s413, 31
        %s415 = scalar_select %p414, %s413, 31
        %s416 = smul.addr %s415, 4
        %s417 = scalar_lea.vmem %s7, %s416
        %s418 = smul.u32 16, %s23
        %s419 = smul.u32 16, %s23
        %p420 = scmp.lt.s32.totalorder %s419, 31
        %s421 = scalar_select %p420, %s419, 31
        %s422 = smul.addr %s421, 8
        %s423 = scalar_lea.vmem %s2, %s422
        %s424 = smul.u32 16, %s23
        %s425 = smul.u32 16, %s23
        %p426 = scmp.lt.s32.totalorder %s425, 31
        %s427 = scalar_select %p426, %s425, 31
        %s428 = smul.addr %s427, 8
        %s429 = scalar_lea.vmem %s6, %s428
        %s430 = smul.u32 16, %s23
        %s431 = smul.u32 16, %s23
        %p432 = scmp.lt.s32.totalorder %s431, 31
        %s433 = scalar_select %p432, %s431, 31
        %s434 = smul.addr %s433, 4
        %s435 = scalar_lea.vmem %s7, %s434
        %s436 = smul.u32 16, %s23
        %p438 = scmp.eq.s32.totalorder %s24, 0
        // Predicated region
        $region86: #{graphsage_forward.2} parent=80 // pred_check
          %p439 = pneg %p438
        $region87: #{graphsage_forward.2} parent=80 // pred_check_branch
          %441 = sbr.rel (%p439) target = $region89
        $region88: #{graphsage_forward.2} parent=80 // pred_region
          %442 = vst [vmem:[#allocation2] sm:$0xff] 0.0
          %443 = vst [vmem:[#allocation2 + $0x8] sm:$0xff] 0.0
          %444 = vst [vmem:[#allocation2 + $0x10] sm:$0xff] 0.0
          %445 = vst [vmem:[#allocation2 + $0x18] sm:$0xff] 0.0
          %446 = vst [vmem:[#allocation2 + $0x20] sm:$0xff] 0.0
          %447 = vst [vmem:[#allocation2 + $0x28] sm:$0xff] 0.0
          %448 = vst [vmem:[#allocation2 + $0x30] sm:$0xff] 0.0
          %449 = vst [vmem:[#allocation2 + $0x38] sm:$0xff] 0.0
          %450 = vst [vmem:[#allocation2 + $0x40] sm:$0xff] 0.0
          %451 = vst [vmem:[#allocation2 + $0x48] sm:$0xff] 0.0
          %452 = vst [vmem:[#allocation2 + $0x50] sm:$0xff] 0.0
          %453 = vst [vmem:[#allocation2 + $0x58] sm:$0xff] 0.0
          %454 = vst [vmem:[#allocation2 + $0x60] sm:$0xff] 0.0
          %455 = vst [vmem:[#allocation2 + $0x68] sm:$0xff] 0.0
          %456 = vst [vmem:[#allocation2 + $0x70] sm:$0xff] 0.0
          %457 = vst [vmem:[#allocation2 + $0x78] sm:$0xff] 0.0
        $region89: #{graphsage_forward.2} parent=80 // pred_fallthru
          _
        %s458 = smul.u32 %s24, 128
        %v459 = vld [vmem:[#allocation2] sm:$0xff]
        %v460 = vld [vmem:[#allocation2 + $0x8] sm:$0xff]
        %v461 = vld [vmem:[#allocation2 + $0x10] sm:$0xff]
        %v462 = vld [vmem:[#allocation2 + $0x18] sm:$0xff]
        %v463 = vld [vmem:[#allocation2 + $0x20] sm:$0xff]
        %v464 = vld [vmem:[#allocation2 + $0x28] sm:$0xff]
        %v465 = vld [vmem:[#allocation2 + $0x30] sm:$0xff]
        %v466 = vld [vmem:[#allocation2 + $0x38] sm:$0xff]
        %v467 = vld [vmem:[#allocation2 + $0x40] sm:$0xff]
        %v468 = vld [vmem:[#allocation2 + $0x48] sm:$0xff]
        %v469 = vld [vmem:[#allocation2 + $0x50] sm:$0xff]
        %v470 = vld [vmem:[#allocation2 + $0x58] sm:$0xff]
        %v471 = vld [vmem:[#allocation2 + $0x60] sm:$0xff]
        %v472 = vld [vmem:[#allocation2 + $0x68] sm:$0xff]
        %v473 = vld [vmem:[#allocation2 + $0x70] sm:$0xff]
        %v474 = vld [vmem:[#allocation2 + $0x78] sm:$0xff]
        %v475 = vld [vmem:[%s379] sm:$0xf]
        %v476 = vld [vmem:[%s379 + $0x4] sm:$0xf]
        %v477 = vld [vmem:[%s379 + $0x8] sm:$0xf]
        %v478 = vld [vmem:[%s379 + $0xc] sm:$0xf]
        %v479 = vld [vmem:[%s379 + $0x10] sm:$0xf]
        %v480 = vld [vmem:[%s379 + $0x14] sm:$0xf]
        %v481 = vld [vmem:[%s379 + $0x18] sm:$0xf]
        %v482 = vld [vmem:[%s379 + $0x1c] sm:$0xf]
        %v483 = vld [vmem:[%s379 + $0x20] sm:$0xf]
        %v484 = vld [vmem:[%s379 + $0x24] sm:$0xf]
        %v485 = vld [vmem:[%s379 + $0x28] sm:$0xf]
        %v486 = vld [vmem:[%s379 + $0x2c] sm:$0xf]
        %v487 = vld [vmem:[%s379 + $0x30] sm:$0xf]
        %v488 = vld [vmem:[%s379 + $0x34] sm:$0xf]
        %v489 = vld [vmem:[%s379 + $0x38] sm:$0xf]
        %v490 = vld [vmem:[%s379 + $0x3c] sm:$0xf]
        %s491 = sshra.s32 %s458, 3
        %s492 = sand.u32 %s458, 7
        %s493 = smul.addr %s491, 4
        %s494 = scalar_lea.vmem %s1, %s493
        %v495 = vld [vmem:[%s494] sm:$0xf]
        %v496 = vld [vmem:[%s494 + $0x4] sm:$0xf]
        %v497 = vld [vmem:[%s494 + $0x8] sm:$0xf]
        %v498 = vld [vmem:[%s494 + $0xc] sm:$0xf]
        %v499 = vld [vmem:[%s494 + $0x10] sm:$0xf]
        %v500 = vld [vmem:[%s494 + $0x14] sm:$0xf]
        %v501 = vld [vmem:[%s494 + $0x18] sm:$0xf]
        %v502 = vld [vmem:[%s494 + $0x1c] sm:$0xf]
        %v503 = vld [vmem:[%s494 + $0x20] sm:$0xf]
        %v504 = vld [vmem:[%s494 + $0x24] sm:$0xf]
        %v505 = vld [vmem:[%s494 + $0x28] sm:$0xf]
        %v506 = vld [vmem:[%s494 + $0x2c] sm:$0xf]
        %v507 = vld [vmem:[%s494 + $0x30] sm:$0xf]
        %v508 = vld [vmem:[%s494 + $0x34] sm:$0xf]
        %v509 = vld [vmem:[%s494 + $0x38] sm:$0xf]
        %v510 = vld [vmem:[%s494 + $0x3c] sm:$0xf]
        %v527 = vunpack.c.l.b16 %v475
        %v528 = vunpack.c.l.b16 %v476
        %v529 = vunpack.c.l.b16 %v477
        %v530 = vunpack.c.l.b16 %v478
        %v531 = vunpack.c.l.b16 %v479
        %v532 = vunpack.c.l.b16 %v480
        %v533 = vunpack.c.l.b16 %v481
        %v534 = vunpack.c.l.b16 %v482
        %v535 = vunpack.c.l.b16 %v483
        %v536 = vunpack.c.l.b16 %v484
        %v537 = vunpack.c.l.b16 %v485
        %v538 = vunpack.c.l.b16 %v486
        %v539 = vunpack.c.l.b16 %v487
        %v540 = vunpack.c.l.b16 %v488
        %v541 = vunpack.c.l.b16 %v489
        %v542 = vunpack.c.l.b16 %v490
        %v543 = vpack.c.b16 %v528, %v527
        %v544 = vpack.c.b16 %v530, %v529
        %v545 = vpack.c.b16 %v532, %v531
        %v546 = vpack.c.b16 %v534, %v533
        %v547 = vpack.c.b16 %v536, %v535
        %v548 = vpack.c.b16 %v538, %v537
        %v549 = vpack.c.b16 %v540, %v539
        %v550 = vpack.c.b16 %v542, %v541
        %v575 = vunpack.c.l.b16 %v495
        %v576 = vunpack.c.l.b16 %v496
        %v577 = vunpack.c.l.b16 %v497
        %v578 = vunpack.c.l.b16 %v498
        %v579 = vunpack.c.l.b16 %v499
        %v580 = vunpack.c.l.b16 %v500
        %v581 = vunpack.c.l.b16 %v501
        %v582 = vunpack.c.l.b16 %v502
        %v583 = vunpack.c.l.b16 %v503
        %v584 = vunpack.c.l.b16 %v504
        %v585 = vunpack.c.l.b16 %v505
        %v586 = vunpack.c.l.b16 %v506
        %v587 = vunpack.c.l.b16 %v507
        %v588 = vunpack.c.l.b16 %v508
        %v589 = vunpack.c.l.b16 %v509
        %v590 = vunpack.c.l.b16 %v510
        %v591 = vpack.c.b16 %v576, %v575
        %v592 = vpack.c.b16 %v578, %v577
        %v593 = vpack.c.b16 %v580, %v579
        %v594 = vpack.c.b16 %v582, %v581
        %v595 = vpack.c.b16 %v584, %v583
        %v596 = vpack.c.b16 %v586, %v585
        %v597 = vpack.c.b16 %v588, %v587
        %v598 = vpack.c.b16 %v590, %v589
        %607 = vmatprep.subr.bf16.mxu0 0
        %608 = vmatpush1.bf16.msra.mxu0 %v598
        %609 = vmatprep.subr.bf16.mxu0 0
        %610 = vmatpush1.bf16.msra.mxu0 %v597
        %611 = vmatprep.subr.bf16.mxu0 0
        %612 = vmatpush1.bf16.msra.mxu0 %v596
        %613 = vmatprep.subr.bf16.mxu0 0
        %614 = vmatpush1.bf16.msra.mxu0 %v595
        %615 = vmatprep.subr.bf16.mxu0 0
        %616 = vmatpush1.bf16.msra.mxu0 %v594
        %617 = vmatprep.subr.bf16.mxu0 0
        %618 = vmatpush1.bf16.msra.mxu0 %v593
        %619 = vmatprep.subr.bf16.mxu0 0
        %620 = vmatpush1.bf16.msra.mxu0 %v592
        %621 = vmatprep.subr.bf16.mxu0 0
        %622 = vmatpush1.bf16.msra.mxu0 %v591
        %623 = vmatprep.subr.bf16.mxu0 0
        %624 = vmatpush2.bf16.msra.mxu0 0
        %625 = vmatprep.subr.bf16.mxu0 0
        %626 = vmatpush2.bf16.msra.mxu0 0
        %627 = vmatprep.subr.bf16.mxu0 0
        %628 = vmatpush2.bf16.msra.mxu0 0
        %629 = vmatprep.subr.bf16.mxu0 0
        %630 = vmatpush2.bf16.msra.mxu0 0
        %631 = vmatprep.subr.bf16.mxu0 0
        %632 = vmatpush2.bf16.msra.mxu0 0
        %633 = vmatprep.subr.bf16.mxu0 0
        %634 = vmatpush2.bf16.msra.mxu0 0
        %635 = vmatprep.subr.bf16.mxu0 0
        %636 = vmatpush2.bf16.msra.mxu0 0
        %637 = vmatprep.subr.bf16.mxu0 0
        %638 = vmatpush2.bf16.msra.mxu0 0
        %639 = vmatprep.mubr.bf16.mxu0 0
        %640 = vmatmul.mubr.bf16.gmra.mxu0 %v543
        %v641 = vpop.f32.mrf.mxu0
        %v642 = vadd.f32 0.0, %v641
        %v643 = vpop.f32.mrf.mxu0
        %v644 = vpop.f32.mrf.mxu0
        %v645 = vadd.f32 0.0, %v644
        %v646 = vpop.f32.mrf.mxu0
        %647 = vmatprep.mubr.bf16.mxu0 0
        %648 = vmatmul.mubr.bf16.gmra.mxu0 %v544
        %v649 = vpop.f32.mrf.mxu0
        %v650 = vadd.f32 0.0, %v649
        %v651 = vpop.f32.mrf.mxu0
        %v652 = vpop.f32.mrf.mxu0
        %v653 = vadd.f32 0.0, %v652
        %v654 = vpop.f32.mrf.mxu0
        %655 = vmatprep.mubr.bf16.mxu0 0
        %656 = vmatmul.mubr.bf16.gmra.mxu0 %v545
        %v657 = vpop.f32.mrf.mxu0
        %v658 = vadd.f32 0.0, %v657
        %v659 = vpop.f32.mrf.mxu0
        %v660 = vpop.f32.mrf.mxu0
        %v661 = vadd.f32 0.0, %v660
        %v662 = vpop.f32.mrf.mxu0
        %663 = vmatprep.mubr.bf16.mxu0 0
        %664 = vmatmul.mubr.bf16.gmra.mxu0 %v546
        %v665 = vpop.f32.mrf.mxu0
        %v666 = vadd.f32 0.0, %v665
        %v667 = vpop.f32.mrf.mxu0
        %v668 = vpop.f32.mrf.mxu0
        %v669 = vadd.f32 0.0, %v668
        %v670 = vpop.f32.mrf.mxu0
        %671 = vmatprep.mubr.bf16.mxu0 0
        %672 = vmatmul.mubr.bf16.gmra.mxu0 %v547
        %v673 = vpop.f32.mrf.mxu0
        %v674 = vadd.f32 0.0, %v673
        %v675 = vpop.f32.mrf.mxu0
        %v676 = vpop.f32.mrf.mxu0
        %v677 = vadd.f32 0.0, %v676
        %v678 = vpop.f32.mrf.mxu0
        %679 = vmatprep.mubr.bf16.mxu0 0
        %680 = vmatmul.mubr.bf16.gmra.mxu0 %v548
        %v681 = vpop.f32.mrf.mxu0
        %v682 = vadd.f32 0.0, %v681
        %v683 = vpop.f32.mrf.mxu0
        %v684 = vpop.f32.mrf.mxu0
        %v685 = vadd.f32 0.0, %v684
        %v686 = vpop.f32.mrf.mxu0
        %687 = vmatprep.mubr.bf16.mxu0 0
        %688 = vmatmul.mubr.bf16.gmra.mxu0 %v549
        %v689 = vpop.f32.mrf.mxu0
        %v690 = vadd.f32 0.0, %v689
        %v691 = vpop.f32.mrf.mxu0
        %v692 = vpop.f32.mrf.mxu0
        %v693 = vadd.f32 0.0, %v692
        %v694 = vpop.f32.mrf.mxu0
        %695 = vmatprep.mubr.bf16.mxu0 0
        %696 = vmatmul.mubr.bf16.gmra.mxu0 %v550
        %v697 = vpop.f32.mrf.mxu0
        %v698 = vadd.f32 0.0, %v697
        %v699 = vpop.f32.mrf.mxu0
        %v700 = vpop.f32.mrf.mxu0
        %v701 = vadd.f32 0.0, %v700
        %v702 = vpop.f32.mrf.mxu0
        %703 = vdwg.mxu0
        %v704 = vadd.f32 %v459, %v642
        %v705 = vadd.f32 %v460, %v645
        %v706 = vadd.f32 %v461, %v650
        %v707 = vadd.f32 %v462, %v653
        %v708 = vadd.f32 %v463, %v658
        %v709 = vadd.f32 %v464, %v661
        %v710 = vadd.f32 %v465, %v666
        %v711 = vadd.f32 %v466, %v669
        %v712 = vadd.f32 %v467, %v674
        %v713 = vadd.f32 %v468, %v677
        %v714 = vadd.f32 %v469, %v682
        %v715 = vadd.f32 %v470, %v685
        %v716 = vadd.f32 %v471, %v690
        %v717 = vadd.f32 %v472, %v693
        %v718 = vadd.f32 %v473, %v698
        %v719 = vadd.f32 %v474, %v701
        %720 = vst [vmem:[#allocation2] sm:$0xff] %v704
        %721 = vst [vmem:[#allocation2 + $0x8] sm:$0xff] %v705
        %722 = vst [vmem:[#allocation2 + $0x10] sm:$0xff] %v706
        %723 = vst [vmem:[#allocation2 + $0x18] sm:$0xff] %v707
        %724 = vst [vmem:[#allocation2 + $0x20] sm:$0xff] %v708
        %725 = vst [vmem:[#allocation2 + $0x28] sm:$0xff] %v709
        %726 = vst [vmem:[#allocation2 + $0x30] sm:$0xff] %v710
        %727 = vst [vmem:[#allocation2 + $0x38] sm:$0xff] %v711
        %728 = vst [vmem:[#allocation2 + $0x40] sm:$0xff] %v712
        %729 = vst [vmem:[#allocation2 + $0x48] sm:$0xff] %v713
        %730 = vst [vmem:[#allocation2 + $0x50] sm:$0xff] %v714
        %731 = vst [vmem:[#allocation2 + $0x58] sm:$0xff] %v715
        %732 = vst [vmem:[#allocation2 + $0x60] sm:$0xff] %v716
        %733 = vst [vmem:[#allocation2 + $0x68] sm:$0xff] %v717
        %734 = vst [vmem:[#allocation2 + $0x70] sm:$0xff] %v718
        %735 = vst [vmem:[#allocation2 + $0x78] sm:$0xff] %v719
        %p736 = scmp.eq.s32.totalorder %s24, 1
        // Predicated region
        $region90: #{graphsage_forward.2} parent=80 // pred_check
          %p737 = pneg %p736
        $region91: #{graphsage_forward.2} parent=80 // pred_check_branch
          %739 = sbr.rel (%p737) target = $region93
        $region92: #{graphsage_forward.2} parent=80 // pred_region
          %v740 = vld [vmem:[#allocation2] sm:$0xff]
          %v741 = vld [vmem:[#allocation2 + $0x8] sm:$0xff]
          %v742 = vld [vmem:[#allocation2 + $0x10] sm:$0xff]
          %v743 = vld [vmem:[#allocation2 + $0x18] sm:$0xff]
          %v744 = vld [vmem:[#allocation2 + $0x20] sm:$0xff]
          %v745 = vld [vmem:[#allocation2 + $0x28] sm:$0xff]
          %v746 = vld [vmem:[#allocation2 + $0x30] sm:$0xff]
          %v747 = vld [vmem:[#allocation2 + $0x38] sm:$0xff]
          %v748 = vld [vmem:[#allocation2 + $0x40] sm:$0xff]
          %v749 = vld [vmem:[#allocation2 + $0x48] sm:$0xff]
          %v750 = vld [vmem:[#allocation2 + $0x50] sm:$0xff]
          %v751 = vld [vmem:[#allocation2 + $0x58] sm:$0xff]
          %v752 = vld [vmem:[#allocation2 + $0x60] sm:$0xff]
          %v753 = vld [vmem:[#allocation2 + $0x68] sm:$0xff]
          %v754 = vld [vmem:[#allocation2 + $0x70] sm:$0xff]
          %v755 = vld [vmem:[#allocation2 + $0x78] sm:$0xff]
          %v756 = vld [vmem:[%s423] sm:$0xff]
          %v757 = vld [vmem:[%s423 + $0x8] sm:$0xff]
          %v758 = vld [vmem:[%s423 + $0x10] sm:$0xff]
          %v759 = vld [vmem:[%s423 + $0x18] sm:$0xff]
          %v760 = vld [vmem:[%s423 + $0x20] sm:$0xff]
          %v761 = vld [vmem:[%s423 + $0x28] sm:$0xff]
          %v762 = vld [vmem:[%s423 + $0x30] sm:$0xff]
          %v763 = vld [vmem:[%s423 + $0x38] sm:$0xff]
          %v764 = vld [vmem:[%s423 + $0x40] sm:$0xff]
          %v765 = vld [vmem:[%s423 + $0x48] sm:$0xff]
          %v766 = vld [vmem:[%s423 + $0x50] sm:$0xff]
          %v767 = vld [vmem:[%s423 + $0x58] sm:$0xff]
          %v768 = vld [vmem:[%s423 + $0x60] sm:$0xff]
          %v769 = vld [vmem:[%s423 + $0x68] sm:$0xff]
          %v770 = vld [vmem:[%s423 + $0x70] sm:$0xff]
          %v771 = vld [vmem:[%s423 + $0x78] sm:$0xff]
          %773 = vset.pattern.permute.xlu0 0
          %774 = vperm.xlu0 %773, %v756
          %v775 = vpop.permute.xlu0 %774
          %778 = vset.pattern.permute.xlu0 0
          %779 = vperm.xlu0 %778, %v757
          %v780 = vpop.permute.xlu0 %779
          %783 = vset.pattern.permute.xlu0 0
          %784 = vperm.xlu0 %783, %v758
          %v785 = vpop.permute.xlu0 %784
          %788 = vset.pattern.permute.xlu0 0
          %789 = vperm.xlu0 %788, %v759
          %v790 = vpop.permute.xlu0 %789
          %793 = vset.pattern.permute.xlu0 0
          %794 = vperm.xlu0 %793, %v760
          %v795 = vpop.permute.xlu0 %794
          %798 = vset.pattern.permute.xlu0 0
          %799 = vperm.xlu0 %798, %v761
          %v800 = vpop.permute.xlu0 %799
          %803 = vset.pattern.permute.xlu0 0
          %804 = vperm.xlu0 %803, %v762
          %v805 = vpop.permute.xlu0 %804
          %808 = vset.pattern.permute.xlu0 0
          %809 = vperm.xlu0 %808, %v763
          %v810 = vpop.permute.xlu0 %809
          %813 = vset.pattern.permute.xlu0 0
          %814 = vperm.xlu0 %813, %v764
          %v815 = vpop.permute.xlu0 %814
          %818 = vset.pattern.permute.xlu0 0
          %819 = vperm.xlu0 %818, %v765
          %v820 = vpop.permute.xlu0 %819
          %823 = vset.pattern.permute.xlu0 0
          %824 = vperm.xlu0 %823, %v766
          %v825 = vpop.permute.xlu0 %824
          %828 = vset.pattern.permute.xlu0 0
          %829 = vperm.xlu0 %828, %v767
          %v830 = vpop.permute.xlu0 %829
          %833 = vset.pattern.permute.xlu0 0
          %834 = vperm.xlu0 %833, %v768
          %v835 = vpop.permute.xlu0 %834
          %838 = vset.pattern.permute.xlu0 0
          %839 = vperm.xlu0 %838, %v769
          %v840 = vpop.permute.xlu0 %839
          %843 = vset.pattern.permute.xlu0 0
          %844 = vperm.xlu0 %843, %v770
          %v845 = vpop.permute.xlu0 %844
          %848 = vset.pattern.permute.xlu0 0
          %849 = vperm.xlu0 %848, %v771
          %v850 = vpop.permute.xlu0 %849
          %v852 = vmul.f32 %v740, %v775
          %v853 = vmul.f32 %v741, %v780
          %v854 = vmul.f32 %v742, %v785
          %v855 = vmul.f32 %v743, %v790
          %v856 = vmul.f32 %v744, %v795
          %v857 = vmul.f32 %v745, %v800
          %v858 = vmul.f32 %v746, %v805
          %v859 = vmul.f32 %v747, %v810
          %v860 = vmul.f32 %v748, %v815
          %v861 = vmul.f32 %v749, %v820
          %v862 = vmul.f32 %v750, %v825
          %v863 = vmul.f32 %v751, %v830
          %v864 = vmul.f32 %v752, %v835
          %v865 = vmul.f32 %v753, %v840
          %v866 = vmul.f32 %v754, %v845
          %v867 = vmul.f32 %v755, %v850
          %v868 = vpack.c.bf16 %v853, %v852
          %v869 = vpack.c.bf16 %v855, %v854
          %v870 = vpack.c.bf16 %v857, %v856
          %v871 = vpack.c.bf16 %v859, %v858
          %v872 = vpack.c.bf16 %v861, %v860
          %v873 = vpack.c.bf16 %v863, %v862
          %v874 = vpack.c.bf16 %v865, %v864
          %v875 = vpack.c.bf16 %v867, %v866
          %s876 = smul.u32 %s23, 128
          %s877 = sshra.s32 %s876, 3
          %s878 = sand.u32 %s876, 7
          %s879 = smul.addr %s877, 4
          %s880 = scalar_lea.vmem %s1, %s879
          %v881 = vld [vmem:[%s880] sm:$0xf]
          %v882 = vld [vmem:[%s880 + $0x4] sm:$0xf]
          %v883 = vld [vmem:[%s880 + $0x8] sm:$0xf]
          %v884 = vld [vmem:[%s880 + $0xc] sm:$0xf]
          %v885 = vld [vmem:[%s880 + $0x10] sm:$0xf]
          %v886 = vld [vmem:[%s880 + $0x14] sm:$0xf]
          %v887 = vld [vmem:[%s880 + $0x18] sm:$0xf]
          %v888 = vld [vmem:[%s880 + $0x1c] sm:$0xf]
          %v889 = vld [vmem:[%s880 + $0x20] sm:$0xf]
          %v890 = vld [vmem:[%s880 + $0x24] sm:$0xf]
          %v891 = vld [vmem:[%s880 + $0x28] sm:$0xf]
          %v892 = vld [vmem:[%s880 + $0x2c] sm:$0xf]
          %v893 = vld [vmem:[%s880 + $0x30] sm:$0xf]
          %v894 = vld [vmem:[%s880 + $0x34] sm:$0xf]
          %v895 = vld [vmem:[%s880 + $0x38] sm:$0xf]
          %v896 = vld [vmem:[%s880 + $0x3c] sm:$0xf]
          %v897 = vld [vmem:[%s4] sm:$0xf]
          %v898 = vld [vmem:[%s4 + $0x4] sm:$0xf]
          %v899 = vld [vmem:[%s4 + $0x8] sm:$0xf]
          %v900 = vld [vmem:[%s4 + $0xc] sm:$0xf]
          %v901 = vld [vmem:[%s4 + $0x10] sm:$0xf]
          %v902 = vld [vmem:[%s4 + $0x14] sm:$0xf]
          %v903 = vld [vmem:[%s4 + $0x18] sm:$0xf]
          %v904 = vld [vmem:[%s4 + $0x1c] sm:$0xf]
          %v905 = vld [vmem:[%s4 + $0x20] sm:$0xf]
          %v906 = vld [vmem:[%s4 + $0x24] sm:$0xf]
          %v907 = vld [vmem:[%s4 + $0x28] sm:$0xf]
          %v908 = vld [vmem:[%s4 + $0x2c] sm:$0xf]
          %v909 = vld [vmem:[%s4 + $0x30] sm:$0xf]
          %v910 = vld [vmem:[%s4 + $0x34] sm:$0xf]
          %v911 = vld [vmem:[%s4 + $0x38] sm:$0xf]
          %v912 = vld [vmem:[%s4 + $0x3c] sm:$0xf]
          %v913 = vld [vmem:[%s3] sm:$0xf]
          %v914 = vld [vmem:[%s3 + $0x4] sm:$0xf]
          %v915 = vld [vmem:[%s3 + $0x8] sm:$0xf]
          %v916 = vld [vmem:[%s3 + $0xc] sm:$0xf]
          %v917 = vld [vmem:[%s3 + $0x10] sm:$0xf]
          %v918 = vld [vmem:[%s3 + $0x14] sm:$0xf]
          %v919 = vld [vmem:[%s3 + $0x18] sm:$0xf]
          %v920 = vld [vmem:[%s3 + $0x1c] sm:$0xf]
          %v921 = vld [vmem:[%s3 + $0x20] sm:$0xf]
          %v922 = vld [vmem:[%s3 + $0x24] sm:$0xf]
          %v923 = vld [vmem:[%s3 + $0x28] sm:$0xf]
          %v924 = vld [vmem:[%s3 + $0x2c] sm:$0xf]
          %v925 = vld [vmem:[%s3 + $0x30] sm:$0xf]
          %v926 = vld [vmem:[%s3 + $0x34] sm:$0xf]
          %v927 = vld [vmem:[%s3 + $0x38] sm:$0xf]
          %v928 = vld [vmem:[%s3 + $0x3c] sm:$0xf]
          %v945 = vunpack.c.l.b16 %v881
          %v946 = vunpack.c.l.b16 %v882
          %v947 = vunpack.c.l.b16 %v883
          %v948 = vunpack.c.l.b16 %v884
          %v949 = vunpack.c.l.b16 %v885
          %v950 = vunpack.c.l.b16 %v886
          %v951 = vunpack.c.l.b16 %v887
          %v952 = vunpack.c.l.b16 %v888
          %v953 = vunpack.c.l.b16 %v889
          %v954 = vunpack.c.l.b16 %v890
          %v955 = vunpack.c.l.b16 %v891
          %v956 = vunpack.c.l.b16 %v892
          %v957 = vunpack.c.l.b16 %v893
          %v958 = vunpack.c.l.b16 %v894
          %v959 = vunpack.c.l.b16 %v895
          %v960 = vunpack.c.l.b16 %v896
          %v961 = vpack.c.b16 %v946, %v945
          %v962 = vpack.c.b16 %v948, %v947
          %v963 = vpack.c.b16 %v950, %v949
          %v964 = vpack.c.b16 %v952, %v951
          %v965 = vpack.c.b16 %v954, %v953
          %v966 = vpack.c.b16 %v956, %v955
          %v967 = vpack.c.b16 %v958, %v957
          %v968 = vpack.c.b16 %v960, %v959
          %v993 = vunpack.c.l.b16 %v913
          %v994 = vunpack.c.l.b16 %v914
          %v995 = vunpack.c.l.b16 %v915
          %v996 = vunpack.c.l.b16 %v916
          %v997 = vunpack.c.l.b16 %v917
          %v998 = vunpack.c.l.b16 %v918
          %v999 = vunpack.c.l.b16 %v919
          %v1000 = vunpack.c.l.b16 %v920
          %v1001 = vunpack.c.l.b16 %v921
          %v1002 = vunpack.c.l.b16 %v922
          %v1003 = vunpack.c.l.b16 %v923
          %v1004 = vunpack.c.l.b16 %v924
          %v1005 = vunpack.c.l.b16 %v925
          %v1006 = vunpack.c.l.b16 %v926
          %v1007 = vunpack.c.l.b16 %v927
          %v1008 = vunpack.c.l.b16 %v928
          %v1009 = vpack.c.b16 %v994, %v993
          %v1010 = vpack.c.b16 %v996, %v995
          %v1011 = vpack.c.b16 %v998, %v997
          %v1012 = vpack.c.b16 %v1000, %v999
          %v1013 = vpack.c.b16 %v1002, %v1001
          %v1014 = vpack.c.b16 %v1004, %v1003
          %v1015 = vpack.c.b16 %v1006, %v1005
          %v1016 = vpack.c.b16 %v1008, %v1007
          %1025 = vmatprep.subr.bf16.mxu0 0
          %1026 = vmatpush1.bf16.msra.mxu0 %v1016
          %1027 = vmatprep.subr.bf16.mxu0 0
          %1028 = vmatpush1.bf16.msra.mxu0 %v1015
          %1029 = vmatprep.subr.bf16.mxu0 0
          %1030 = vmatpush1.bf16.msra.mxu0 %v1014
          %1031 = vmatprep.subr.bf16.mxu0 0
          %1032 = vmatpush1.bf16.msra.mxu0 %v1013
          %1033 = vmatprep.subr.bf16.mxu0 0
          %1034 = vmatpush1.bf16.msra.mxu0 %v1012
          %1035 = vmatprep.subr.bf16.mxu0 0
          %1036 = vmatpush1.bf16.msra.mxu0 %v1011
          %1037 = vmatprep.subr.bf16.mxu0 0
          %1038 = vmatpush1.bf16.msra.mxu0 %v1010
          %1039 = vmatprep.subr.bf16.mxu0 0
          %1040 = vmatpush1.bf16.msra.mxu0 %v1009
          %1041 = vmatprep.subr.bf16.mxu0 0
          %1042 = vmatpush2.bf16.msra.mxu0 0
          %1043 = vmatprep.subr.bf16.mxu0 0
          %1044 = vmatpush2.bf16.msra.mxu0 0
          %1045 = vmatprep.subr.bf16.mxu0 0
          %1046 = vmatpush2.bf16.msra.mxu0 0
          %1047 = vmatprep.subr.bf16.mxu0 0
          %1048 = vmatpush2.bf16.msra.mxu0 0
          %1049 = vmatprep.subr.bf16.mxu0 0
          %1050 = vmatpush2.bf16.msra.mxu0 0
          %1051 = vmatprep.subr.bf16.mxu0 0
          %1052 = vmatpush2.bf16.msra.mxu0 0
          %1053 = vmatprep.subr.bf16.mxu0 0
          %1054 = vmatpush2.bf16.msra.mxu0 0
          %1055 = vmatprep.subr.bf16.mxu0 0
          %1056 = vmatpush2.bf16.msra.mxu0 0
          %1057 = vmatprep.mubr.bf16.mxu0 0
          %1058 = vmatmul.mubr.bf16.gmra.mxu0 %v961
          %v1059 = vpop.f32.mrf.mxu0
          %v1060 = vadd.f32 0.0, %v1059
          %v1061 = vpop.f32.mrf.mxu0
          %v1062 = vpop.f32.mrf.mxu0
          %v1063 = vadd.f32 0.0, %v1062
          %v1064 = vpop.f32.mrf.mxu0
          %1065 = vmatprep.mubr.bf16.mxu0 0
          %1066 = vmatmul.mubr.bf16.gmra.mxu0 %v962
          %v1067 = vpop.f32.mrf.mxu0
          %v1068 = vadd.f32 0.0, %v1067
          %v1069 = vpop.f32.mrf.mxu0
          %v1070 = vpop.f32.mrf.mxu0
          %v1071 = vadd.f32 0.0, %v1070
          %v1072 = vpop.f32.mrf.mxu0
          %1073 = vmatprep.mubr.bf16.mxu0 0
          %1074 = vmatmul.mubr.bf16.gmra.mxu0 %v963
          %v1075 = vpop.f32.mrf.mxu0
          %v1076 = vadd.f32 0.0, %v1075
          %v1077 = vpop.f32.mrf.mxu0
          %v1078 = vpop.f32.mrf.mxu0
          %v1079 = vadd.f32 0.0, %v1078
          %v1080 = vpop.f32.mrf.mxu0
          %1081 = vmatprep.mubr.bf16.mxu0 0
          %1082 = vmatmul.mubr.bf16.gmra.mxu0 %v964
          %v1083 = vpop.f32.mrf.mxu0
          %v1084 = vadd.f32 0.0, %v1083
          %v1085 = vpop.f32.mrf.mxu0
          %v1086 = vpop.f32.mrf.mxu0
          %v1087 = vadd.f32 0.0, %v1086
          %v1088 = vpop.f32.mrf.mxu0
          %1089 = vmatprep.mubr.bf16.mxu0 0
          %1090 = vmatmul.mubr.bf16.gmra.mxu0 %v965
          %v1091 = vpop.f32.mrf.mxu0
          %v1092 = vadd.f32 0.0, %v1091
          %v1093 = vpop.f32.mrf.mxu0
          %v1094 = vpop.f32.mrf.mxu0
          %v1095 = vadd.f32 0.0, %v1094
          %v1096 = vpop.f32.mrf.mxu0
          %1097 = vmatprep.mubr.bf16.mxu0 0
          %1098 = vmatmul.mubr.bf16.gmra.mxu0 %v966
          %v1099 = vpop.f32.mrf.mxu0
          %v1100 = vadd.f32 0.0, %v1099
          %v1101 = vpop.f32.mrf.mxu0
          %v1102 = vpop.f32.mrf.mxu0
          %v1103 = vadd.f32 0.0, %v1102
          %v1104 = vpop.f32.mrf.mxu0
          %1105 = vmatprep.mubr.bf16.mxu0 0
          %1106 = vmatmul.mubr.bf16.gmra.mxu0 %v967
          %v1107 = vpop.f32.mrf.mxu0
          %v1108 = vadd.f32 0.0, %v1107
          %v1109 = vpop.f32.mrf.mxu0
          %v1110 = vpop.f32.mrf.mxu0
          %v1111 = vadd.f32 0.0, %v1110
          %v1112 = vpop.f32.mrf.mxu0
          %1113 = vmatprep.mubr.bf16.mxu0 0
          %1114 = vmatmul.mubr.bf16.gmra.mxu0 %v968
          %v1115 = vpop.f32.mrf.mxu0
          %v1116 = vadd.f32 0.0, %v1115
          %v1117 = vpop.f32.mrf.mxu0
          %v1118 = vpop.f32.mrf.mxu0
          %v1119 = vadd.f32 0.0, %v1118
          %v1120 = vpop.f32.mrf.mxu0
          %1121 = vdwg.mxu0
          %v1138 = vunpack.c.l.b16 %v897
          %v1139 = vunpack.c.l.b16 %v898
          %v1140 = vunpack.c.l.b16 %v899
          %v1141 = vunpack.c.l.b16 %v900
          %v1142 = vunpack.c.l.b16 %v901
          %v1143 = vunpack.c.l.b16 %v902
          %v1144 = vunpack.c.l.b16 %v903
          %v1145 = vunpack.c.l.b16 %v904
          %v1146 = vunpack.c.l.b16 %v905
          %v1147 = vunpack.c.l.b16 %v906
          %v1148 = vunpack.c.l.b16 %v907
          %v1149 = vunpack.c.l.b16 %v908
          %v1150 = vunpack.c.l.b16 %v909
          %v1151 = vunpack.c.l.b16 %v910
          %v1152 = vunpack.c.l.b16 %v911
          %v1153 = vunpack.c.l.b16 %v912
          %v1154 = vpack.c.b16 %v1139, %v1138
          %v1155 = vpack.c.b16 %v1141, %v1140
          %v1156 = vpack.c.b16 %v1143, %v1142
          %v1157 = vpack.c.b16 %v1145, %v1144
          %v1158 = vpack.c.b16 %v1147, %v1146
          %v1159 = vpack.c.b16 %v1149, %v1148
          %v1160 = vpack.c.b16 %v1151, %v1150
          %v1161 = vpack.c.b16 %v1153, %v1152
          %1170 = vmatprep.subr.bf16.mxu0 0
          %1171 = vmatpush1.bf16.msra.mxu0 %v1161
          %1172 = vmatprep.subr.bf16.mxu0 0
          %1173 = vmatpush1.bf16.msra.mxu0 %v1160
          %1174 = vmatprep.subr.bf16.mxu0 0
          %1175 = vmatpush1.bf16.msra.mxu0 %v1159
          %1176 = vmatprep.subr.bf16.mxu0 0
          %1177 = vmatpush1.bf16.msra.mxu0 %v1158
          %1178 = vmatprep.subr.bf16.mxu0 0
          %1179 = vmatpush1.bf16.msra.mxu0 %v1157
          %1180 = vmatprep.subr.bf16.mxu0 0
          %1181 = vmatpush1.bf16.msra.mxu0 %v1156
          %1182 = vmatprep.subr.bf16.mxu0 0
          %1183 = vmatpush1.bf16.msra.mxu0 %v1155
          %1184 = vmatprep.subr.bf16.mxu0 0
          %1185 = vmatpush1.bf16.msra.mxu0 %v1154
          %1186 = vmatprep.subr.bf16.mxu0 0
          %1187 = vmatpush2.bf16.msra.mxu0 0
          %1188 = vmatprep.subr.bf16.mxu0 0
          %1189 = vmatpush2.bf16.msra.mxu0 0
          %1190 = vmatprep.subr.bf16.mxu0 0
          %1191 = vmatpush2.bf16.msra.mxu0 0
          %1192 = vmatprep.subr.bf16.mxu0 0
          %1193 = vmatpush2.bf16.msra.mxu0 0
          %1194 = vmatprep.subr.bf16.mxu0 0
          %1195 = vmatpush2.bf16.msra.mxu0 0
          %1196 = vmatprep.subr.bf16.mxu0 0
          %1197 = vmatpush2.bf16.msra.mxu0 0
          %1198 = vmatprep.subr.bf16.mxu0 0
          %1199 = vmatpush2.bf16.msra.mxu0 0
          %1200 = vmatprep.subr.bf16.mxu0 0
          %1201 = vmatpush2.bf16.msra.mxu0 0
          %1202 = vmatprep.mubr.bf16.mxu0 0
          %1203 = vmatmul.mubr.bf16.gmra.mxu0 %v868
          %v1204 = vpop.f32.mrf.mxu0
          %v1205 = vadd.f32 %v1060, %v1204
          %v1206 = vpop.f32.mrf.mxu0
          %v1207 = vpop.f32.mrf.mxu0
          %v1208 = vadd.f32 %v1063, %v1207
          %v1209 = vpop.f32.mrf.mxu0
          %1210 = vmatprep.mubr.bf16.mxu0 0
          %1211 = vmatmul.mubr.bf16.gmra.mxu0 %v869
          %v1212 = vpop.f32.mrf.mxu0
          %v1213 = vadd.f32 %v1068, %v1212
          %v1214 = vpop.f32.mrf.mxu0
          %v1215 = vpop.f32.mrf.mxu0
          %v1216 = vadd.f32 %v1071, %v1215
          %v1217 = vpop.f32.mrf.mxu0
          %1218 = vmatprep.mubr.bf16.mxu0 0
          %1219 = vmatmul.mubr.bf16.gmra.mxu0 %v870
          %v1220 = vpop.f32.mrf.mxu0
          %v1221 = vadd.f32 %v1076, %v1220
          %v1222 = vpop.f32.mrf.mxu0
          %v1223 = vpop.f32.mrf.mxu0
          %v1224 = vadd.f32 %v1079, %v1223
          %v1225 = vpop.f32.mrf.mxu0
          %1226 = vmatprep.mubr.bf16.mxu0 0
          %1227 = vmatmul.mubr.bf16.gmra.mxu0 %v871
          %v1228 = vpop.f32.mrf.mxu0
          %v1229 = vadd.f32 %v1084, %v1228
          %v1230 = vpop.f32.mrf.mxu0
          %v1231 = vpop.f32.mrf.mxu0
          %v1232 = vadd.f32 %v1087, %v1231
          %v1233 = vpop.f32.mrf.mxu0
          %1234 = vmatprep.mubr.bf16.mxu0 0
          %1235 = vmatmul.mubr.bf16.gmra.mxu0 %v872
          %v1236 = vpop.f32.mrf.mxu0
          %v1237 = vadd.f32 %v1092, %v1236
          %v1238 = vpop.f32.mrf.mxu0
          %v1239 = vpop.f32.mrf.mxu0
          %v1240 = vadd.f32 %v1095, %v1239
          %v1241 = vpop.f32.mrf.mxu0
          %1242 = vmatprep.mubr.bf16.mxu0 0
          %1243 = vmatmul.mubr.bf16.gmra.mxu0 %v873
          %v1244 = vpop.f32.mrf.mxu0
          %v1245 = vadd.f32 %v1100, %v1244
          %v1246 = vpop.f32.mrf.mxu0
          %v1247 = vpop.f32.mrf.mxu0
          %v1248 = vadd.f32 %v1103, %v1247
          %v1249 = vpop.f32.mrf.mxu0
          %1250 = vmatprep.mubr.bf16.mxu0 0
          %1251 = vmatmul.mubr.bf16.gmra.mxu0 %v874
          %v1252 = vpop.f32.mrf.mxu0
          %v1253 = vadd.f32 %v1108, %v1252
          %v1254 = vpop.f32.mrf.mxu0
          %v1255 = vpop.f32.mrf.mxu0
          %v1256 = vadd.f32 %v1111, %v1255
          %v1257 = vpop.f32.mrf.mxu0
          %1258 = vmatprep.mubr.bf16.mxu0 0
          %1259 = vmatmul.mubr.bf16.gmra.mxu0 %v875
          %v1260 = vpop.f32.mrf.mxu0
          %v1261 = vadd.f32 %v1116, %v1260
          %v1262 = vpop.f32.mrf.mxu0
          %v1263 = vpop.f32.mrf.mxu0
          %v1264 = vadd.f32 %v1119, %v1263
          %v1265 = vpop.f32.mrf.mxu0
          %1266 = vdwg.mxu0
          %v1267 = vmul.f32 %v1205, %v1205
          %v1268 = vmul.f32 %v1208, %v1208
          %v1269 = vmul.f32 %v1213, %v1213
          %v1270 = vmul.f32 %v1216, %v1216
          %v1271 = vmul.f32 %v1221, %v1221
          %v1272 = vmul.f32 %v1224, %v1224
          %v1273 = vmul.f32 %v1229, %v1229
          %v1274 = vmul.f32 %v1232, %v1232
          %v1275 = vmul.f32 %v1237, %v1237
          %v1276 = vmul.f32 %v1240, %v1240
          %v1277 = vmul.f32 %v1245, %v1245
          %v1278 = vmul.f32 %v1248, %v1248
          %v1279 = vmul.f32 %v1253, %v1253
          %v1280 = vmul.f32 %v1256, %v1256
          %v1281 = vmul.f32 %v1261, %v1261
          %v1282 = vmul.f32 %v1264, %v1264
          %1283 = vadd.xlane.f32.xlu0 %v1267
          %v1284 = vpop.xlane.xlu0 %1283
          %1285 = vadd.xlane.f32.xlu0 %v1268
          %v1286 = vpop.xlane.xlu0 %1285
          %1287 = vadd.xlane.f32.xlu0 %v1269
          %v1288 = vpop.xlane.xlu0 %1287
          %1289 = vadd.xlane.f32.xlu0 %v1270
          %v1290 = vpop.xlane.xlu0 %1289
          %1291 = vadd.xlane.f32.xlu0 %v1271
          %v1292 = vpop.xlane.xlu0 %1291
          %1293 = vadd.xlane.f32.xlu0 %v1272
          %v1294 = vpop.xlane.xlu0 %1293
          %1295 = vadd.xlane.f32.xlu0 %v1273
          %v1296 = vpop.xlane.xlu0 %1295
          %1297 = vadd.xlane.f32.xlu0 %v1274
          %v1298 = vpop.xlane.xlu0 %1297
          %1299 = vadd.xlane.f32.xlu0 %v1275
          %v1300 = vpop.xlane.xlu0 %1299
          %1301 = vadd.xlane.f32.xlu0 %v1276
          %v1302 = vpop.xlane.xlu0 %1301
          %1303 = vadd.xlane.f32.xlu0 %v1277
          %v1304 = vpop.xlane.xlu0 %1303
          %1305 = vadd.xlane.f32.xlu0 %v1278
          %v1306 = vpop.xlane.xlu0 %1305
          %1307 = vadd.xlane.f32.xlu0 %v1279
          %v1308 = vpop.xlane.xlu0 %1307
          %1309 = vadd.xlane.f32.xlu0 %v1280
          %v1310 = vpop.xlane.xlu0 %1309
          %1311 = vadd.xlane.f32.xlu0 %v1281
          %v1312 = vpop.xlane.xlu0 %1311
          %1313 = vadd.xlane.f32.xlu0 %v1282
          %v1314 = vpop.xlane.xlu0 %1313
          %v1315 = vmax.f32 %v1284, 1e-24
          %v1316 = vmax.f32 %v1286, 1e-24
          %v1317 = vmax.f32 %v1288, 1e-24
          %v1318 = vmax.f32 %v1290, 1e-24
          %v1319 = vmax.f32 %v1292, 1e-24
          %v1320 = vmax.f32 %v1294, 1e-24
          %v1321 = vmax.f32 %v1296, 1e-24
          %v1322 = vmax.f32 %v1298, 1e-24
          %v1323 = vmax.f32 %v1300, 1e-24
          %v1324 = vmax.f32 %v1302, 1e-24
          %v1325 = vmax.f32 %v1304, 1e-24
          %v1326 = vmax.f32 %v1306, 1e-24
          %v1327 = vmax.f32 %v1308, 1e-24
          %v1328 = vmax.f32 %v1310, 1e-24
          %v1329 = vmax.f32 %v1312, 1e-24
          %v1330 = vmax.f32 %v1314, 1e-24
          %v1331 = vrsqrt.pop %v1315
          %v1332 = vrsqrt.pop %v1316
          %v1333 = vrsqrt.pop %v1317
          %v1334 = vrsqrt.pop %v1318
          %v1335 = vrsqrt.pop %v1319
          %v1336 = vrsqrt.pop %v1320
          %v1337 = vrsqrt.pop %v1321
          %v1338 = vrsqrt.pop %v1322
          %v1339 = vrsqrt.pop %v1323
          %v1340 = vrsqrt.pop %v1324
          %v1341 = vrsqrt.pop %v1325
          %v1342 = vrsqrt.pop %v1326
          %v1343 = vrsqrt.pop %v1327
          %v1344 = vrsqrt.pop %v1328
          %v1345 = vrsqrt.pop %v1329
          %v1346 = vrsqrt.pop %v1330
          %v1347 = vmul.f32 %v1205, %v1331
          %v1348 = vmul.f32 %v1208, %v1332
          %v1349 = vmul.f32 %v1213, %v1333
          %v1350 = vmul.f32 %v1216, %v1334
          %v1351 = vmul.f32 %v1221, %v1335
          %v1352 = vmul.f32 %v1224, %v1336
          %v1353 = vmul.f32 %v1229, %v1337
          %v1354 = vmul.f32 %v1232, %v1338
          %v1355 = vmul.f32 %v1237, %v1339
          %v1356 = vmul.f32 %v1240, %v1340
          %v1357 = vmul.f32 %v1245, %v1341
          %v1358 = vmul.f32 %v1248, %v1342
          %v1359 = vmul.f32 %v1253, %v1343
          %v1360 = vmul.f32 %v1256, %v1344
          %v1361 = vmul.f32 %v1261, %v1345
          %v1362 = vmul.f32 %v1264, %v1346
          %v1363 = vmax.f32 %v1347, 0.0
          %v1364 = vmax.f32 %v1348, 0.0
          %v1365 = vmax.f32 %v1349, 0.0
          %v1366 = vmax.f32 %v1350, 0.0
          %v1367 = vmax.f32 %v1351, 0.0
          %v1368 = vmax.f32 %v1352, 0.0
          %v1369 = vmax.f32 %v1353, 0.0
          %v1370 = vmax.f32 %v1354, 0.0
          %v1371 = vmax.f32 %v1355, 0.0
          %v1372 = vmax.f32 %v1356, 0.0
          %v1373 = vmax.f32 %v1357, 0.0
          %v1374 = vmax.f32 %v1358, 0.0
          %v1375 = vmax.f32 %v1359, 0.0
          %v1376 = vmax.f32 %v1360, 0.0
          %v1377 = vmax.f32 %v1361, 0.0
          %v1378 = vmax.f32 %v1362, 0.0
          %v1379 = vpack.c.bf16 %v1364, %v1363
          %v1380 = vpack.c.bf16 %v1366, %v1365
          %v1381 = vpack.c.bf16 %v1368, %v1367
          %v1382 = vpack.c.bf16 %v1370, %v1369
          %v1383 = vpack.c.bf16 %v1372, %v1371
          %v1384 = vpack.c.bf16 %v1374, %v1373
          %v1385 = vpack.c.bf16 %v1376, %v1375
          %v1386 = vpack.c.bf16 %v1378, %v1377
          %v1387 = vld [vmem:[%s5] sm:$0xff]
          %v1388 = vld [vmem:[%s5 + $0x8] sm:$0xff]
          %v1389 = vld [vmem:[%s5 + $0x10] sm:$0xff]
          %v1390 = vld [vmem:[%s5 + $0x18] sm:$0xff]
          %v1391 = vld [vmem:[%s5 + $0x20] sm:$0xff]
          %v1392 = vld [vmem:[%s5 + $0x28] sm:$0xff]
          %v1393 = vld [vmem:[%s5 + $0x30] sm:$0xff]
          %v1394 = vld [vmem:[%s5 + $0x38] sm:$0xff]
          %v1395 = vld [vmem:[%s5 + $0x40] sm:$0xff]
          %v1396 = vld [vmem:[%s5 + $0x48] sm:$0xff]
          %v1397 = vld [vmem:[%s5 + $0x50] sm:$0xff]
          %v1398 = vld [vmem:[%s5 + $0x58] sm:$0xff]
          %v1399 = vld [vmem:[%s5 + $0x60] sm:$0xff]
          %v1400 = vld [vmem:[%s5 + $0x68] sm:$0xff]
          %v1401 = vld [vmem:[%s5 + $0x70] sm:$0xff]
          %v1402 = vld [vmem:[%s5 + $0x78] sm:$0xff]
          %v1419 = vunpack.c.l.b16 %v1387
          %v1420 = vunpack.c.h.b16 %v1387
          %v1421 = vunpack.c.l.b16 %v1388
          %v1422 = vunpack.c.h.b16 %v1388
          %v1423 = vunpack.c.l.b16 %v1389
          %v1424 = vunpack.c.h.b16 %v1389
          %v1425 = vunpack.c.l.b16 %v1390
          %v1426 = vunpack.c.h.b16 %v1390
          %v1427 = vunpack.c.l.b16 %v1391
          %v1428 = vunpack.c.h.b16 %v1391
          %v1429 = vunpack.c.l.b16 %v1392
          %v1430 = vunpack.c.h.b16 %v1392
          %v1431 = vunpack.c.l.b16 %v1393
          %v1432 = vunpack.c.h.b16 %v1393
          %v1433 = vunpack.c.l.b16 %v1394
          %v1434 = vunpack.c.h.b16 %v1394
          %v1435 = vunpack.c.l.b16 %v1395
          %v1436 = vunpack.c.h.b16 %v1395
          %v1437 = vunpack.c.l.b16 %v1396
          %v1438 = vunpack.c.h.b16 %v1396
          %v1439 = vunpack.c.l.b16 %v1397
          %v1440 = vunpack.c.h.b16 %v1397
          %v1441 = vunpack.c.l.b16 %v1398
          %v1442 = vunpack.c.h.b16 %v1398
          %v1443 = vunpack.c.l.b16 %v1399
          %v1444 = vunpack.c.h.b16 %v1399
          %v1445 = vunpack.c.l.b16 %v1400
          %v1446 = vunpack.c.h.b16 %v1400
          %v1447 = vunpack.c.l.b16 %v1401
          %v1448 = vunpack.c.h.b16 %v1401
          %v1449 = vunpack.c.l.b16 %v1402
          %v1450 = vunpack.c.h.b16 %v1402
          %v1451 = vpack.c.b16 %v1421, %v1419
          %v1452 = vpack.c.b16 %v1422, %v1420
          %v1453 = vpack.c.b16 %v1425, %v1423
          %v1454 = vpack.c.b16 %v1426, %v1424
          %v1455 = vpack.c.b16 %v1429, %v1427
          %v1456 = vpack.c.b16 %v1430, %v1428
          %v1457 = vpack.c.b16 %v1433, %v1431
          %v1458 = vpack.c.b16 %v1434, %v1432
          %v1459 = vpack.c.b16 %v1437, %v1435
          %v1460 = vpack.c.b16 %v1438, %v1436
          %v1461 = vpack.c.b16 %v1441, %v1439
          %v1462 = vpack.c.b16 %v1442, %v1440
          %v1463 = vpack.c.b16 %v1445, %v1443
          %v1464 = vpack.c.b16 %v1446, %v1444
          %v1465 = vpack.c.b16 %v1449, %v1447
          %v1466 = vpack.c.b16 %v1450, %v1448
          %1483 = vmatprep.subr.bf16.mxu0 %v1466
          %1484 = vmatpush1.bf16.msra.mxu0 %v1465
          %1485 = vmatprep.subr.bf16.mxu0 %v1464
          %1486 = vmatpush1.bf16.msra.mxu0 %v1463
          %1487 = vmatprep.subr.bf16.mxu0 %v1462
          %1488 = vmatpush1.bf16.msra.mxu0 %v1461
          %1489 = vmatprep.subr.bf16.mxu0 %v1460
          %1490 = vmatpush1.bf16.msra.mxu0 %v1459
          %1491 = vmatprep.subr.bf16.mxu0 %v1458
          %1492 = vmatpush1.bf16.msra.mxu0 %v1457
          %1493 = vmatprep.subr.bf16.mxu0 %v1456
          %1494 = vmatpush1.bf16.msra.mxu0 %v1455
          %1495 = vmatprep.subr.bf16.mxu0 %v1454
          %1496 = vmatpush1.bf16.msra.mxu0 %v1453
          %1497 = vmatprep.subr.bf16.mxu0 %v1452
          %1498 = vmatpush1.bf16.msra.mxu0 %v1451
          %1499 = vmatprep.subr.bf16.mxu0 0
          %1500 = vmatpush2.bf16.msra.mxu0 0
          %1501 = vmatprep.subr.bf16.mxu0 0
          %1502 = vmatpush2.bf16.msra.mxu0 0
          %1503 = vmatprep.subr.bf16.mxu0 0
          %1504 = vmatpush2.bf16.msra.mxu0 0
          %1505 = vmatprep.subr.bf16.mxu0 0
          %1506 = vmatpush2.bf16.msra.mxu0 0
          %1507 = vmatprep.subr.bf16.mxu0 0
          %1508 = vmatpush2.bf16.msra.mxu0 0
          %1509 = vmatprep.subr.bf16.mxu0 0
          %1510 = vmatpush2.bf16.msra.mxu0 0
          %1511 = vmatprep.subr.bf16.mxu0 0
          %1512 = vmatpush2.bf16.msra.mxu0 0
          %1513 = vmatprep.subr.bf16.mxu0 0
          %1514 = vmatpush2.bf16.msra.mxu0 0
          %1515 = vmatprep.mubr.bf16.mxu0 0
          %1516 = vmatmul.mubr.bf16.gmra.mxu0 %v1379
          %v1517 = vpop.f32.mrf.mxu0
          %v1518 = vadd.f32 0.0, %v1517
          %v1519 = vpop.f32.mrf.mxu0
          %v1520 = vadd.f32 0.0, %v1519
          %v1521 = vpop.f32.mrf.mxu0
          %v1522 = vadd.f32 0.0, %v1521
          %v1523 = vpop.f32.mrf.mxu0
          %v1524 = vadd.f32 0.0, %v1523
          %1525 = vmatprep.mubr.bf16.mxu0 0
          %1526 = vmatmul.mubr.bf16.gmra.mxu0 %v1380
          %v1527 = vpop.f32.mrf.mxu0
          %v1528 = vadd.f32 0.0, %v1527
          %v1529 = vpop.f32.mrf.mxu0
          %v1530 = vadd.f32 0.0, %v1529
          %v1531 = vpop.f32.mrf.mxu0
          %v1532 = vadd.f32 0.0, %v1531
          %v1533 = vpop.f32.mrf.mxu0
          %v1534 = vadd.f32 0.0, %v1533
          %1535 = vmatprep.mubr.bf16.mxu0 0
          %1536 = vmatmul.mubr.bf16.gmra.mxu0 %v1381
          %v1537 = vpop.f32.mrf.mxu0
          %v1538 = vadd.f32 0.0, %v1537
          %v1539 = vpop.f32.mrf.mxu0
          %v1540 = vadd.f32 0.0, %v1539
          %v1541 = vpop.f32.mrf.mxu0
          %v1542 = vadd.f32 0.0, %v1541
          %v1543 = vpop.f32.mrf.mxu0
          %v1544 = vadd.f32 0.0, %v1543
          %1545 = vmatprep.mubr.bf16.mxu0 0
          %1546 = vmatmul.mubr.bf16.gmra.mxu0 %v1382
          %v1547 = vpop.f32.mrf.mxu0
          %v1548 = vadd.f32 0.0, %v1547
          %v1549 = vpop.f32.mrf.mxu0
          %v1550 = vadd.f32 0.0, %v1549
          %v1551 = vpop.f32.mrf.mxu0
          %v1552 = vadd.f32 0.0, %v1551
          %v1553 = vpop.f32.mrf.mxu0
          %v1554 = vadd.f32 0.0, %v1553
          %1555 = vmatprep.mubr.bf16.mxu0 0
          %1556 = vmatmul.mubr.bf16.gmra.mxu0 %v1383
          %v1557 = vpop.f32.mrf.mxu0
          %v1558 = vadd.f32 0.0, %v1557
          %v1559 = vpop.f32.mrf.mxu0
          %v1560 = vadd.f32 0.0, %v1559
          %v1561 = vpop.f32.mrf.mxu0
          %v1562 = vadd.f32 0.0, %v1561
          %v1563 = vpop.f32.mrf.mxu0
          %v1564 = vadd.f32 0.0, %v1563
          %1565 = vmatprep.mubr.bf16.mxu0 0
          %1566 = vmatmul.mubr.bf16.gmra.mxu0 %v1384
          %v1567 = vpop.f32.mrf.mxu0
          %v1568 = vadd.f32 0.0, %v1567
          %v1569 = vpop.f32.mrf.mxu0
          %v1570 = vadd.f32 0.0, %v1569
          %v1571 = vpop.f32.mrf.mxu0
          %v1572 = vadd.f32 0.0, %v1571
          %v1573 = vpop.f32.mrf.mxu0
          %v1574 = vadd.f32 0.0, %v1573
          %1575 = vmatprep.mubr.bf16.mxu0 0
          %1576 = vmatmul.mubr.bf16.gmra.mxu0 %v1385
          %v1577 = vpop.f32.mrf.mxu0
          %v1578 = vadd.f32 0.0, %v1577
          %v1579 = vpop.f32.mrf.mxu0
          %v1580 = vadd.f32 0.0, %v1579
          %v1581 = vpop.f32.mrf.mxu0
          %v1582 = vadd.f32 0.0, %v1581
          %v1583 = vpop.f32.mrf.mxu0
          %v1584 = vadd.f32 0.0, %v1583
          %1585 = vmatprep.mubr.bf16.mxu0 0
          %1586 = vmatmul.mubr.bf16.gmra.mxu0 %v1386
          %v1587 = vpop.f32.mrf.mxu0
          %v1588 = vadd.f32 0.0, %v1587
          %v1589 = vpop.f32.mrf.mxu0
          %v1590 = vadd.f32 0.0, %v1589
          %v1591 = vpop.f32.mrf.mxu0
          %v1592 = vadd.f32 0.0, %v1591
          %v1593 = vpop.f32.mrf.mxu0
          %v1594 = vadd.f32 0.0, %v1593
          %1595 = vdwg.mxu0
          %1596 = vst [vmem:[%s429] sm:$0xff] %v1518
          %1597 = vst [vmem:[%s429 + $0x8] sm:$0xff] %v1522
          %1598 = vst [vmem:[%s429 + $0x10] sm:$0xff] %v1528
          %1599 = vst [vmem:[%s429 + $0x18] sm:$0xff] %v1532
          %1600 = vst [vmem:[%s429 + $0x20] sm:$0xff] %v1538
          %1601 = vst [vmem:[%s429 + $0x28] sm:$0xff] %v1542
          %1602 = vst [vmem:[%s429 + $0x30] sm:$0xff] %v1548
          %1603 = vst [vmem:[%s429 + $0x38] sm:$0xff] %v1552
          %1604 = vst [vmem:[%s429 + $0x40] sm:$0xff] %v1558
          %1605 = vst [vmem:[%s429 + $0x48] sm:$0xff] %v1562
          %1606 = vst [vmem:[%s429 + $0x50] sm:$0xff] %v1568
          %1607 = vst [vmem:[%s429 + $0x58] sm:$0xff] %v1572
          %1608 = vst [vmem:[%s429 + $0x60] sm:$0xff] %v1578
          %1609 = vst [vmem:[%s429 + $0x68] sm:$0xff] %v1582
          %1610 = vst [vmem:[%s429 + $0x70] sm:$0xff] %v1588
          %1611 = vst [vmem:[%s429 + $0x78] sm:$0xff] %v1592
          %v1612 = vpack.c.bf16 %v1524, %v1520
          %v1613 = vpack.c.bf16 %v1534, %v1530
          %v1614 = vpack.c.bf16 %v1544, %v1540
          %v1615 = vpack.c.bf16 %v1554, %v1550
          %v1616 = vpack.c.bf16 %v1564, %v1560
          %v1617 = vpack.c.bf16 %v1574, %v1570
          %v1618 = vpack.c.bf16 %v1584, %v1580
          %v1619 = vpack.c.bf16 %v1594, %v1590
          %v1628 = vunpack.c.l.b16 %v1612
          %v1629 = vunpack.c.h.b16 %v1612
          %v1630 = vunpack.c.l.b16 %v1613
          %v1631 = vunpack.c.h.b16 %v1613
          %v1632 = vunpack.c.l.b16 %v1614
          %v1633 = vunpack.c.h.b16 %v1614
          %v1634 = vunpack.c.l.b16 %v1615
          %v1635 = vunpack.c.h.b16 %v1615
          %v1636 = vunpack.c.l.b16 %v1616
          %v1637 = vunpack.c.h.b16 %v1616
          %v1638 = vunpack.c.l.b16 %v1617
          %v1639 = vunpack.c.h.b16 %v1617
          %v1640 = vunpack.c.l.b16 %v1618
          %v1641 = vunpack.c.h.b16 %v1618
          %v1642 = vunpack.c.l.b16 %v1619
          %v1643 = vunpack.c.h.b16 %v1619
          %v1644 = vpack.c.b16 %v1628, %v1628
          %v1645 = vpack.c.b16 %v1629, %v1629
          %v1646 = vpack.c.b16 %v1630, %v1630
          %v1647 = vpack.c.b16 %v1631, %v1631
          %v1648 = vpack.c.b16 %v1632, %v1632
          %v1649 = vpack.c.b16 %v1633, %v1633
          %v1650 = vpack.c.b16 %v1634, %v1634
          %v1651 = vpack.c.b16 %v1635, %v1635
          %v1652 = vpack.c.b16 %v1636, %v1636
          %v1653 = vpack.c.b16 %v1637, %v1637
          %v1654 = vpack.c.b16 %v1638, %v1638
          %v1655 = vpack.c.b16 %v1639, %v1639
          %v1656 = vpack.c.b16 %v1640, %v1640
          %v1657 = vpack.c.b16 %v1641, %v1641
          %v1658 = vpack.c.b16 %v1642, %v1642
          %v1659 = vpack.c.b16 %v1643, %v1643
          %1676 = vst [vmem:[%s435] sm:$0xf] %v1644
          %1677 = vst [vmem:[%s435 + $0x4] sm:$0xf] %v1645
          %1678 = vst [vmem:[%s435 + $0x8] sm:$0xf] %v1646
          %1679 = vst [vmem:[%s435 + $0xc] sm:$0xf] %v1647
          %1680 = vst [vmem:[%s435 + $0x10] sm:$0xf] %v1648
          %1681 = vst [vmem:[%s435 + $0x14] sm:$0xf] %v1649
          %1682 = vst [vmem:[%s435 + $0x18] sm:$0xf] %v1650
          %1683 = vst [vmem:[%s435 + $0x1c] sm:$0xf] %v1651
          %1684 = vst [vmem:[%s435 + $0x20] sm:$0xf] %v1652
          %1685 = vst [vmem:[%s435 + $0x24] sm:$0xf] %v1653
          %1686 = vst [vmem:[%s435 + $0x28] sm:$0xf] %v1654
          %1687 = vst [vmem:[%s435 + $0x2c] sm:$0xf] %v1655
          %1688 = vst [vmem:[%s435 + $0x30] sm:$0xf] %v1656
          %1689 = vst [vmem:[%s435 + $0x34] sm:$0xf] %v1657
          %1690 = vst [vmem:[%s435 + $0x38] sm:$0xf] %v1658
          %1691 = vst [vmem:[%s435 + $0x3c] sm:$0xf] %v1659
        $region93: #{graphsage_forward.2} parent=80 // pred_fallthru
          _
        %s1692 = smul.u32 16, %s23
        %p1693 = scmp.lt.s32.totalorder %s1692, 31
        %s1694 = scalar_select %p1693, %s1692, 31
        %s1695 = smul.addr %s1694, 8
        %s1696 = scalar_lea.vmem %s6, %s1695
        %s1697 = smul.u32 16, %s23
        %p1698 = scmp.lt.s32.totalorder %s1697, 31
        %s1699 = scalar_select %p1698, %s1697, 31
        %s1700 = smul.addr %s1699, 4
        %s1701 = scalar_lea.vmem %s7, %s1700
        // Predicated region
        $region94: #{graphsage_forward.2} parent=80 // pred_check
          %p1702 = pneg %p187
        $region95: #{graphsage_forward.2} parent=80 // pred_check_branch
          %1704 = sbr.rel (%p1702) target = $region97
        $region96: #{graphsage_forward.2} parent=80 // pred_region
          %s1705 = smul.u32 16, %s23
        $region97: #{graphsage_forward.2} parent=80 // pred_fallthru
          _
        // Predicated region
        $region98: #{graphsage_forward.2} parent=80 // pred_check
          %p1706 = pneg %p213
        $region99: #{graphsage_forward.2} parent=80 // pred_check_branch
          %1708 = sbr.rel (%p1706) target = $region101
        $region100: #{graphsage_forward.2} parent=80 // pred_region
          %s1709 = smul.u32 16, %s23
        $region101: #{graphsage_forward.2} parent=80 // pred_fallthru
          _
      $region81: #{graphsage_forward.2} parent=5 // pred_fallthru
        _
      %p1710 = scmp.le.s32.totalorder 2, %s14
      // Predicated region
      $region102: #{graphsage_forward.2} parent=5 // pred_check
        %p1711 = pneg %p1710
      $region103: #{graphsage_forward.2} parent=5 // pred_check_branch
        %1713 = sbr.rel (%p1711) target = $region105
      $region104: #{graphsage_forward.2} parent=5 // pred_region
        %s1714 = ssub.s32 %s14, 2
        // Predicated region
        $region106: #{graphsage_forward.2} parent=104 // pred_check
          %p1715 = pneg %p193
        $region107: #{graphsage_forward.2} parent=104 // pred_check_branch
          %1717 = sbr.rel (%p1715) target = $region109
        $region108: #{graphsage_forward.2} parent=104 // pred_region
          %s1718 = smul.u32 16, %s25
          %p1719 = scmp.lt.s32.totalorder %s1718, 31
          %s1720 = scalar_select %p1719, %s1718, 31
          %s1721 = smul.addr %s1720, 8
          %s1722 = scalar_lea.vmem %s6, %s1721
        $region109: #{graphsage_forward.2} parent=104 // pred_fallthru
          _
        // Predicated region
        $region110: #{graphsage_forward.2} parent=104 // pred_check
          %p1723 = pneg %p219
        $region111: #{graphsage_forward.2} parent=104 // pred_check_branch
          %1725 = sbr.rel (%p1723) target = $region113
        $region112: #{graphsage_forward.2} parent=104 // pred_region
          %s1726 = smul.u32 16, %s25
          %p1727 = scmp.lt.s32.totalorder %s1726, 31
          %s1728 = scalar_select %p1727, %s1726, 31
          %s1729 = smul.addr %s1728, 4
          %s1730 = scalar_lea.vmem %s7, %s1729
        $region113: #{graphsage_forward.2} parent=104 // pred_fallthru
          _
      $region105: #{graphsage_forward.2} parent=5 // pred_fallthru
        _
    $region6: #{graphsage_forward.2} parent=1 // loop_footer
      %s18 = sadd.s32 1, %s14
    $region7: #{graphsage_forward.2} parent=1 // loop_footer_branch
      %13 = sbr.rel target = $region3
    $region8: #{graphsage_forward.2} parent=1 // loop_exit
      _

</llo_original>
